<compile_context>
chip_gen: v7x
topology: tpu7x:2x2x1
jax: 0.10.0
libtpu: 0.0.40
codegen_flags: <defaults>
</compile_context>

<pallas_src>
import functools

import jax
import jax.numpy as jnp
import numpy as np
from jax import lax
from jax.experimental import pallas as pl
from jax.experimental.pallas import tpu as pltpu


def _round_up(x, m):
    return (x + m - 1) // m * m


def _cdiv(a, b):
    return (a + b - 1) // b


def noisy_rnn_recurrence_kernel(x_ref, ew_ref, eb_ref, aw_ref, d_ref,
                                h_out_ref, z_scr, h_ref, *, time_chunk, n_half):
    """One grid step == `time_chunk` RNN timesteps for one batch block.

    x_ref:     (tc, bb, in_pad)  bf16  input slice (encoder fused in-kernel)
    ew_ref:    (in_pad, n_pad)   bf16  E^T              (loop-invariant)
    eb_ref:    (1, n_pad)        f32   encoder bias     (loop-invariant)
    aw_ref:    (n_pad, 2*n_pad)  bf16  [alpha*A | W]    (loop-invariant)
    d_ref:     (1, n_pad)        f32                    (loop-invariant)
    h_out_ref: (tc, bb, n_pad)   bf16  hidden state written per timestep
    z_scr:     (tc, bb, n_pad)   f32   VMEM staging for the chunked encoder
    h_ref:     (bb, n_pad)       f32   persistent hidden-state carry
    """
    t_blk = pl.program_id(1)

    @pl.when(t_blk == 0)
    def _():
        h_ref[...] = jnp.zeros_like(h_ref)

    tc, bb, in_pad = x_ref.shape

    # Chunked encoder GEMM (one big bf16 MXU matmul, off the serial path).
    x_chunk = x_ref[...].reshape(tc * bb, in_pad)                      # bf16
    z_chunk = jnp.dot(x_chunk, ew_ref[...],
                      preferred_element_type=jnp.float32) + eb_ref[...]
    z_scr[...] = z_chunk.reshape(tc, bb, n_half)                       # f32

    aw = aw_ref[...]                                                   # bf16
    d = jnp.broadcast_to(d_ref[...], h_ref.shape)                      # f32, hoisted

    def step(t, h):
        z_t = z_scr[t]                                                 # (bb, n_pad) f32
        # one fused bf16 MXU matmul: [alpha*h@A | h@W], f32 accumulation
        ha_hw = jnp.dot(h.astype(jnp.bfloat16), aw,
                        preferred_element_type=jnp.float32)
        h_a = ha_hw[:, :n_half]                                        # alpha * (h @ A)
        h_w = ha_hw[:, n_half:]                                        # h @ W
        # solver='noisy', mode='test': add_noise = 0, mult_noise = 1
        h_new = h + d * (h_a + jnp.tanh(h_w + z_t))                    # f32 carry
        h_out_ref[t] = h_new.astype(h_out_ref.dtype)                   # bf16 writeback
        return h_new

    h_ref[...] = lax.fori_loop(0, time_chunk, step, h_ref[...], unroll=True)


def _choose_batch_block(batch, batch_block):
    """Block size multiple of 16 (bf16 packing), >=2 blocks when batch allows
    (v7x second TensorCore), minimal zero padding, capped at batch_block."""
    batch_block = max(16, _round_up(batch_block, 16))
    b16 = _round_up(batch, 16)
    want_blocks = 2 if b16 >= 32 else 1
    num_blocks = max(want_blocks, _cdiv(b16, batch_block))
    bb = min(_round_up(_cdiv(batch, num_blocks), 16), batch_block)
    num_blocks = _cdiv(batch, bb)
    return bb, num_blocks * bb


def noisy_rnn_forward(x, params, *, alpha=1.0, beta=0.8, gamma_A=0.01,
                      gamma_W=0.01, time_chunk=32, batch_block=256):
    """x: (batch, T, input_dim).  Returns (batch, T, output_classes) in f32."""
    batch, T, input_dim = x.shape
    n_units = params["B"].shape[0]
    f32, bf16 = jnp.float32, jnp.bfloat16

    # ---- recurrence matrices (fixed per forward) ----
    B, C = params["B"].astype(f32), params["C"].astype(f32)
    I = jnp.eye(n_units, dtype=f32)
    A = beta * (B - B.T) + (1.0 - beta) * (B + B.T) - gamma_A * I
    W = beta * (C - C.T) + (1.0 - beta) * (C + C.T) - gamma_W * I

    # ---- pad to vreg/MXU-friendly shapes ----
    n_pad = _round_up(n_units, 128)
    in_pad = _round_up(input_dim, 128)
    bb, batch_pad = _choose_batch_block(batch, batch_block)
    tc = min(time_chunk, T)
    T_pad = _round_up(T, tc)

    # ---- x streamed time-major in bf16 (encoder runs inside the kernel) ----
    x_tm = jnp.transpose(x, (1, 0, 2)).astype(bf16)                    # (T, batch, in)
    x_p = jnp.zeros((T_pad, batch_pad, in_pad), bf16)
    x_p = x_p.at[:T, :batch, :input_dim].set(x_tm)

    # E^T / E_b, padded; padded rows/cols zero.
    ew = jnp.zeros((in_pad, n_pad), f32).at[:input_dim, :n_units].set(
        params["E_w"].astype(f32).T).astype(bf16)
    eb = jnp.zeros((1, n_pad), f32).at[0, :n_units].set(params["E_b"].astype(f32))

    # AW = [alpha*A | W] in bf16; padded rows/cols zero.
    aw = jnp.zeros((n_pad, 2 * n_pad), f32)
    aw = aw.at[:n_units, :n_units].set(alpha * A)
    aw = aw.at[:n_units, n_pad:n_pad + n_units].set(W)
    aw = aw.astype(bf16)

    # d zero in padded lanes -> padded lanes of h stay exactly zero.
    d_p = jnp.zeros((1, n_pad), f32).at[0, :n_units].set(params["d"].astype(f32))

    grid = (batch_pad // bb, T_pad // tc)

    # ---- VMEM budget: double-buffered ins/outs + invariants + scratch ----
    def _nbytes(shape, dt):
        return int(np.prod(shape)) * jnp.dtype(dt).itemsize

    vmem_need = 2 * (_nbytes((tc, bb, in_pad), bf16)        # x block
                     + _nbytes((tc, bb, n_pad), bf16)       # hidden out block
                     + _nbytes((in_pad, n_pad), bf16)       # E^T
                     + _nbytes((n_pad, 2 * n_pad), bf16)    # AW
                     + 2 * _nbytes((8, n_pad), f32))        # eb, d (tile-padded)
    vmem_need += _nbytes((tc, bb, n_pad), f32) + _nbytes((bb, n_pad), f32)
    vmem_limit = int(min(max(2 * vmem_need + (4 << 20), 16 << 20), 64 << 20))

    cost = pl.CostEstimate(
        flops=int(2 * T_pad * batch_pad * n_pad * (2 * n_pad)
                  + 2 * T_pad * batch_pad * in_pad * n_pad),
        transcendentals=int(T_pad * batch_pad * n_pad),
        bytes_accessed=int(2 * x_p.size + 2 * T_pad * batch_pad * n_pad
                           + 2 * aw.size + 2 * ew.size + 4 * (eb.size + d_p.size)),
    )

    hidden_tm = pl.pallas_call(
        functools.partial(noisy_rnn_recurrence_kernel, time_chunk=tc, n_half=n_pad),
        out_shape=jax.ShapeDtypeStruct((T_pad, batch_pad, n_pad), bf16),
        grid_spec=pltpu.PrefetchScalarGridSpec(
            num_scalar_prefetch=0,
            grid=grid,
            in_specs=[
                pl.BlockSpec((tc, bb, in_pad), lambda b, t: (t, b, 0)),   # x
                pl.BlockSpec((in_pad, n_pad), lambda b, t: (0, 0)),       # E^T (invariant)
                pl.BlockSpec((1, n_pad), lambda b, t: (0, 0)),            # E_b (invariant)
                pl.BlockSpec((n_pad, 2 * n_pad), lambda b, t: (0, 0)),    # AW  (invariant)
                pl.BlockSpec((1, n_pad), lambda b, t: (0, 0)),            # d   (invariant)
            ],
            out_specs=pl.BlockSpec((tc, bb, n_pad), lambda b, t: (t, b, 0)),
            scratch_shapes=[
                pltpu.VMEM((tc, bb, n_pad), f32),   # z staging (chunked encoder)
                pltpu.VMEM((bb, n_pad), f32),       # persistent hidden state
            ],
        ),
        compiler_params=pltpu.CompilerParams(
            dimension_semantics=("parallel", "arbitrary"),   # batch ||, time seq
            vmem_limit_bytes=vmem_limit,
        ),
        cost_estimate=cost,
    )(x_p, ew, eb, aw, d_p)

    # ---- hoisted decoder GEMM: bf16 reads, f32 accumulation ----
    hidden = hidden_tm[:T, :batch, :n_units]                           # (T, batch, n) bf16
    out_tm = (jnp.einsum("tbn,on->tbo", hidden, params["D_w"].astype(bf16),
                         preferred_element_type=f32)
              + params["D_b"].astype(f32))                             # (T, batch, out) f32
    return jnp.transpose(out_tm, (1, 0, 2))                            # (batch, T, out)


def reference_forward(x, params, *, alpha=1.0, beta=0.8, gamma_A=0.01, gamma_W=0.01):
    """Pure-JAX f32 mirror of the PyTorch forward (solver='noisy', mode='test')."""
    batch, T, _ = x.shape
    n_units = params["B"].shape[0]
    B, C, I = params["B"], params["C"], jnp.eye(n_units, dtype=jnp.float32)
    A = beta * (B - B.T) + (1.0 - beta) * (B + B.T) - gamma_A * I
    W = beta * (C - C.T) + (1.0 - beta) * (C + C.T) - gamma_W * I
    h = jnp.zeros((batch, n_units), jnp.float32)
    hs = []
    for i in range(T):
        z = x[:, i, :] @ params["E_w"].T + params["E_b"]
        h_update = alpha * (h @ A) + jnp.tanh(h @ W + z)
        h = h + params["d"] * h_update
        hs.append(h)
    hidden = jnp.stack(hs, axis=1)                                     # (batch, T, n)
    return hidden @ params["D_w"].T + params["D_b"]


def init_params(key, input_dim, n_units, output_classes, init_std=1.0, eps=0.01):
    """Deterministic synthetic parameters matching the PyTorch module shapes."""
    k = jax.random.split(key, 6)
    std = init_std / n_units
    return {
        "E_w": jax.random.normal(k[0], (n_units, input_dim), jnp.float32) * 0.1,
        "E_b": jax.random.normal(k[1], (n_units,), jnp.float32) * 0.1,
        "D_w": jax.random.normal(k[2], (output_classes, n_units), jnp.float32) * 0.1,
        "D_b": jax.random.normal(k[3], (output_classes,), jnp.float32) * 0.1,
        "B": jax.random.normal(k[4], (n_units, n_units), jnp.float32) * std,
        "C": jax.random.normal(k[5], (n_units, n_units), jnp.float32) * std,
        # d = torch.rand(n_units) * 0 + eps  ->  constant eps vector
        "d": jnp.full((n_units,), eps, jnp.float32),
    }


if __name__ == "__main__":
    # Sized so the kernel exercises 2 batch blocks (bb=16) and 2 time blocks
    # (tc=32): multi-block index maps, scratch reset and megacore path.
    batch, T, input_dim = 24, 64, 16
    n_units, output_classes = 32, 10

    key = jax.random.PRNGKey(0)
    kx, kp = jax.random.split(key)
    x = jax.random.normal(kx, (batch, T, input_dim), jnp.float32)
    params = init_params(kp, input_dim, n_units, output_classes)

    out = noisy_rnn_forward(x, params)
    out = jax.block_until_ready(out)

    ref = reference_forward(x, params)
    # bf16 MXU operands / bf16 hidden writeback vs. an all-f32 reference:
    # validated at bf16-appropriate tolerance.
    np.testing.assert_allclose(np.asarray(out), np.asarray(ref), rtol=2e-2, atol=1e-2)

    print("KERNEL_OK")
</pallas_src>

<mosaic_0001>
module attributes {stable_mosaic.version = 11 : i64} {
  func.func @noisy_rnn_recurrence_kernel(%arg0: i32, %arg1: i32, %arg2: memref<32x16x128xbf16, #tpu.memory_space<vmem>>, %arg3: memref<128x128xbf16, #tpu.memory_space<vmem>>, %arg4: memref<1x128xf32, #tpu.memory_space<vmem>>, %arg5: memref<128x256xbf16, #tpu.memory_space<vmem>>, %arg6: memref<1x128xf32, #tpu.memory_space<vmem>>, %arg7: memref<32x16x128xbf16, #tpu.memory_space<vmem>>, %arg8: memref<32x16x128xf32, #tpu.memory_space<vmem>>, %arg9: memref<16x128xf32, #tpu.memory_space<vmem>>) attributes {dimension_semantics = [#tpu.dimension_semantics<parallel>, #tpu.dimension_semantics<arbitrary>], iteration_bounds = array<i64: 2, 2>, scalar_prefetch = 0 : i64, scratch_operands = 2 : i64, tpu.core_type = #tpu.core_type<tc>, window_params = [{transform_indices = @transform_0, window_bounds = array<i64: 32, 16, 128>}, {pipeline_mode = #tpu.pipeline_mode<synchronous>, transform_indices = @transform_1, window_bounds = array<i64: 128, 128>}, {pipeline_mode = #tpu.pipeline_mode<synchronous>, transform_indices = @transform_2, window_bounds = array<i64: 1, 128>}, {pipeline_mode = #tpu.pipeline_mode<synchronous>, transform_indices = @transform_3, window_bounds = array<i64: 128, 256>}, {pipeline_mode = #tpu.pipeline_mode<synchronous>, transform_indices = @transform_4, window_bounds = array<i64: 1, 128>}, {transform_indices = @transform_5, window_bounds = array<i64: 32, 16, 128>}]} {
    %c0_i32 = arith.constant 0 : i32
    %0 = arith.cmpi eq, %arg1, %c0_i32 : i32
    %1 = arith.extui %0 : i1 to i32
    %c0_i32_0 = arith.constant 0 : i32
    %2 = arith.cmpi ne, %1, %c0_i32_0 : i32
    scf.if %2 {
      %cst_179 = arith.constant 0.000000e+00 : f32
      %562 = vector.broadcast %cst_179 : f32 to vector<16x128xf32>
      %c0_180 = arith.constant 0 : index
      %c0_181 = arith.constant 0 : index
      %563 = vector.load %arg9[%c0_180, %c0_181] : memref<16x128xf32, #tpu.memory_space<vmem>>, vector<16x128xf32>
      tpu.vector_store %arg9[%c0_180, %c0_181], %562 {strides = array<i32>} : memref<16x128xf32, #tpu.memory_space<vmem>>, vector<16x128xf32>,
    } else {
    }
    %c0 = arith.constant 0 : index
    %c0_1 = arith.constant 0 : index
    %c0_2 = arith.constant 0 : index
    %3 = vector.load %arg2[%c0, %c0_1, %c0_2] : memref<32x16x128xbf16, #tpu.memory_space<vmem>>, vector<32x16x128xbf16>
    %4 = vector.shape_cast %3 : vector<32x16x128xbf16> to vector<512x128xbf16>
    %c0_3 = arith.constant 0 : index
    %c0_4 = arith.constant 0 : index
    %5 = vector.load %arg3[%c0_3, %c0_4] : memref<128x128xbf16, #tpu.memory_space<vmem>>, vector<128x128xbf16>
    %cst = arith.constant dense<0.000000e+00> : vector<512x128xf32>
    %6 = tpu.matmul %4, %5, %cst {dimension_numbers = #tpu.dot_dimension_numbers<[1], [0], [0], [1], [0, 0, 1, 1], [], []>} : vector<512x128xbf16>, vector<128x128xbf16>, vector<512x128xf32> -> vector<512x128xf32>
    %c0_5 = arith.constant 0 : index
    %c0_6 = arith.constant 0 : index
    %7 = vector.load %arg4[%c0_5, %c0_6] : memref<1x128xf32, #tpu.memory_space<vmem>>, vector<1x128xf32>
    %8 = vector.broadcast %7 : vector<1x128xf32> to vector<512x128xf32>
    %9 = arith.addf %6, %8 : vector<512x128xf32>
    %10 = vector.shape_cast %9 : vector<512x128xf32> to vector<32x16x128xf32>
    %c0_7 = arith.constant 0 : index
    %c0_8 = arith.constant 0 : index
    %c0_9 = arith.constant 0 : index
    %11 = vector.load %arg8[%c0_7, %c0_8, %c0_9] : memref<32x16x128xf32, #tpu.memory_space<vmem>>, vector<32x16x128xf32>
    tpu.vector_store %arg8[%c0_7, %c0_8, %c0_9], %10 {strides = array<i32>} : memref<32x16x128xf32, #tpu.memory_space<vmem>>, vector<32x16x128xf32>,
    %c0_10 = arith.constant 0 : index
    %c0_11 = arith.constant 0 : index
    %12 = vector.load %arg5[%c0_10, %c0_11] : memref<128x256xbf16, #tpu.memory_space<vmem>>, vector<128x256xbf16>
    %c0_12 = arith.constant 0 : index
    %c0_13 = arith.constant 0 : index
    %13 = vector.load %arg6[%c0_12, %c0_13] : memref<1x128xf32, #tpu.memory_space<vmem>>, vector<1x128xf32>
    %14 = vector.shape_cast %13 : vector<1x128xf32> to vector<1x128xf32>
    %15 = vector.broadcast %14 : vector<1x128xf32> to vector<16x128xf32>
    %c0_14 = arith.constant 0 : index
    %c0_15 = arith.constant 0 : index
    %16 = vector.load %arg9[%c0_14, %c0_15] : memref<16x128xf32, #tpu.memory_space<vmem>>, vector<16x128xf32>
    %c0_i32_16 = arith.constant 0 : i32
    %17 = arith.index_cast %c0_i32_16 : i32 to index
    %c0_17 = arith.constant 0 : index
    %c0_18 = arith.constant 0 : index
    %18 = vector.load %arg8[%17, %c0_17, %c0_18] : memref<32x16x128xf32, #tpu.memory_space<vmem>>, vector<1x16x128xf32>
    %19 = vector.shape_cast %18 : vector<1x16x128xf32> to vector<16x128xf32>
    %20 = arith.truncf %16 : vector<16x128xf32> to vector<16x128xbf16>
    %cst_19 = arith.constant dense<0.000000e+00> : vector<16x256xf32>
    %21 = tpu.matmul %20, %12, %cst_19 {dimension_numbers = #tpu.dot_dimension_numbers<[1], [0], [0], [1], [0, 0, 1, 1], [], []>} : vector<16x128xbf16>, vector<128x256xbf16>, vector<16x256xf32> -> vector<16x256xf32>
    %22 = vector.extract_strided_slice %21 {offsets = [0, 0], sizes = [16, 128], strides = [1, 1]} : vector<16x256xf32> to vector<16x128xf32>
    %23 = vector.extract_strided_slice %21 {offsets = [0, 128], sizes = [16, 128], strides = [1, 1]} : vector<16x256xf32> to vector<16x128xf32>
    %24 = arith.addf %23, %19 : vector<16x128xf32>
    %25 = math.tanh %24 : vector<16x128xf32>
    %26 = arith.addf %22, %25 : vector<16x128xf32>
    %27 = arith.mulf %15, %26 : vector<16x128xf32>
    %28 = arith.addf %16, %27 : vector<16x128xf32>
    %29 = arith.truncf %28 : vector<16x128xf32> to vector<16x128xbf16>
    %30 = arith.index_cast %c0_i32_16 : i32 to index
    %c0_20 = arith.constant 0 : index
    %c0_21 = arith.constant 0 : index
    %31 = vector.load %arg7[%30, %c0_20, %c0_21] : memref<32x16x128xbf16, #tpu.memory_space<vmem>>, vector<1x16x128xbf16>
    %32 = vector.shape_cast %31 : vector<1x16x128xbf16> to vector<16x128xbf16>
    %33 = vector.shape_cast %29 : vector<16x128xbf16> to vector<1x16x128xbf16>
    tpu.vector_store %arg7[%30, %c0_20, %c0_21], %33 {strides = array<i32>} : memref<32x16x128xbf16, #tpu.memory_space<vmem>>, vector<1x16x128xbf16>,
    %c1_i32 = arith.constant 1 : i32
    %34 = arith.index_cast %c1_i32 : i32 to index
    %c0_22 = arith.constant 0 : index
    %c0_23 = arith.constant 0 : index
    %35 = vector.load %arg8[%34, %c0_22, %c0_23] : memref<32x16x128xf32, #tpu.memory_space<vmem>>, vector<1x16x128xf32>
    %36 = vector.shape_cast %35 : vector<1x16x128xf32> to vector<16x128xf32>
    %37 = arith.truncf %28 : vector<16x128xf32> to vector<16x128xbf16>
    %cst_24 = arith.constant dense<0.000000e+00> : vector<16x256xf32>
    %38 = tpu.matmul %37, %12, %cst_24 {dimension_numbers = #tpu.dot_dimension_numbers<[1], [0], [0], [1], [0, 0, 1, 1], [], []>} : vector<16x128xbf16>, vector<128x256xbf16>, vector<16x256xf32> -> vector<16x256xf32>
    %39 = vector.extract_strided_slice %38 {offsets = [0, 0], sizes = [16, 128], strides = [1, 1]} : vector<16x256xf32> to vector<16x128xf32>
    %40 = vector.extract_strided_slice %38 {offsets = [0, 128], sizes = [16, 128], strides = [1, 1]} : vector<16x256xf32> to vector<16x128xf32>
    %41 = arith.addf %40, %36 : vector<16x128xf32>
    %42 = math.tanh %41 : vector<16x128xf32>
    %43 = arith.addf %39, %42 : vector<16x128xf32>
    %44 = arith.mulf %15, %43 : vector<16x128xf32>
    %45 = arith.addf %28, %44 : vector<16x128xf32>
    %46 = arith.truncf %45 : vector<16x128xf32> to vector<16x128xbf16>
    %47 = arith.index_cast %c1_i32 : i32 to index
    %c0_25 = arith.constant 0 : index
    %c0_26 = arith.constant 0 : index
    %48 = vector.load %arg7[%47, %c0_25, %c0_26] : memref<32x16x128xbf16, #tpu.memory_space<vmem>>, vector<1x16x128xbf16>
    %49 = vector.shape_cast %48 : vector<1x16x128xbf16> to vector<16x128xbf16>
    %50 = vector.shape_cast %46 : vector<16x128xbf16> to vector<1x16x128xbf16>
    tpu.vector_store %arg7[%47, %c0_25, %c0_26], %50 {strides = array<i32>} : memref<32x16x128xbf16, #tpu.memory_space<vmem>>, vector<1x16x128xbf16>,
    %c2_i32 = arith.constant 2 : i32
    %51 = arith.index_cast %c2_i32 : i32 to index
    %c0_27 = arith.constant 0 : index
    %c0_28 = arith.constant 0 : index
    %52 = vector.load %arg8[%51, %c0_27, %c0_28] : memref<32x16x128xf32, #tpu.memory_space<vmem>>, vector<1x16x128xf32>
    %53 = vector.shape_cast %52 : vector<1x16x128xf32> to vector<16x128xf32>
    %54 = arith.truncf %45 : vector<16x128xf32> to vector<16x128xbf16>
    %cst_29 = arith.constant dense<0.000000e+00> : vector<16x256xf32>
    %55 = tpu.matmul %54, %12, %cst_29 {dimension_numbers = #tpu.dot_dimension_numbers<[1], [0], [0], [1], [0, 0, 1, 1], [], []>} : vector<16x128xbf16>, vector<128x256xbf16>, vector<16x256xf32> -> vector<16x256xf32>
    %56 = vector.extract_strided_slice %55 {offsets = [0, 0], sizes = [16, 128], strides = [1, 1]} : vector<16x256xf32> to vector<16x128xf32>
    %57 = vector.extract_strided_slice %55 {offsets = [0, 128], sizes = [16, 128], strides = [1, 1]} : vector<16x256xf32> to vector<16x128xf32>
    %58 = arith.addf %57, %53 : vector<16x128xf32>
    %59 = math.tanh %58 : vector<16x128xf32>
    %60 = arith.addf %56, %59 : vector<16x128xf32>
    %61 = arith.mulf %15, %60 : vector<16x128xf32>
    %62 = arith.addf %45, %61 : vector<16x128xf32>
    %63 = arith.truncf %62 : vector<16x128xf32> to vector<16x128xbf16>
    %64 = arith.index_cast %c2_i32 : i32 to index
    %c0_30 = arith.constant 0 : index
    %c0_31 = arith.constant 0 : index
    %65 = vector.load %arg7[%64, %c0_30, %c0_31] : memref<32x16x128xbf16, #tpu.memory_space<vmem>>, vector<1x16x128xbf16>
    %66 = vector.shape_cast %65 : vector<1x16x128xbf16> to vector<16x128xbf16>
    %67 = vector.shape_cast %63 : vector<16x128xbf16> to vector<1x16x128xbf16>
    tpu.vector_store %arg7[%64, %c0_30, %c0_31], %67 {strides = array<i32>} : memref<32x16x128xbf16, #tpu.memory_space<vmem>>, vector<1x16x128xbf16>,
    %c3_i32 = arith.constant 3 : i32
    %68 = arith.index_cast %c3_i32 : i32 to index
    %c0_32 = arith.constant 0 : index
    %c0_33 = arith.constant 0 : index
    %69 = vector.load %arg8[%68, %c0_32, %c0_33] : memref<32x16x128xf32, #tpu.memory_space<vmem>>, vector<1x16x128xf32>
    %70 = vector.shape_cast %69 : vector<1x16x128xf32> to vector<16x128xf32>
    %71 = arith.truncf %62 : vector<16x128xf32> to vector<16x128xbf16>
    %cst_34 = arith.constant dense<0.000000e+00> : vector<16x256xf32>
    %72 = tpu.matmul %71, %12, %cst_34 {dimension_numbers = #tpu.dot_dimension_numbers<[1], [0], [0], [1], [0, 0, 1, 1], [], []>} : vector<16x128xbf16>, vector<128x256xbf16>, vector<16x256xf32> -> vector<16x256xf32>
    %73 = vector.extract_strided_slice %72 {offsets = [0, 0], sizes = [16, 128], strides = [1, 1]} : vector<16x256xf32> to vector<16x128xf32>
    %74 = vector.extract_strided_slice %72 {offsets = [0, 128], sizes = [16, 128], strides = [1, 1]} : vector<16x256xf32> to vector<16x128xf32>
    %75 = arith.addf %74, %70 : vector<16x128xf32>
    %76 = math.tanh %75 : vector<16x128xf32>
    %77 = arith.addf %73, %76 : vector<16x128xf32>
    %78 = arith.mulf %15, %77 : vector<16x128xf32>
    %79 = arith.addf %62, %78 : vector<16x128xf32>
    %80 = arith.truncf %79 : vector<16x128xf32> to vector<16x128xbf16>
    %81 = arith.index_cast %c3_i32 : i32 to index
    %c0_35 = arith.constant 0 : index
    %c0_36 = arith.constant 0 : index
    %82 = vector.load %arg7[%81, %c0_35, %c0_36] : memref<32x16x128xbf16, #tpu.memory_space<vmem>>, vector<1x16x128xbf16>
    %83 = vector.shape_cast %82 : vector<1x16x128xbf16> to vector<16x128xbf16>
    %84 = vector.shape_cast %80 : vector<16x128xbf16> to vector<1x16x128xbf16>
    tpu.vector_store %arg7[%81, %c0_35, %c0_36], %84 {strides = array<i32>} : memref<32x16x128xbf16, #tpu.memory_space<vmem>>, vector<1x16x128xbf16>,
    %c4_i32 = arith.constant 4 : i32
    %85 = arith.index_cast %c4_i32 : i32 to index
    %c0_37 = arith.constant 0 : index
    %c0_38 = arith.constant 0 : index
    %86 = vector.load %arg8[%85, %c0_37, %c0_38] : memref<32x16x128xf32, #tpu.memory_space<vmem>>, vector<1x16x128xf32>
    %87 = vector.shape_cast %86 : vector<1x16x128xf32> to vector<16x128xf32>
    %88 = arith.truncf %79 : vector<16x128xf32> to vector<16x128xbf16>
    %cst_39 = arith.constant dense<0.000000e+00> : vector<16x256xf32>
    %89 = tpu.matmul %88, %12, %cst_39 {dimension_numbers = #tpu.dot_dimension_numbers<[1], [0], [0], [1], [0, 0, 1, 1], [], []>} : vector<16x128xbf16>, vector<128x256xbf16>, vector<16x256xf32> -> vector<16x256xf32>
    %90 = vector.extract_strided_slice %89 {offsets = [0, 0], sizes = [16, 128], strides = [1, 1]} : vector<16x256xf32> to vector<16x128xf32>
    %91 = vector.extract_strided_slice %89 {offsets = [0, 128], sizes = [16, 128], strides = [1, 1]} : vector<16x256xf32> to vector<16x128xf32>
    %92 = arith.addf %91, %87 : vector<16x128xf32>
    %93 = math.tanh %92 : vector<16x128xf32>
    %94 = arith.addf %90, %93 : vector<16x128xf32>
    %95 = arith.mulf %15, %94 : vector<16x128xf32>
    %96 = arith.addf %79, %95 : vector<16x128xf32>
    %97 = arith.truncf %96 : vector<16x128xf32> to vector<16x128xbf16>
    %98 = arith.index_cast %c4_i32 : i32 to index
    %c0_40 = arith.constant 0 : index
    %c0_41 = arith.constant 0 : index
    %99 = vector.load %arg7[%98, %c0_40, %c0_41] : memref<32x16x128xbf16, #tpu.memory_space<vmem>>, vector<1x16x128xbf16>
    %100 = vector.shape_cast %99 : vector<1x16x128xbf16> to vector<16x128xbf16>
    %101 = vector.shape_cast %97 : vector<16x128xbf16> to vector<1x16x128xbf16>
    tpu.vector_store %arg7[%98, %c0_40, %c0_41], %101 {strides = array<i32>} : memref<32x16x128xbf16, #tpu.memory_space<vmem>>, vector<1x16x128xbf16>,
    %c5_i32 = arith.constant 5 : i32
    %102 = arith.index_cast %c5_i32 : i32 to index
    %c0_42 = arith.constant 0 : index
    %c0_43 = arith.constant 0 : index
    %103 = vector.load %arg8[%102, %c0_42, %c0_43] : memref<32x16x128xf32, #tpu.memory_space<vmem>>, vector<1x16x128xf32>
    %104 = vector.shape_cast %103 : vector<1x16x128xf32> to vector<16x128xf32>
    %105 = arith.truncf %96 : vector<16x128xf32> to vector<16x128xbf16>
    %cst_44 = arith.constant dense<0.000000e+00> : vector<16x256xf32>
    %106 = tpu.matmul %105, %12, %cst_44 {dimension_numbers = #tpu.dot_dimension_numbers<[1], [0], [0], [1], [0, 0, 1, 1], [], []>} : vector<16x128xbf16>, vector<128x256xbf16>, vector<16x256xf32> -> vector<16x256xf32>
    %107 = vector.extract_strided_slice %106 {offsets = [0, 0], sizes = [16, 128], strides = [1, 1]} : vector<16x256xf32> to vector<16x128xf32>
    %108 = vector.extract_strided_slice %106 {offsets = [0, 128], sizes = [16, 128], strides = [1, 1]} : vector<16x256xf32> to vector<16x128xf32>
    %109 = arith.addf %108, %104 : vector<16x128xf32>
    %110 = math.tanh %109 : vector<16x128xf32>
    %111 = arith.addf %107, %110 : vector<16x128xf32>
    %112 = arith.mulf %15, %111 : vector<16x128xf32>
    %113 = arith.addf %96, %112 : vector<16x128xf32>
    %114 = arith.truncf %113 : vector<16x128xf32> to vector<16x128xbf16>
    %115 = arith.index_cast %c5_i32 : i32 to index
    %c0_45 = arith.constant 0 : index
    %c0_46 = arith.constant 0 : index
    %116 = vector.load %arg7[%115, %c0_45, %c0_46] : memref<32x16x128xbf16, #tpu.memory_space<vmem>>, vector<1x16x128xbf16>
    %117 = vector.shape_cast %116 : vector<1x16x128xbf16> to vector<16x128xbf16>
    %118 = vector.shape_cast %114 : vector<16x128xbf16> to vector<1x16x128xbf16>
    tpu.vector_store %arg7[%115, %c0_45, %c0_46], %118 {strides = array<i32>} : memref<32x16x128xbf16, #tpu.memory_space<vmem>>, vector<1x16x128xbf16>,
    %c6_i32 = arith.constant 6 : i32
    %119 = arith.index_cast %c6_i32 : i32 to index
    %c0_47 = arith.constant 0 : index
    %c0_48 = arith.constant 0 : index
    %120 = vector.load %arg8[%119, %c0_47, %c0_48] : memref<32x16x128xf32, #tpu.memory_space<vmem>>, vector<1x16x128xf32>
    %121 = vector.shape_cast %120 : vector<1x16x128xf32> to vector<16x128xf32>
    %122 = arith.truncf %113 : vector<16x128xf32> to vector<16x128xbf16>
    %cst_49 = arith.constant dense<0.000000e+00> : vector<16x256xf32>
    %123 = tpu.matmul %122, %12, %cst_49 {dimension_numbers = #tpu.dot_dimension_numbers<[1], [0], [0], [1], [0, 0, 1, 1], [], []>} : vector<16x128xbf16>, vector<128x256xbf16>, vector<16x256xf32> -> vector<16x256xf32>
    %124 = vector.extract_strided_slice %123 {offsets = [0, 0], sizes = [16, 128], strides = [1, 1]} : vector<16x256xf32> to vector<16x128xf32>
    %125 = vector.extract_strided_slice %123 {offsets = [0, 128], sizes = [16, 128], strides = [1, 1]} : vector<16x256xf32> to vector<16x128xf32>
    %126 = arith.addf %125, %121 : vector<16x128xf32>
    %127 = math.tanh %126 : vector<16x128xf32>
    %128 = arith.addf %124, %127 : vector<16x128xf32>
    %129 = arith.mulf %15, %128 : vector<16x128xf32>
    %130 = arith.addf %113, %129 : vector<16x128xf32>
    %131 = arith.truncf %130 : vector<16x128xf32> to vector<16x128xbf16>
    %132 = arith.index_cast %c6_i32 : i32 to index
    %c0_50 = arith.constant 0 : index
    %c0_51 = arith.constant 0 : index
    %133 = vector.load %arg7[%132, %c0_50, %c0_51] : memref<32x16x128xbf16, #tpu.memory_space<vmem>>, vector<1x16x128xbf16>
    %134 = vector.shape_cast %133 : vector<1x16x128xbf16> to vector<16x128xbf16>
    %135 = vector.shape_cast %131 : vector<16x128xbf16> to vector<1x16x128xbf16>
    tpu.vector_store %arg7[%132, %c0_50, %c0_51], %135 {strides = array<i32>} : memref<32x16x128xbf16, #tpu.memory_space<vmem>>, vector<1x16x128xbf16>,
    %c7_i32 = arith.constant 7 : i32
    %136 = arith.index_cast %c7_i32 : i32 to index
    %c0_52 = arith.constant 0 : index
    %c0_53 = arith.constant 0 : index
    %137 = vector.load %arg8[%136, %c0_52, %c0_53] : memref<32x16x128xf32, #tpu.memory_space<vmem>>, vector<1x16x128xf32>
    %138 = vector.shape_cast %137 : vector<1x16x128xf32> to vector<16x128xf32>
    %139 = arith.truncf %130 : vector<16x128xf32> to vector<16x128xbf16>
    %cst_54 = arith.constant dense<0.000000e+00> : vector<16x256xf32>
    %140 = tpu.matmul %139, %12, %cst_54 {dimension_numbers = #tpu.dot_dimension_numbers<[1], [0], [0], [1], [0, 0, 1, 1], [], []>} : vector<16x128xbf16>, vector<128x256xbf16>, vector<16x256xf32> -> vector<16x256xf32>
    %141 = vector.extract_strided_slice %140 {offsets = [0, 0], sizes = [16, 128], strides = [1, 1]} : vector<16x256xf32> to vector<16x128xf32>
    %142 = vector.extract_strided_slice %140 {offsets = [0, 128], sizes = [16, 128], strides = [1, 1]} : vector<16x256xf32> to vector<16x128xf32>
    %143 = arith.addf %142, %138 : vector<16x128xf32>
    %144 = math.tanh %143 : vector<16x128xf32>
    %145 = arith.addf %141, %144 : vector<16x128xf32>
    %146 = arith.mulf %15, %145 : vector<16x128xf32>
    %147 = arith.addf %130, %146 : vector<16x128xf32>
    %148 = arith.truncf %147 : vector<16x128xf32> to vector<16x128xbf16>
    %149 = arith.index_cast %c7_i32 : i32 to index
    %c0_55 = arith.constant 0 : index
    %c0_56 = arith.constant 0 : index
    %150 = vector.load %arg7[%149, %c0_55, %c0_56] : memref<32x16x128xbf16, #tpu.memory_space<vmem>>, vector<1x16x128xbf16>
    %151 = vector.shape_cast %150 : vector<1x16x128xbf16> to vector<16x128xbf16>
    %152 = vector.shape_cast %148 : vector<16x128xbf16> to vector<1x16x128xbf16>
    tpu.vector_store %arg7[%149, %c0_55, %c0_56], %152 {strides = array<i32>} : memref<32x16x128xbf16, #tpu.memory_space<vmem>>, vector<1x16x128xbf16>,
    %c8_i32 = arith.constant 8 : i32
    %153 = arith.index_cast %c8_i32 : i32 to index
    %c0_57 = arith.constant 0 : index
    %c0_58 = arith.constant 0 : index
    %154 = vector.load %arg8[%153, %c0_57, %c0_58] : memref<32x16x128xf32, #tpu.memory_space<vmem>>, vector<1x16x128xf32>
    %155 = vector.shape_cast %154 : vector<1x16x128xf32> to vector<16x128xf32>
    %156 = arith.truncf %147 : vector<16x128xf32> to vector<16x128xbf16>
    %cst_59 = arith.constant dense<0.000000e+00> : vector<16x256xf32>
    %157 = tpu.matmul %156, %12, %cst_59 {dimension_numbers = #tpu.dot_dimension_numbers<[1], [0], [0], [1], [0, 0, 1, 1], [], []>} : vector<16x128xbf16>, vector<128x256xbf16>, vector<16x256xf32> -> vector<16x256xf32>
    %158 = vector.extract_strided_slice %157 {offsets = [0, 0], sizes = [16, 128], strides = [1, 1]} : vector<16x256xf32> to vector<16x128xf32>
    %159 = vector.extract_strided_slice %157 {offsets = [0, 128], sizes = [16, 128], strides = [1, 1]} : vector<16x256xf32> to vector<16x128xf32>
    %160 = arith.addf %159, %155 : vector<16x128xf32>
    %161 = math.tanh %160 : vector<16x128xf32>
    %162 = arith.addf %158, %161 : vector<16x128xf32>
    %163 = arith.mulf %15, %162 : vector<16x128xf32>
    %164 = arith.addf %147, %163 : vector<16x128xf32>
    %165 = arith.truncf %164 : vector<16x128xf32> to vector<16x128xbf16>
    %166 = arith.index_cast %c8_i32 : i32 to index
    %c0_60 = arith.constant 0 : index
    %c0_61 = arith.constant 0 : index
    %167 = vector.load %arg7[%166, %c0_60, %c0_61] : memref<32x16x128xbf16, #tpu.memory_space<vmem>>, vector<1x16x128xbf16>
    %168 = vector.shape_cast %167 : vector<1x16x128xbf16> to vector<16x128xbf16>
    %169 = vector.shape_cast %165 : vector<16x128xbf16> to vector<1x16x128xbf16>
    tpu.vector_store %arg7[%166, %c0_60, %c0_61], %169 {strides = array<i32>} : memref<32x16x128xbf16, #tpu.memory_space<vmem>>, vector<1x16x128xbf16>,
    %c9_i32 = arith.constant 9 : i32
    %170 = arith.index_cast %c9_i32 : i32 to index
    %c0_62 = arith.constant 0 : index
    %c0_63 = arith.constant 0 : index
    %171 = vector.load %arg8[%170, %c0_62, %c0_63] : memref<32x16x128xf32, #tpu.memory_space<vmem>>, vector<1x16x128xf32>
    %172 = vector.shape_cast %171 : vector<1x16x128xf32> to vector<16x128xf32>
    %173 = arith.truncf %164 : vector<16x128xf32> to vector<16x128xbf16>
    %cst_64 = arith.constant dense<0.000000e+00> : vector<16x256xf32>
    %174 = tpu.matmul %173, %12, %cst_64 {dimension_numbers = #tpu.dot_dimension_numbers<[1], [0], [0], [1], [0, 0, 1, 1], [], []>} : vector<16x128xbf16>, vector<128x256xbf16>, vector<16x256xf32> -> vector<16x256xf32>
    %175 = vector.extract_strided_slice %174 {offsets = [0, 0], sizes = [16, 128], strides = [1, 1]} : vector<16x256xf32> to vector<16x128xf32>
    %176 = vector.extract_strided_slice %174 {offsets = [0, 128], sizes = [16, 128], strides = [1, 1]} : vector<16x256xf32> to vector<16x128xf32>
    %177 = arith.addf %176, %172 : vector<16x128xf32>
    %178 = math.tanh %177 : vector<16x128xf32>
    %179 = arith.addf %175, %178 : vector<16x128xf32>
    %180 = arith.mulf %15, %179 : vector<16x128xf32>
    %181 = arith.addf %164, %180 : vector<16x128xf32>
    %182 = arith.truncf %181 : vector<16x128xf32> to vector<16x128xbf16>
    %183 = arith.index_cast %c9_i32 : i32 to index
    %c0_65 = arith.constant 0 : index
    %c0_66 = arith.constant 0 : index
    %184 = vector.load %arg7[%183, %c0_65, %c0_66] : memref<32x16x128xbf16, #tpu.memory_space<vmem>>, vector<1x16x128xbf16>
    %185 = vector.shape_cast %184 : vector<1x16x128xbf16> to vector<16x128xbf16>
    %186 = vector.shape_cast %182 : vector<16x128xbf16> to vector<1x16x128xbf16>
    tpu.vector_store %arg7[%183, %c0_65, %c0_66], %186 {strides = array<i32>} : memref<32x16x128xbf16, #tpu.memory_space<vmem>>, vector<1x16x128xbf16>,
    %c10_i32 = arith.constant 10 : i32
    %187 = arith.index_cast %c10_i32 : i32 to index
    %c0_67 = arith.constant 0 : index
    %c0_68 = arith.constant 0 : index
    %188 = vector.load %arg8[%187, %c0_67, %c0_68] : memref<32x16x128xf32, #tpu.memory_space<vmem>>, vector<1x16x128xf32>
    %189 = vector.shape_cast %188 : vector<1x16x128xf32> to vector<16x128xf32>
    %190 = arith.truncf %181 : vector<16x128xf32> to vector<16x128xbf16>
    %cst_69 = arith.constant dense<0.000000e+00> : vector<16x256xf32>
    %191 = tpu.matmul %190, %12, %cst_69 {dimension_numbers = #tpu.dot_dimension_numbers<[1], [0], [0], [1], [0, 0, 1, 1], [], []>} : vector<16x128xbf16>, vector<128x256xbf16>, vector<16x256xf32> -> vector<16x256xf32>
    %192 = vector.extract_strided_slice %191 {offsets = [0, 0], sizes = [16, 128], strides = [1, 1]} : vector<16x256xf32> to vector<16x128xf32>
    %193 = vector.extract_strided_slice %191 {offsets = [0, 128], sizes = [16, 128], strides = [1, 1]} : vector<16x256xf32> to vector<16x128xf32>
    %194 = arith.addf %193, %189 : vector<16x128xf32>
    %195 = math.tanh %194 : vector<16x128xf32>
    %196 = arith.addf %192, %195 : vector<16x128xf32>
    %197 = arith.mulf %15, %196 : vector<16x128xf32>
    %198 = arith.addf %181, %197 : vector<16x128xf32>
    %199 = arith.truncf %198 : vector<16x128xf32> to vector<16x128xbf16>
    %200 = arith.index_cast %c10_i32 : i32 to index
    %c0_70 = arith.constant 0 : index
    %c0_71 = arith.constant 0 : index
    %201 = vector.load %arg7[%200, %c0_70, %c0_71] : memref<32x16x128xbf16, #tpu.memory_space<vmem>>, vector<1x16x128xbf16>
    %202 = vector.shape_cast %201 : vector<1x16x128xbf16> to vector<16x128xbf16>
    %203 = vector.shape_cast %199 : vector<16x128xbf16> to vector<1x16x128xbf16>
    tpu.vector_store %arg7[%200, %c0_70, %c0_71], %203 {strides = array<i32>} : memref<32x16x128xbf16, #tpu.memory_space<vmem>>, vector<1x16x128xbf16>,
    %c11_i32 = arith.constant 11 : i32
    %204 = arith.index_cast %c11_i32 : i32 to index
    %c0_72 = arith.constant 0 : index
    %c0_73 = arith.constant 0 : index
    %205 = vector.load %arg8[%204, %c0_72, %c0_73] : memref<32x16x128xf32, #tpu.memory_space<vmem>>, vector<1x16x128xf32>
    %206 = vector.shape_cast %205 : vector<1x16x128xf32> to vector<16x128xf32>
    %207 = arith.truncf %198 : vector<16x128xf32> to vector<16x128xbf16>
    %cst_74 = arith.constant dense<0.000000e+00> : vector<16x256xf32>
    %208 = tpu.matmul %207, %12, %cst_74 {dimension_numbers = #tpu.dot_dimension_numbers<[1], [0], [0], [1], [0, 0, 1, 1], [], []>} : vector<16x128xbf16>, vector<128x256xbf16>, vector<16x256xf32> -> vector<16x256xf32>
    %209 = vector.extract_strided_slice %208 {offsets = [0, 0], sizes = [16, 128], strides = [1, 1]} : vector<16x256xf32> to vector<16x128xf32>
    %210 = vector.extract_strided_slice %208 {offsets = [0, 128], sizes = [16, 128], strides = [1, 1]} : vector<16x256xf32> to vector<16x128xf32>
    %211 = arith.addf %210, %206 : vector<16x128xf32>
    %212 = math.tanh %211 : vector<16x128xf32>
    %213 = arith.addf %209, %212 : vector<16x128xf32>
    %214 = arith.mulf %15, %213 : vector<16x128xf32>
    %215 = arith.addf %198, %214 : vector<16x128xf32>
    %216 = arith.truncf %215 : vector<16x128xf32> to vector<16x128xbf16>
    %217 = arith.index_cast %c11_i32 : i32 to index
    %c0_75 = arith.constant 0 : index
    %c0_76 = arith.constant 0 : index
    %218 = vector.load %arg7[%217, %c0_75, %c0_76] : memref<32x16x128xbf16, #tpu.memory_space<vmem>>, vector<1x16x128xbf16>
    %219 = vector.shape_cast %218 : vector<1x16x128xbf16> to vector<16x128xbf16>
    %220 = vector.shape_cast %216 : vector<16x128xbf16> to vector<1x16x128xbf16>
    tpu.vector_store %arg7[%217, %c0_75, %c0_76], %220 {strides = array<i32>} : memref<32x16x128xbf16, #tpu.memory_space<vmem>>, vector<1x16x128xbf16>,
    %c12_i32 = arith.constant 12 : i32
    %221 = arith.index_cast %c12_i32 : i32 to index
    %c0_77 = arith.constant 0 : index
    %c0_78 = arith.constant 0 : index
    %222 = vector.load %arg8[%221, %c0_77, %c0_78] : memref<32x16x128xf32, #tpu.memory_space<vmem>>, vector<1x16x128xf32>
    %223 = vector.shape_cast %222 : vector<1x16x128xf32> to vector<16x128xf32>
    %224 = arith.truncf %215 : vector<16x128xf32> to vector<16x128xbf16>
    %cst_79 = arith.constant dense<0.000000e+00> : vector<16x256xf32>
    %225 = tpu.matmul %224, %12, %cst_79 {dimension_numbers = #tpu.dot_dimension_numbers<[1], [0], [0], [1], [0, 0, 1, 1], [], []>} : vector<16x128xbf16>, vector<128x256xbf16>, vector<16x256xf32> -> vector<16x256xf32>
    %226 = vector.extract_strided_slice %225 {offsets = [0, 0], sizes = [16, 128], strides = [1, 1]} : vector<16x256xf32> to vector<16x128xf32>
    %227 = vector.extract_strided_slice %225 {offsets = [0, 128], sizes = [16, 128], strides = [1, 1]} : vector<16x256xf32> to vector<16x128xf32>
    %228 = arith.addf %227, %223 : vector<16x128xf32>
    %229 = math.tanh %228 : vector<16x128xf32>
    %230 = arith.addf %226, %229 : vector<16x128xf32>
    %231 = arith.mulf %15, %230 : vector<16x128xf32>
    %232 = arith.addf %215, %231 : vector<16x128xf32>
    %233 = arith.truncf %232 : vector<16x128xf32> to vector<16x128xbf16>
    %234 = arith.index_cast %c12_i32 : i32 to index
    %c0_80 = arith.constant 0 : index
    %c0_81 = arith.constant 0 : index
    %235 = vector.load %arg7[%234, %c0_80, %c0_81] : memref<32x16x128xbf16, #tpu.memory_space<vmem>>, vector<1x16x128xbf16>
    %236 = vector.shape_cast %235 : vector<1x16x128xbf16> to vector<16x128xbf16>
    %237 = vector.shape_cast %233 : vector<16x128xbf16> to vector<1x16x128xbf16>
    tpu.vector_store %arg7[%234, %c0_80, %c0_81], %237 {strides = array<i32>} : memref<32x16x128xbf16, #tpu.memory_space<vmem>>, vector<1x16x128xbf16>,
    %c13_i32 = arith.constant 13 : i32
    %238 = arith.index_cast %c13_i32 : i32 to index
    %c0_82 = arith.constant 0 : index
    %c0_83 = arith.constant 0 : index
    %239 = vector.load %arg8[%238, %c0_82, %c0_83] : memref<32x16x128xf32, #tpu.memory_space<vmem>>, vector<1x16x128xf32>
    %240 = vector.shape_cast %239 : vector<1x16x128xf32> to vector<16x128xf32>
    %241 = arith.truncf %232 : vector<16x128xf32> to vector<16x128xbf16>
    %cst_84 = arith.constant dense<0.000000e+00> : vector<16x256xf32>
    %242 = tpu.matmul %241, %12, %cst_84 {dimension_numbers = #tpu.dot_dimension_numbers<[1], [0], [0], [1], [0, 0, 1, 1], [], []>} : vector<16x128xbf16>, vector<128x256xbf16>, vector<16x256xf32> -> vector<16x256xf32>
    %243 = vector.extract_strided_slice %242 {offsets = [0, 0], sizes = [16, 128], strides = [1, 1]} : vector<16x256xf32> to vector<16x128xf32>
    %244 = vector.extract_strided_slice %242 {offsets = [0, 128], sizes = [16, 128], strides = [1, 1]} : vector<16x256xf32> to vector<16x128xf32>
    %245 = arith.addf %244, %240 : vector<16x128xf32>
    %246 = math.tanh %245 : vector<16x128xf32>
    %247 = arith.addf %243, %246 : vector<16x128xf32>
    %248 = arith.mulf %15, %247 : vector<16x128xf32>
    %249 = arith.addf %232, %248 : vector<16x128xf32>
    %250 = arith.truncf %249 : vector<16x128xf32> to vector<16x128xbf16>
    %251 = arith.index_cast %c13_i32 : i32 to index
    %c0_85 = arith.constant 0 : index
    %c0_86 = arith.constant 0 : index
    %252 = vector.load %arg7[%251, %c0_85, %c0_86] : memref<32x16x128xbf16, #tpu.memory_space<vmem>>, vector<1x16x128xbf16>
    %253 = vector.shape_cast %252 : vector<1x16x128xbf16> to vector<16x128xbf16>
    %254 = vector.shape_cast %250 : vector<16x128xbf16> to vector<1x16x128xbf16>
    tpu.vector_store %arg7[%251, %c0_85, %c0_86], %254 {strides = array<i32>} : memref<32x16x128xbf16, #tpu.memory_space<vmem>>, vector<1x16x128xbf16>,
    %c14_i32 = arith.constant 14 : i32
    %255 = arith.index_cast %c14_i32 : i32 to index
    %c0_87 = arith.constant 0 : index
    %c0_88 = arith.constant 0 : index
    %256 = vector.load %arg8[%255, %c0_87, %c0_88] : memref<32x16x128xf32, #tpu.memory_space<vmem>>, vector<1x16x128xf32>
    %257 = vector.shape_cast %256 : vector<1x16x128xf32> to vector<16x128xf32>
    %258 = arith.truncf %249 : vector<16x128xf32> to vector<16x128xbf16>
    %cst_89 = arith.constant dense<0.000000e+00> : vector<16x256xf32>
    %259 = tpu.matmul %258, %12, %cst_89 {dimension_numbers = #tpu.dot_dimension_numbers<[1], [0], [0], [1], [0, 0, 1, 1], [], []>} : vector<16x128xbf16>, vector<128x256xbf16>, vector<16x256xf32> -> vector<16x256xf32>
    %260 = vector.extract_strided_slice %259 {offsets = [0, 0], sizes = [16, 128], strides = [1, 1]} : vector<16x256xf32> to vector<16x128xf32>
    %261 = vector.extract_strided_slice %259 {offsets = [0, 128], sizes = [16, 128], strides = [1, 1]} : vector<16x256xf32> to vector<16x128xf32>
    %262 = arith.addf %261, %257 : vector<16x128xf32>
    %263 = math.tanh %262 : vector<16x128xf32>
    %264 = arith.addf %260, %263 : vector<16x128xf32>
    %265 = arith.mulf %15, %264 : vector<16x128xf32>
    %266 = arith.addf %249, %265 : vector<16x128xf32>
    %267 = arith.truncf %266 : vector<16x128xf32> to vector<16x128xbf16>
    %268 = arith.index_cast %c14_i32 : i32 to index
    %c0_90 = arith.constant 0 : index
    %c0_91 = arith.constant 0 : index
    %269 = vector.load %arg7[%268, %c0_90, %c0_91] : memref<32x16x128xbf16, #tpu.memory_space<vmem>>, vector<1x16x128xbf16>
    %270 = vector.shape_cast %269 : vector<1x16x128xbf16> to vector<16x128xbf16>
    %271 = vector.shape_cast %267 : vector<16x128xbf16> to vector<1x16x128xbf16>
    tpu.vector_store %arg7[%268, %c0_90, %c0_91], %271 {strides = array<i32>} : memref<32x16x128xbf16, #tpu.memory_space<vmem>>, vector<1x16x128xbf16>,
    %c15_i32 = arith.constant 15 : i32
    %272 = arith.index_cast %c15_i32 : i32 to index
    %c0_92 = arith.constant 0 : index
    %c0_93 = arith.constant 0 : index
    %273 = vector.load %arg8[%272, %c0_92, %c0_93] : memref<32x16x128xf32, #tpu.memory_space<vmem>>, vector<1x16x128xf32>
    %274 = vector.shape_cast %273 : vector<1x16x128xf32> to vector<16x128xf32>
    %275 = arith.truncf %266 : vector<16x128xf32> to vector<16x128xbf16>
    %cst_94 = arith.constant dense<0.000000e+00> : vector<16x256xf32>
    %276 = tpu.matmul %275, %12, %cst_94 {dimension_numbers = #tpu.dot_dimension_numbers<[1], [0], [0], [1], [0, 0, 1, 1], [], []>} : vector<16x128xbf16>, vector<128x256xbf16>, vector<16x256xf32> -> vector<16x256xf32>
    %277 = vector.extract_strided_slice %276 {offsets = [0, 0], sizes = [16, 128], strides = [1, 1]} : vector<16x256xf32> to vector<16x128xf32>
    %278 = vector.extract_strided_slice %276 {offsets = [0, 128], sizes = [16, 128], strides = [1, 1]} : vector<16x256xf32> to vector<16x128xf32>
    %279 = arith.addf %278, %274 : vector<16x128xf32>
    %280 = math.tanh %279 : vector<16x128xf32>
    %281 = arith.addf %277, %280 : vector<16x128xf32>
    %282 = arith.mulf %15, %281 : vector<16x128xf32>
    %283 = arith.addf %266, %282 : vector<16x128xf32>
    %284 = arith.truncf %283 : vector<16x128xf32> to vector<16x128xbf16>
    %285 = arith.index_cast %c15_i32 : i32 to index
    %c0_95 = arith.constant 0 : index
    %c0_96 = arith.constant 0 : index
    %286 = vector.load %arg7[%285, %c0_95, %c0_96] : memref<32x16x128xbf16, #tpu.memory_space<vmem>>, vector<1x16x128xbf16>
    %287 = vector.shape_cast %286 : vector<1x16x128xbf16> to vector<16x128xbf16>
    %288 = vector.shape_cast %284 : vector<16x128xbf16> to vector<1x16x128xbf16>
    tpu.vector_store %arg7[%285, %c0_95, %c0_96], %288 {strides = array<i32>} : memref<32x16x128xbf16, #tpu.memory_space<vmem>>, vector<1x16x128xbf16>,
    %c16_i32 = arith.constant 16 : i32
    %289 = arith.index_cast %c16_i32 : i32 to index
    %c0_97 = arith.constant 0 : index
    %c0_98 = arith.constant 0 : index
    %290 = vector.load %arg8[%289, %c0_97, %c0_98] : memref<32x16x128xf32, #tpu.memory_space<vmem>>, vector<1x16x128xf32>
    %291 = vector.shape_cast %290 : vector<1x16x128xf32> to vector<16x128xf32>
    %292 = arith.truncf %283 : vector<16x128xf32> to vector<16x128xbf16>
    %cst_99 = arith.constant dense<0.000000e+00> : vector<16x256xf32>
    %293 = tpu.matmul %292, %12, %cst_99 {dimension_numbers = #tpu.dot_dimension_numbers<[1], [0], [0], [1], [0, 0, 1, 1], [], []>} : vector<16x128xbf16>, vector<128x256xbf16>, vector<16x256xf32> -> vector<16x256xf32>
    %294 = vector.extract_strided_slice %293 {offsets = [0, 0], sizes = [16, 128], strides = [1, 1]} : vector<16x256xf32> to vector<16x128xf32>
    %295 = vector.extract_strided_slice %293 {offsets = [0, 128], sizes = [16, 128], strides = [1, 1]} : vector<16x256xf32> to vector<16x128xf32>
    %296 = arith.addf %295, %291 : vector<16x128xf32>
    %297 = math.tanh %296 : vector<16x128xf32>
    %298 = arith.addf %294, %297 : vector<16x128xf32>
    %299 = arith.mulf %15, %298 : vector<16x128xf32>
    %300 = arith.addf %283, %299 : vector<16x128xf32>
    %301 = arith.truncf %300 : vector<16x128xf32> to vector<16x128xbf16>
    %302 = arith.index_cast %c16_i32 : i32 to index
    %c0_100 = arith.constant 0 : index
    %c0_101 = arith.constant 0 : index
    %303 = vector.load %arg7[%302, %c0_100, %c0_101] : memref<32x16x128xbf16, #tpu.memory_space<vmem>>, vector<1x16x128xbf16>
    %304 = vector.shape_cast %303 : vector<1x16x128xbf16> to vector<16x128xbf16>
    %305 = vector.shape_cast %301 : vector<16x128xbf16> to vector<1x16x128xbf16>
    tpu.vector_store %arg7[%302, %c0_100, %c0_101], %305 {strides = array<i32>} : memref<32x16x128xbf16, #tpu.memory_space<vmem>>, vector<1x16x128xbf16>,
    %c17_i32 = arith.constant 17 : i32
    %306 = arith.index_cast %c17_i32 : i32 to index
    %c0_102 = arith.constant 0 : index
    %c0_103 = arith.constant 0 : index
    %307 = vector.load %arg8[%306, %c0_102, %c0_103] : memref<32x16x128xf32, #tpu.memory_space<vmem>>, vector<1x16x128xf32>
    %308 = vector.shape_cast %307 : vector<1x16x128xf32> to vector<16x128xf32>
    %309 = arith.truncf %300 : vector<16x128xf32> to vector<16x128xbf16>
    %cst_104 = arith.constant dense<0.000000e+00> : vector<16x256xf32>
    %310 = tpu.matmul %309, %12, %cst_104 {dimension_numbers = #tpu.dot_dimension_numbers<[1], [0], [0], [1], [0, 0, 1, 1], [], []>} : vector<16x128xbf16>, vector<128x256xbf16>, vector<16x256xf32> -> vector<16x256xf32>
    %311 = vector.extract_strided_slice %310 {offsets = [0, 0], sizes = [16, 128], strides = [1, 1]} : vector<16x256xf32> to vector<16x128xf32>
    %312 = vector.extract_strided_slice %310 {offsets = [0, 128], sizes = [16, 128], strides = [1, 1]} : vector<16x256xf32> to vector<16x128xf32>
    %313 = arith.addf %312, %308 : vector<16x128xf32>
    %314 = math.tanh %313 : vector<16x128xf32>
    %315 = arith.addf %311, %314 : vector<16x128xf32>
    %316 = arith.mulf %15, %315 : vector<16x128xf32>
    %317 = arith.addf %300, %316 : vector<16x128xf32>
    %318 = arith.truncf %317 : vector<16x128xf32> to vector<16x128xbf16>
    %319 = arith.index_cast %c17_i32 : i32 to index
    %c0_105 = arith.constant 0 : index
    %c0_106 = arith.constant 0 : index
    %320 = vector.load %arg7[%319, %c0_105, %c0_106] : memref<32x16x128xbf16, #tpu.memory_space<vmem>>, vector<1x16x128xbf16>
    %321 = vector.shape_cast %320 : vector<1x16x128xbf16> to vector<16x128xbf16>
    %322 = vector.shape_cast %318 : vector<16x128xbf16> to vector<1x16x128xbf16>
    tpu.vector_store %arg7[%319, %c0_105, %c0_106], %322 {strides = array<i32>} : memref<32x16x128xbf16, #tpu.memory_space<vmem>>, vector<1x16x128xbf16>,
    %c18_i32 = arith.constant 18 : i32
    %323 = arith.index_cast %c18_i32 : i32 to index
    %c0_107 = arith.constant 0 : index
    %c0_108 = arith.constant 0 : index
    %324 = vector.load %arg8[%323, %c0_107, %c0_108] : memref<32x16x128xf32, #tpu.memory_space<vmem>>, vector<1x16x128xf32>
    %325 = vector.shape_cast %324 : vector<1x16x128xf32> to vector<16x128xf32>
    %326 = arith.truncf %317 : vector<16x128xf32> to vector<16x128xbf16>
    %cst_109 = arith.constant dense<0.000000e+00> : vector<16x256xf32>
    %327 = tpu.matmul %326, %12, %cst_109 {dimension_numbers = #tpu.dot_dimension_numbers<[1], [0], [0], [1], [0, 0, 1, 1], [], []>} : vector<16x128xbf16>, vector<128x256xbf16>, vector<16x256xf32> -> vector<16x256xf32>
    %328 = vector.extract_strided_slice %327 {offsets = [0, 0], sizes = [16, 128], strides = [1, 1]} : vector<16x256xf32> to vector<16x128xf32>
    %329 = vector.extract_strided_slice %327 {offsets = [0, 128], sizes = [16, 128], strides = [1, 1]} : vector<16x256xf32> to vector<16x128xf32>
    %330 = arith.addf %329, %325 : vector<16x128xf32>
    %331 = math.tanh %330 : vector<16x128xf32>
    %332 = arith.addf %328, %331 : vector<16x128xf32>
    %333 = arith.mulf %15, %332 : vector<16x128xf32>
    %334 = arith.addf %317, %333 : vector<16x128xf32>
    %335 = arith.truncf %334 : vector<16x128xf32> to vector<16x128xbf16>
    %336 = arith.index_cast %c18_i32 : i32 to index
    %c0_110 = arith.constant 0 : index
    %c0_111 = arith.constant 0 : index
    %337 = vector.load %arg7[%336, %c0_110, %c0_111] : memref<32x16x128xbf16, #tpu.memory_space<vmem>>, vector<1x16x128xbf16>
    %338 = vector.shape_cast %337 : vector<1x16x128xbf16> to vector<16x128xbf16>
    %339 = vector.shape_cast %335 : vector<16x128xbf16> to vector<1x16x128xbf16>
    tpu.vector_store %arg7[%336, %c0_110, %c0_111], %339 {strides = array<i32>} : memref<32x16x128xbf16, #tpu.memory_space<vmem>>, vector<1x16x128xbf16>,
    %c19_i32 = arith.constant 19 : i32
    %340 = arith.index_cast %c19_i32 : i32 to index
    %c0_112 = arith.constant 0 : index
    %c0_113 = arith.constant 0 : index
    %341 = vector.load %arg8[%340, %c0_112, %c0_113] : memref<32x16x128xf32, #tpu.memory_space<vmem>>, vector<1x16x128xf32>
    %342 = vector.shape_cast %341 : vector<1x16x128xf32> to vector<16x128xf32>
    %343 = arith.truncf %334 : vector<16x128xf32> to vector<16x128xbf16>
    %cst_114 = arith.constant dense<0.000000e+00> : vector<16x256xf32>
    %344 = tpu.matmul %343, %12, %cst_114 {dimension_numbers = #tpu.dot_dimension_numbers<[1], [0], [0], [1], [0, 0, 1, 1], [], []>} : vector<16x128xbf16>, vector<128x256xbf16>, vector<16x256xf32> -> vector<16x256xf32>
    %345 = vector.extract_strided_slice %344 {offsets = [0, 0], sizes = [16, 128], strides = [1, 1]} : vector<16x256xf32> to vector<16x128xf32>
    %346 = vector.extract_strided_slice %344 {offsets = [0, 128], sizes = [16, 128], strides = [1, 1]} : vector<16x256xf32> to vector<16x128xf32>
    %347 = arith.addf %346, %342 : vector<16x128xf32>
    %348 = math.tanh %347 : vector<16x128xf32>
    %349 = arith.addf %345, %348 : vector<16x128xf32>
    %350 = arith.mulf %15, %349 : vector<16x128xf32>
    %351 = arith.addf %334, %350 : vector<16x128xf32>
    %352 = arith.truncf %351 : vector<16x128xf32> to vector<16x128xbf16>
    %353 = arith.index_cast %c19_i32 : i32 to index
    %c0_115 = arith.constant 0 : index
    %c0_116 = arith.constant 0 : index
    %354 = vector.load %arg7[%353, %c0_115, %c0_116] : memref<32x16x128xbf16, #tpu.memory_space<vmem>>, vector<1x16x128xbf16>
    %355 = vector.shape_cast %354 : vector<1x16x128xbf16> to vector<16x128xbf16>
    %356 = vector.shape_cast %352 : vector<16x128xbf16> to vector<1x16x128xbf16>
    tpu.vector_store %arg7[%353, %c0_115, %c0_116], %356 {strides = array<i32>} : memref<32x16x128xbf16, #tpu.memory_space<vmem>>, vector<1x16x128xbf16>,
    %c20_i32 = arith.constant 20 : i32
    %357 = arith.index_cast %c20_i32 : i32 to index
    %c0_117 = arith.constant 0 : index
    %c0_118 = arith.constant 0 : index
    %358 = vector.load %arg8[%357, %c0_117, %c0_118] : memref<32x16x128xf32, #tpu.memory_space<vmem>>, vector<1x16x128xf32>
    %359 = vector.shape_cast %358 : vector<1x16x128xf32> to vector<16x128xf32>
    %360 = arith.truncf %351 : vector<16x128xf32> to vector<16x128xbf16>
    %cst_119 = arith.constant dense<0.000000e+00> : vector<16x256xf32>
    %361 = tpu.matmul %360, %12, %cst_119 {dimension_numbers = #tpu.dot_dimension_numbers<[1], [0], [0], [1], [0, 0, 1, 1], [], []>} : vector<16x128xbf16>, vector<128x256xbf16>, vector<16x256xf32> -> vector<16x256xf32>
    %362 = vector.extract_strided_slice %361 {offsets = [0, 0], sizes = [16, 128], strides = [1, 1]} : vector<16x256xf32> to vector<16x128xf32>
    %363 = vector.extract_strided_slice %361 {offsets = [0, 128], sizes = [16, 128], strides = [1, 1]} : vector<16x256xf32> to vector<16x128xf32>
    %364 = arith.addf %363, %359 : vector<16x128xf32>
    %365 = math.tanh %364 : vector<16x128xf32>
    %366 = arith.addf %362, %365 : vector<16x128xf32>
    %367 = arith.mulf %15, %366 : vector<16x128xf32>
    %368 = arith.addf %351, %367 : vector<16x128xf32>
    %369 = arith.truncf %368 : vector<16x128xf32> to vector<16x128xbf16>
    %370 = arith.index_cast %c20_i32 : i32 to index
    %c0_120 = arith.constant 0 : index
    %c0_121 = arith.constant 0 : index
    %371 = vector.load %arg7[%370, %c0_120, %c0_121] : memref<32x16x128xbf16, #tpu.memory_space<vmem>>, vector<1x16x128xbf16>
    %372 = vector.shape_cast %371 : vector<1x16x128xbf16> to vector<16x128xbf16>
    %373 = vector.shape_cast %369 : vector<16x128xbf16> to vector<1x16x128xbf16>
    tpu.vector_store %arg7[%370, %c0_120, %c0_121], %373 {strides = array<i32>} : memref<32x16x128xbf16, #tpu.memory_space<vmem>>, vector<1x16x128xbf16>,
    %c21_i32 = arith.constant 21 : i32
    %374 = arith.index_cast %c21_i32 : i32 to index
    %c0_122 = arith.constant 0 : index
    %c0_123 = arith.constant 0 : index
    %375 = vector.load %arg8[%374, %c0_122, %c0_123] : memref<32x16x128xf32, #tpu.memory_space<vmem>>, vector<1x16x128xf32>
    %376 = vector.shape_cast %375 : vector<1x16x128xf32> to vector<16x128xf32>
    %377 = arith.truncf %368 : vector<16x128xf32> to vector<16x128xbf16>
    %cst_124 = arith.constant dense<0.000000e+00> : vector<16x256xf32>
    %378 = tpu.matmul %377, %12, %cst_124 {dimension_numbers = #tpu.dot_dimension_numbers<[1], [0], [0], [1], [0, 0, 1, 1], [], []>} : vector<16x128xbf16>, vector<128x256xbf16>, vector<16x256xf32> -> vector<16x256xf32>
    %379 = vector.extract_strided_slice %378 {offsets = [0, 0], sizes = [16, 128], strides = [1, 1]} : vector<16x256xf32> to vector<16x128xf32>
    %380 = vector.extract_strided_slice %378 {offsets = [0, 128], sizes = [16, 128], strides = [1, 1]} : vector<16x256xf32> to vector<16x128xf32>
    %381 = arith.addf %380, %376 : vector<16x128xf32>
    %382 = math.tanh %381 : vector<16x128xf32>
    %383 = arith.addf %379, %382 : vector<16x128xf32>
    %384 = arith.mulf %15, %383 : vector<16x128xf32>
    %385 = arith.addf %368, %384 : vector<16x128xf32>
    %386 = arith.truncf %385 : vector<16x128xf32> to vector<16x128xbf16>
    %387 = arith.index_cast %c21_i32 : i32 to index
    %c0_125 = arith.constant 0 : index
    %c0_126 = arith.constant 0 : index
    %388 = vector.load %arg7[%387, %c0_125, %c0_126] : memref<32x16x128xbf16, #tpu.memory_space<vmem>>, vector<1x16x128xbf16>
    %389 = vector.shape_cast %388 : vector<1x16x128xbf16> to vector<16x128xbf16>
    %390 = vector.shape_cast %386 : vector<16x128xbf16> to vector<1x16x128xbf16>
    tpu.vector_store %arg7[%387, %c0_125, %c0_126], %390 {strides = array<i32>} : memref<32x16x128xbf16, #tpu.memory_space<vmem>>, vector<1x16x128xbf16>,
    %c22_i32 = arith.constant 22 : i32
    %391 = arith.index_cast %c22_i32 : i32 to index
    %c0_127 = arith.constant 0 : index
    %c0_128 = arith.constant 0 : index
    %392 = vector.load %arg8[%391, %c0_127, %c0_128] : memref<32x16x128xf32, #tpu.memory_space<vmem>>, vector<1x16x128xf32>
    %393 = vector.shape_cast %392 : vector<1x16x128xf32> to vector<16x128xf32>
    %394 = arith.truncf %385 : vector<16x128xf32> to vector<16x128xbf16>
    %cst_129 = arith.constant dense<0.000000e+00> : vector<16x256xf32>
    %395 = tpu.matmul %394, %12, %cst_129 {dimension_numbers = #tpu.dot_dimension_numbers<[1], [0], [0], [1], [0, 0, 1, 1], [], []>} : vector<16x128xbf16>, vector<128x256xbf16>, vector<16x256xf32> -> vector<16x256xf32>
    %396 = vector.extract_strided_slice %395 {offsets = [0, 0], sizes = [16, 128], strides = [1, 1]} : vector<16x256xf32> to vector<16x128xf32>
    %397 = vector.extract_strided_slice %395 {offsets = [0, 128], sizes = [16, 128], strides = [1, 1]} : vector<16x256xf32> to vector<16x128xf32>
    %398 = arith.addf %397, %393 : vector<16x128xf32>
    %399 = math.tanh %398 : vector<16x128xf32>
    %400 = arith.addf %396, %399 : vector<16x128xf32>
    %401 = arith.mulf %15, %400 : vector<16x128xf32>
    %402 = arith.addf %385, %401 : vector<16x128xf32>
    %403 = arith.truncf %402 : vector<16x128xf32> to vector<16x128xbf16>
    %404 = arith.index_cast %c22_i32 : i32 to index
    %c0_130 = arith.constant 0 : index
    %c0_131 = arith.constant 0 : index
    %405 = vector.load %arg7[%404, %c0_130, %c0_131] : memref<32x16x128xbf16, #tpu.memory_space<vmem>>, vector<1x16x128xbf16>
    %406 = vector.shape_cast %405 : vector<1x16x128xbf16> to vector<16x128xbf16>
    %407 = vector.shape_cast %403 : vector<16x128xbf16> to vector<1x16x128xbf16>
    tpu.vector_store %arg7[%404, %c0_130, %c0_131], %407 {strides = array<i32>} : memref<32x16x128xbf16, #tpu.memory_space<vmem>>, vector<1x16x128xbf16>,
    %c23_i32 = arith.constant 23 : i32
    %408 = arith.index_cast %c23_i32 : i32 to index
    %c0_132 = arith.constant 0 : index
    %c0_133 = arith.constant 0 : index
    %409 = vector.load %arg8[%408, %c0_132, %c0_133] : memref<32x16x128xf32, #tpu.memory_space<vmem>>, vector<1x16x128xf32>
    %410 = vector.shape_cast %409 : vector<1x16x128xf32> to vector<16x128xf32>
    %411 = arith.truncf %402 : vector<16x128xf32> to vector<16x128xbf16>
    %cst_134 = arith.constant dense<0.000000e+00> : vector<16x256xf32>
    %412 = tpu.matmul %411, %12, %cst_134 {dimension_numbers = #tpu.dot_dimension_numbers<[1], [0], [0], [1], [0, 0, 1, 1], [], []>} : vector<16x128xbf16>, vector<128x256xbf16>, vector<16x256xf32> -> vector<16x256xf32>
    %413 = vector.extract_strided_slice %412 {offsets = [0, 0], sizes = [16, 128], strides = [1, 1]} : vector<16x256xf32> to vector<16x128xf32>
    %414 = vector.extract_strided_slice %412 {offsets = [0, 128], sizes = [16, 128], strides = [1, 1]} : vector<16x256xf32> to vector<16x128xf32>
    %415 = arith.addf %414, %410 : vector<16x128xf32>
    %416 = math.tanh %415 : vector<16x128xf32>
    %417 = arith.addf %413, %416 : vector<16x128xf32>
    %418 = arith.mulf %15, %417 : vector<16x128xf32>
    %419 = arith.addf %402, %418 : vector<16x128xf32>
    %420 = arith.truncf %419 : vector<16x128xf32> to vector<16x128xbf16>
    %421 = arith.index_cast %c23_i32 : i32 to index
    %c0_135 = arith.constant 0 : index
    %c0_136 = arith.constant 0 : index
    %422 = vector.load %arg7[%421, %c0_135, %c0_136] : memref<32x16x128xbf16, #tpu.memory_space<vmem>>, vector<1x16x128xbf16>
    %423 = vector.shape_cast %422 : vector<1x16x128xbf16> to vector<16x128xbf16>
    %424 = vector.shape_cast %420 : vector<16x128xbf16> to vector<1x16x128xbf16>
    tpu.vector_store %arg7[%421, %c0_135, %c0_136], %424 {strides = array<i32>} : memref<32x16x128xbf16, #tpu.memory_space<vmem>>, vector<1x16x128xbf16>,
    %c24_i32 = arith.constant 24 : i32
    %425 = arith.index_cast %c24_i32 : i32 to index
    %c0_137 = arith.constant 0 : index
    %c0_138 = arith.constant 0 : index
    %426 = vector.load %arg8[%425, %c0_137, %c0_138] : memref<32x16x128xf32, #tpu.memory_space<vmem>>, vector<1x16x128xf32>
    %427 = vector.shape_cast %426 : vector<1x16x128xf32> to vector<16x128xf32>
    %428 = arith.truncf %419 : vector<16x128xf32> to vector<16x128xbf16>
    %cst_139 = arith.constant dense<0.000000e+00> : vector<16x256xf32>
    %429 = tpu.matmul %428, %12, %cst_139 {dimension_numbers = #tpu.dot_dimension_numbers<[1], [0], [0], [1], [0, 0, 1, 1], [], []>} : vector<16x128xbf16>, vector<128x256xbf16>, vector<16x256xf32> -> vector<16x256xf32>
    %430 = vector.extract_strided_slice %429 {offsets = [0, 0], sizes = [16, 128], strides = [1, 1]} : vector<16x256xf32> to vector<16x128xf32>
    %431 = vector.extract_strided_slice %429 {offsets = [0, 128], sizes = [16, 128], strides = [1, 1]} : vector<16x256xf32> to vector<16x128xf32>
    %432 = arith.addf %431, %427 : vector<16x128xf32>
    %433 = math.tanh %432 : vector<16x128xf32>
    %434 = arith.addf %430, %433 : vector<16x128xf32>
    %435 = arith.mulf %15, %434 : vector<16x128xf32>
    %436 = arith.addf %419, %435 : vector<16x128xf32>
    %437 = arith.truncf %436 : vector<16x128xf32> to vector<16x128xbf16>
    %438 = arith.index_cast %c24_i32 : i32 to index
    %c0_140 = arith.constant 0 : index
    %c0_141 = arith.constant 0 : index
    %439 = vector.load %arg7[%438, %c0_140, %c0_141] : memref<32x16x128xbf16, #tpu.memory_space<vmem>>, vector<1x16x128xbf16>
    %440 = vector.shape_cast %439 : vector<1x16x128xbf16> to vector<16x128xbf16>
    %441 = vector.shape_cast %437 : vector<16x128xbf16> to vector<1x16x128xbf16>
    tpu.vector_store %arg7[%438, %c0_140, %c0_141], %441 {strides = array<i32>} : memref<32x16x128xbf16, #tpu.memory_space<vmem>>, vector<1x16x128xbf16>,
    %c25_i32 = arith.constant 25 : i32
    %442 = arith.index_cast %c25_i32 : i32 to index
    %c0_142 = arith.constant 0 : index
    %c0_143 = arith.constant 0 : index
    %443 = vector.load %arg8[%442, %c0_142, %c0_143] : memref<32x16x128xf32, #tpu.memory_space<vmem>>, vector<1x16x128xf32>
    %444 = vector.shape_cast %443 : vector<1x16x128xf32> to vector<16x128xf32>
    %445 = arith.truncf %436 : vector<16x128xf32> to vector<16x128xbf16>
    %cst_144 = arith.constant dense<0.000000e+00> : vector<16x256xf32>
    %446 = tpu.matmul %445, %12, %cst_144 {dimension_numbers = #tpu.dot_dimension_numbers<[1], [0], [0], [1], [0, 0, 1, 1], [], []>} : vector<16x128xbf16>, vector<128x256xbf16>, vector<16x256xf32> -> vector<16x256xf32>
    %447 = vector.extract_strided_slice %446 {offsets = [0, 0], sizes = [16, 128], strides = [1, 1]} : vector<16x256xf32> to vector<16x128xf32>
    %448 = vector.extract_strided_slice %446 {offsets = [0, 128], sizes = [16, 128], strides = [1, 1]} : vector<16x256xf32> to vector<16x128xf32>
    %449 = arith.addf %448, %444 : vector<16x128xf32>
    %450 = math.tanh %449 : vector<16x128xf32>
    %451 = arith.addf %447, %450 : vector<16x128xf32>
    %452 = arith.mulf %15, %451 : vector<16x128xf32>
    %453 = arith.addf %436, %452 : vector<16x128xf32>
    %454 = arith.truncf %453 : vector<16x128xf32> to vector<16x128xbf16>
    %455 = arith.index_cast %c25_i32 : i32 to index
    %c0_145 = arith.constant 0 : index
    %c0_146 = arith.constant 0 : index
    %456 = vector.load %arg7[%455, %c0_145, %c0_146] : memref<32x16x128xbf16, #tpu.memory_space<vmem>>, vector<1x16x128xbf16>
    %457 = vector.shape_cast %456 : vector<1x16x128xbf16> to vector<16x128xbf16>
    %458 = vector.shape_cast %454 : vector<16x128xbf16> to vector<1x16x128xbf16>
    tpu.vector_store %arg7[%455, %c0_145, %c0_146], %458 {strides = array<i32>} : memref<32x16x128xbf16, #tpu.memory_space<vmem>>, vector<1x16x128xbf16>,
    %c26_i32 = arith.constant 26 : i32
    %459 = arith.index_cast %c26_i32 : i32 to index
    %c0_147 = arith.constant 0 : index
    %c0_148 = arith.constant 0 : index
    %460 = vector.load %arg8[%459, %c0_147, %c0_148] : memref<32x16x128xf32, #tpu.memory_space<vmem>>, vector<1x16x128xf32>
    %461 = vector.shape_cast %460 : vector<1x16x128xf32> to vector<16x128xf32>
    %462 = arith.truncf %453 : vector<16x128xf32> to vector<16x128xbf16>
    %cst_149 = arith.constant dense<0.000000e+00> : vector<16x256xf32>
    %463 = tpu.matmul %462, %12, %cst_149 {dimension_numbers = #tpu.dot_dimension_numbers<[1], [0], [0], [1], [0, 0, 1, 1], [], []>} : vector<16x128xbf16>, vector<128x256xbf16>, vector<16x256xf32> -> vector<16x256xf32>
    %464 = vector.extract_strided_slice %463 {offsets = [0, 0], sizes = [16, 128], strides = [1, 1]} : vector<16x256xf32> to vector<16x128xf32>
    %465 = vector.extract_strided_slice %463 {offsets = [0, 128], sizes = [16, 128], strides = [1, 1]} : vector<16x256xf32> to vector<16x128xf32>
    %466 = arith.addf %465, %461 : vector<16x128xf32>
    %467 = math.tanh %466 : vector<16x128xf32>
    %468 = arith.addf %464, %467 : vector<16x128xf32>
    %469 = arith.mulf %15, %468 : vector<16x128xf32>
    %470 = arith.addf %453, %469 : vector<16x128xf32>
    %471 = arith.truncf %470 : vector<16x128xf32> to vector<16x128xbf16>
    %472 = arith.index_cast %c26_i32 : i32 to index
    %c0_150 = arith.constant 0 : index
    %c0_151 = arith.constant 0 : index
    %473 = vector.load %arg7[%472, %c0_150, %c0_151] : memref<32x16x128xbf16, #tpu.memory_space<vmem>>, vector<1x16x128xbf16>
    %474 = vector.shape_cast %473 : vector<1x16x128xbf16> to vector<16x128xbf16>
    %475 = vector.shape_cast %471 : vector<16x128xbf16> to vector<1x16x128xbf16>
    tpu.vector_store %arg7[%472, %c0_150, %c0_151], %475 {strides = array<i32>} : memref<32x16x128xbf16, #tpu.memory_space<vmem>>, vector<1x16x128xbf16>,
    %c27_i32 = arith.constant 27 : i32
    %476 = arith.index_cast %c27_i32 : i32 to index
    %c0_152 = arith.constant 0 : index
    %c0_153 = arith.constant 0 : index
    %477 = vector.load %arg8[%476, %c0_152, %c0_153] : memref<32x16x128xf32, #tpu.memory_space<vmem>>, vector<1x16x128xf32>
    %478 = vector.shape_cast %477 : vector<1x16x128xf32> to vector<16x128xf32>
    %479 = arith.truncf %470 : vector<16x128xf32> to vector<16x128xbf16>
    %cst_154 = arith.constant dense<0.000000e+00> : vector<16x256xf32>
    %480 = tpu.matmul %479, %12, %cst_154 {dimension_numbers = #tpu.dot_dimension_numbers<[1], [0], [0], [1], [0, 0, 1, 1], [], []>} : vector<16x128xbf16>, vector<128x256xbf16>, vector<16x256xf32> -> vector<16x256xf32>
    %481 = vector.extract_strided_slice %480 {offsets = [0, 0], sizes = [16, 128], strides = [1, 1]} : vector<16x256xf32> to vector<16x128xf32>
    %482 = vector.extract_strided_slice %480 {offsets = [0, 128], sizes = [16, 128], strides = [1, 1]} : vector<16x256xf32> to vector<16x128xf32>
    %483 = arith.addf %482, %478 : vector<16x128xf32>
    %484 = math.tanh %483 : vector<16x128xf32>
    %485 = arith.addf %481, %484 : vector<16x128xf32>
    %486 = arith.mulf %15, %485 : vector<16x128xf32>
    %487 = arith.addf %470, %486 : vector<16x128xf32>
    %488 = arith.truncf %487 : vector<16x128xf32> to vector<16x128xbf16>
    %489 = arith.index_cast %c27_i32 : i32 to index
    %c0_155 = arith.constant 0 : index
    %c0_156 = arith.constant 0 : index
    %490 = vector.load %arg7[%489, %c0_155, %c0_156] : memref<32x16x128xbf16, #tpu.memory_space<vmem>>, vector<1x16x128xbf16>
    %491 = vector.shape_cast %490 : vector<1x16x128xbf16> to vector<16x128xbf16>
    %492 = vector.shape_cast %488 : vector<16x128xbf16> to vector<1x16x128xbf16>
    tpu.vector_store %arg7[%489, %c0_155, %c0_156], %492 {strides = array<i32>} : memref<32x16x128xbf16, #tpu.memory_space<vmem>>, vector<1x16x128xbf16>,
    %c28_i32 = arith.constant 28 : i32
    %493 = arith.index_cast %c28_i32 : i32 to index
    %c0_157 = arith.constant 0 : index
    %c0_158 = arith.constant 0 : index
    %494 = vector.load %arg8[%493, %c0_157, %c0_158] : memref<32x16x128xf32, #tpu.memory_space<vmem>>, vector<1x16x128xf32>
    %495 = vector.shape_cast %494 : vector<1x16x128xf32> to vector<16x128xf32>
    %496 = arith.truncf %487 : vector<16x128xf32> to vector<16x128xbf16>
    %cst_159 = arith.constant dense<0.000000e+00> : vector<16x256xf32>
    %497 = tpu.matmul %496, %12, %cst_159 {dimension_numbers = #tpu.dot_dimension_numbers<[1], [0], [0], [1], [0, 0, 1, 1], [], []>} : vector<16x128xbf16>, vector<128x256xbf16>, vector<16x256xf32> -> vector<16x256xf32>
    %498 = vector.extract_strided_slice %497 {offsets = [0, 0], sizes = [16, 128], strides = [1, 1]} : vector<16x256xf32> to vector<16x128xf32>
    %499 = vector.extract_strided_slice %497 {offsets = [0, 128], sizes = [16, 128], strides = [1, 1]} : vector<16x256xf32> to vector<16x128xf32>
    %500 = arith.addf %499, %495 : vector<16x128xf32>
    %501 = math.tanh %500 : vector<16x128xf32>
    %502 = arith.addf %498, %501 : vector<16x128xf32>
    %503 = arith.mulf %15, %502 : vector<16x128xf32>
    %504 = arith.addf %487, %503 : vector<16x128xf32>
    %505 = arith.truncf %504 : vector<16x128xf32> to vector<16x128xbf16>
    %506 = arith.index_cast %c28_i32 : i32 to index
    %c0_160 = arith.constant 0 : index
    %c0_161 = arith.constant 0 : index
    %507 = vector.load %arg7[%506, %c0_160, %c0_161] : memref<32x16x128xbf16, #tpu.memory_space<vmem>>, vector<1x16x128xbf16>
    %508 = vector.shape_cast %507 : vector<1x16x128xbf16> to vector<16x128xbf16>
    %509 = vector.shape_cast %505 : vector<16x128xbf16> to vector<1x16x128xbf16>
    tpu.vector_store %arg7[%506, %c0_160, %c0_161], %509 {strides = array<i32>} : memref<32x16x128xbf16, #tpu.memory_space<vmem>>, vector<1x16x128xbf16>,
    %c29_i32 = arith.constant 29 : i32
    %510 = arith.index_cast %c29_i32 : i32 to index
    %c0_162 = arith.constant 0 : index
    %c0_163 = arith.constant 0 : index
    %511 = vector.load %arg8[%510, %c0_162, %c0_163] : memref<32x16x128xf32, #tpu.memory_space<vmem>>, vector<1x16x128xf32>
    %512 = vector.shape_cast %511 : vector<1x16x128xf32> to vector<16x128xf32>
    %513 = arith.truncf %504 : vector<16x128xf32> to vector<16x128xbf16>
    %cst_164 = arith.constant dense<0.000000e+00> : vector<16x256xf32>
    %514 = tpu.matmul %513, %12, %cst_164 {dimension_numbers = #tpu.dot_dimension_numbers<[1], [0], [0], [1], [0, 0, 1, 1], [], []>} : vector<16x128xbf16>, vector<128x256xbf16>, vector<16x256xf32> -> vector<16x256xf32>
    %515 = vector.extract_strided_slice %514 {offsets = [0, 0], sizes = [16, 128], strides = [1, 1]} : vector<16x256xf32> to vector<16x128xf32>
    %516 = vector.extract_strided_slice %514 {offsets = [0, 128], sizes = [16, 128], strides = [1, 1]} : vector<16x256xf32> to vector<16x128xf32>
    %517 = arith.addf %516, %512 : vector<16x128xf32>
    %518 = math.tanh %517 : vector<16x128xf32>
    %519 = arith.addf %515, %518 : vector<16x128xf32>
    %520 = arith.mulf %15, %519 : vector<16x128xf32>
    %521 = arith.addf %504, %520 : vector<16x128xf32>
    %522 = arith.truncf %521 : vector<16x128xf32> to vector<16x128xbf16>
    %523 = arith.index_cast %c29_i32 : i32 to index
    %c0_165 = arith.constant 0 : index
    %c0_166 = arith.constant 0 : index
    %524 = vector.load %arg7[%523, %c0_165, %c0_166] : memref<32x16x128xbf16, #tpu.memory_space<vmem>>, vector<1x16x128xbf16>
    %525 = vector.shape_cast %524 : vector<1x16x128xbf16> to vector<16x128xbf16>
    %526 = vector.shape_cast %522 : vector<16x128xbf16> to vector<1x16x128xbf16>
    tpu.vector_store %arg7[%523, %c0_165, %c0_166], %526 {strides = array<i32>} : memref<32x16x128xbf16, #tpu.memory_space<vmem>>, vector<1x16x128xbf16>,
    %c30_i32 = arith.constant 30 : i32
    %527 = arith.index_cast %c30_i32 : i32 to index
    %c0_167 = arith.constant 0 : index
    %c0_168 = arith.constant 0 : index
    %528 = vector.load %arg8[%527, %c0_167, %c0_168] : memref<32x16x128xf32, #tpu.memory_space<vmem>>, vector<1x16x128xf32>
    %529 = vector.shape_cast %528 : vector<1x16x128xf32> to vector<16x128xf32>
    %530 = arith.truncf %521 : vector<16x128xf32> to vector<16x128xbf16>
    %cst_169 = arith.constant dense<0.000000e+00> : vector<16x256xf32>
    %531 = tpu.matmul %530, %12, %cst_169 {dimension_numbers = #tpu.dot_dimension_numbers<[1], [0], [0], [1], [0, 0, 1, 1], [], []>} : vector<16x128xbf16>, vector<128x256xbf16>, vector<16x256xf32> -> vector<16x256xf32>
    %532 = vector.extract_strided_slice %531 {offsets = [0, 0], sizes = [16, 128], strides = [1, 1]} : vector<16x256xf32> to vector<16x128xf32>
    %533 = vector.extract_strided_slice %531 {offsets = [0, 128], sizes = [16, 128], strides = [1, 1]} : vector<16x256xf32> to vector<16x128xf32>
    %534 = arith.addf %533, %529 : vector<16x128xf32>
    %535 = math.tanh %534 : vector<16x128xf32>
    %536 = arith.addf %532, %535 : vector<16x128xf32>
    %537 = arith.mulf %15, %536 : vector<16x128xf32>
    %538 = arith.addf %521, %537 : vector<16x128xf32>
    %539 = arith.truncf %538 : vector<16x128xf32> to vector<16x128xbf16>
    %540 = arith.index_cast %c30_i32 : i32 to index
    %c0_170 = arith.constant 0 : index
    %c0_171 = arith.constant 0 : index
    %541 = vector.load %arg7[%540, %c0_170, %c0_171] : memref<32x16x128xbf16, #tpu.memory_space<vmem>>, vector<1x16x128xbf16>
    %542 = vector.shape_cast %541 : vector<1x16x128xbf16> to vector<16x128xbf16>
    %543 = vector.shape_cast %539 : vector<16x128xbf16> to vector<1x16x128xbf16>
    tpu.vector_store %arg7[%540, %c0_170, %c0_171], %543 {strides = array<i32>} : memref<32x16x128xbf16, #tpu.memory_space<vmem>>, vector<1x16x128xbf16>,
    %c31_i32 = arith.constant 31 : i32
    %544 = arith.index_cast %c31_i32 : i32 to index
    %c0_172 = arith.constant 0 : index
    %c0_173 = arith.constant 0 : index
    %545 = vector.load %arg8[%544, %c0_172, %c0_173] : memref<32x16x128xf32, #tpu.memory_space<vmem>>, vector<1x16x128xf32>
    %546 = vector.shape_cast %545 : vector<1x16x128xf32> to vector<16x128xf32>
    %547 = arith.truncf %538 : vector<16x128xf32> to vector<16x128xbf16>
    %cst_174 = arith.constant dense<0.000000e+00> : vector<16x256xf32>
    %548 = tpu.matmul %547, %12, %cst_174 {dimension_numbers = #tpu.dot_dimension_numbers<[1], [0], [0], [1], [0, 0, 1, 1], [], []>} : vector<16x128xbf16>, vector<128x256xbf16>, vector<16x256xf32> -> vector<16x256xf32>
    %549 = vector.extract_strided_slice %548 {offsets = [0, 0], sizes = [16, 128], strides = [1, 1]} : vector<16x256xf32> to vector<16x128xf32>
    %550 = vector.extract_strided_slice %548 {offsets = [0, 128], sizes = [16, 128], strides = [1, 1]} : vector<16x256xf32> to vector<16x128xf32>
    %551 = arith.addf %550, %546 : vector<16x128xf32>
    %552 = math.tanh %551 : vector<16x128xf32>
    %553 = arith.addf %549, %552 : vector<16x128xf32>
    %554 = arith.mulf %15, %553 : vector<16x128xf32>
    %555 = arith.addf %538, %554 : vector<16x128xf32>
    %556 = arith.truncf %555 : vector<16x128xf32> to vector<16x128xbf16>
    %557 = arith.index_cast %c31_i32 : i32 to index
    %c0_175 = arith.constant 0 : index
    %c0_176 = arith.constant 0 : index
    %558 = vector.load %arg7[%557, %c0_175, %c0_176] : memref<32x16x128xbf16, #tpu.memory_space<vmem>>, vector<1x16x128xbf16>
    %559 = vector.shape_cast %558 : vector<1x16x128xbf16> to vector<16x128xbf16>
    %560 = vector.shape_cast %556 : vector<16x128xbf16> to vector<1x16x128xbf16>
    tpu.vector_store %arg7[%557, %c0_175, %c0_176], %560 {strides = array<i32>} : memref<32x16x128xbf16, #tpu.memory_space<vmem>>, vector<1x16x128xbf16>,
    %c32_i32 = arith.constant 32 : i32
    %c0_177 = arith.constant 0 : index
    %c0_178 = arith.constant 0 : index
    %561 = vector.load %arg9[%c0_177, %c0_178] : memref<16x128xf32, #tpu.memory_space<vmem>>, vector<16x128xf32>
    tpu.vector_store %arg9[%c0_177, %c0_178], %555 {strides = array<i32>} : memref<16x128xf32, #tpu.memory_space<vmem>>, vector<16x128xf32>,
    return
  }
  func.func @transform_0(%arg0: i32, %arg1: i32) -> (i32, i32, i32) {
    %c0_i32 = arith.constant 0 : i32
    %c0_i32_0 = arith.constant 0 : i32
    return %arg1, %arg0, %c0_i32 : i32, i32, i32
  }
  func.func @transform_1(%arg0: i32, %arg1: i32) -> (i32, i32) {
    %c0_i32 = arith.constant 0 : i32
    %c0_i32_0 = arith.constant 0 : i32
    %c0_i32_1 = arith.constant 0 : i32
    return %c0_i32, %c0_i32_0 : i32, i32
  }
  func.func @transform_2(%arg0: i32, %arg1: i32) -> (i32, i32) {
    %c0_i32 = arith.constant 0 : i32
    %c0_i32_0 = arith.constant 0 : i32
    %c0_i32_1 = arith.constant 0 : i32
    return %c0_i32, %c0_i32_0 : i32, i32
  }
  func.func @transform_3(%arg0: i32, %arg1: i32) -> (i32, i32) {
    %c0_i32 = arith.constant 0 : i32
    %c0_i32_0 = arith.constant 0 : i32
    %c0_i32_1 = arith.constant 0 : i32
    return %c0_i32, %c0_i32_0 : i32, i32
  }
  func.func @transform_4(%arg0: i32, %arg1: i32) -> (i32, i32) {
    %c0_i32 = arith.constant 0 : i32
    %c0_i32_0 = arith.constant 0 : i32
    %c0_i32_1 = arith.constant 0 : i32
    return %c0_i32, %c0_i32_0 : i32, i32
  }
  func.func @transform_5(%arg0: i32, %arg1: i32) -> (i32, i32, i32) {
    %c0_i32 = arith.constant 0 : i32
    %c0_i32_0 = arith.constant 0 : i32
    return %arg1, %arg0, %c0_i32 : i32, i32, i32
  }
}

</mosaic_0001>

<llo_original>
// kernel: tpu_custom_call.1
$region0: #{tpu_custom_call.1}
  #allocation0 [shape = 'u32[]', space=smem, size = 0x4, offset = 0x4, fixed_abs, tag = 'smem constant byte address 0x4 - core index']
  #allocation1 [shape = 'u32[144,128]{1,0:T(1,128)}', space=vmem, size = 0x12000, scoped, tag = 'internal scratch']
  #allocation2 [shape = 'f32[32,16,128]{2,1,0:T(8,128)}', space=vmem, size = 0x40000, scoped, tag = 'scratch operand']
  #allocation3 [shape = 'f32[16,128]{1,0:T(8,128)}', space=vmem, size = 0x2000, scoped, tag = 'scratch operand']
  #allocation11 [shape = 's32[]', space=sflag, size = 0x4, offset = 0, fixed_abs, tag = 'sflag constant byte address 0x0 - dummy sync flag']
  #allocation13 [shape = 's32[]', space=sflag, size = 0x4, offset = 0, fixed_abs, tag = 'sflag constant byte address 0x0 - dummy sync flag']
  %s0 = inlined_call_operand.hbm [shape: bf16[64,32,128], index: 0, kind: input, shape index: {}]
  %s1 = inlined_call_operand.hbm [shape: bf16[128,128], index: 1, kind: input, shape index: {}]
  %s2 = inlined_call_operand.vmem [shape: f32[1,128], index: 2, kind: input, shape index: {}]
  %s3 = inlined_call_operand.hbm [shape: bf16[128,256], index: 3, kind: input, shape index: {}]
  %s4 = inlined_call_operand.vmem [shape: f32[1,128], index: 4, kind: input, shape index: {}]
  %s5 = inlined_call_operand.hbm [shape: bf16[64,32,128], index: 5, kind: output, shape index: {}]
  %s6 = sld [smem:[#allocation0]]
  $region69: #{tpu_custom_call.1} parent=0
    _
  %s8 = ssub.s32 1, %s6
  %s9 = scalar_select 0, %s8, %s6
  $region1: #{tpu_custom_call.1} parent=0
    #allocation4 [shape = 'u8[262144]{0}', space=vmem, size = 0x40000, scoped, tag = 'input window, operand 0']
    #allocation5 [shape = 's32[2]{0}', space=sflag, size = 0x8, scoped, tag = 'scoped memory for tpu_custom_call.1']
    #allocation6 [shape = 's32[2]{0}', space=sflag, size = 0x8, scoped, tag = 'scoped memory for tpu_custom_call.1']
    #allocation7 [shape = 'u8[32768]{0}', space=vmem, size = 0x8000, scoped, tag = 'input window, operand 1, single buffered']
    #allocation8 [shape = 's32[1]{0}', space=sflag, size = 0x4, scoped, tag = 'scoped memory for tpu_custom_call.1']
    #allocation9 [shape = 'u8[65536]{0}', space=vmem, size = 0x10000, scoped, tag = 'input window, operand 3, single buffered']
    #allocation10 [shape = 'u8[262144]{0}', space=vmem, size = 0x40000, scoped, tag = 'output window, operand 0']
    %10 = vsyncpa [#allocation5], 0
    %s11 = scalar_lea.sflag [#allocation5], 1
    %12 = vsyncpa %s11, 0
    %13 = vsyncpa [#allocation8], 0
    %14 = vsyncpa [#allocation6], 0
    %s15 = scalar_lea.sflag [#allocation6], 1
    %16 = vsyncpa %s15, 0
    loop: start=0, step=1, limit=6
    $region2: #{tpu_custom_call.1} parent=1 // loop_pre_header
      _
    $region3: #{tpu_custom_call.1} parent=1 // loop_header
      %s18 = sphi 0, %s22
      %p19 = scmp.ge.s32.totalorder %s18, 6
      %s25 = sphi 0, %s37
      %s26 = sphi 0, %s33
      %s27 = sphi 0, %s25
      %s28 = sphi 0, %s26
      %s29 = sphi 0, %s27
      %s30 = sphi 0, %s28
      %s42 = sphi 0, %s44
      %s45 = sphi 0, %s42
      %s46 = sphi 0, %s45
      %s62 = sphi 0, %s46
      %s66 = sphi 0, %s66
      %s68 = sphi 0, %s66
      %s69 = sphi 0, %s68
      %s83 = sphi 0, %s69
      %s87 = sphi 0, %s87
      %s89 = sphi 0, %s87
      %s90 = sphi 0, %s89
      %s104 = sphi 0, %s90
      %s108 = sphi 0, %s108
      %s110 = sphi 0, %s108
      %s111 = sphi 0, %s110
      %s125 = sphi 0, %s111
      %s129 = sphi 0, %s129
      %s131 = sphi 0, %s129
      %s132 = sphi 0, %s131
      %s146 = sphi 0, %s132
      %s154 = sphi 0, %s156
      %s157 = sphi 0, %s154
      %s158 = sphi 0, %s157
      %s174 = sphi 0, %s158
    $region4: #{tpu_custom_call.1} parent=1 // loop_header_branch
      %21 = sbr.rel (%p19) target = $region8
    $region5: #{tpu_custom_call.1} parent=1 // loop_body
      %s23 = ssub.s32 %s18, 1
      %s24 = ssub.s32 %s18, 2
      %s31 = sadd.s32 1, %s26
      %p32 = scmp.ge.s32.totalorder %s31, 2
      %s33 = scalar_select %p32, 0, %s31
      %s34 = sadd.s32 1, %s25
      %s35 = scalar_select %p32, %s34, %s25
      %p36 = scmp.ge.s32.totalorder %s35, 2
      %s37 = scalar_select %p36, 0, %s35
      %s38 = ssub.s32 %s26, %s33
      %s39 = ssub.s32 %s25, %s37
      %s40 = sor.u32 %s38, %s39
      %p41 = scmp.eq.s32.totalorder %s40, 0
      %s43 = sadd.s32 %s42, 1
      %s44 = scalar_select %p41, %s42, %s43
      %p47 = pneg %p41
      %p48 = scmp.eq.s32.totalorder %s18, 3
      %p49 = por %p47, %p48
      %p50 = scmp.ne.s32.totalorder %s42, %s45
      %p51 = scmp.eq.s32.totalorder %s18, 0
      %p52 = por %p50, %p51
      %p53 = scmp.ne.s32.totalorder %s42, %s45
      %p54 = scmp.eq.s32.totalorder %s23, 3
      %p55 = por %p53, %p54
      %p56 = scmp.ne.s32.totalorder %s45, %s46
      %p57 = scmp.eq.s32.totalorder %s23, 0
      %p58 = por %p56, %p57
      %p59 = scmp.ne.s32.totalorder %s45, %s46
      %p60 = scmp.eq.s32.totalorder %s24, 3
      %p61 = por %p59, %p60
      %p63 = scmp.ne.s32.totalorder %s46, %s62
      %p64 = scmp.eq.s32.totalorder %s24, 0
      %p65 = por %p63, %p64
      %s67 = sadd.s32 %s66, 1
      %p70 = scmp.eq.s32.totalorder %s18, 3
      %p71 = scmp.ne.s32.totalorder %s66, %s68
      %p72 = scmp.eq.s32.totalorder %s18, 0
      %p73 = por %p71, %p72
      %p74 = scmp.ne.s32.totalorder %s66, %s68
      %p75 = scmp.eq.s32.totalorder %s23, 3
      %p76 = por %p74, %p75
      %p77 = scmp.ne.s32.totalorder %s68, %s69
      %p78 = scmp.eq.s32.totalorder %s23, 0
      %p79 = por %p77, %p78
      %p80 = scmp.ne.s32.totalorder %s68, %s69
      %p81 = scmp.eq.s32.totalorder %s24, 3
      %p82 = por %p80, %p81
      %p84 = scmp.ne.s32.totalorder %s69, %s83
      %p85 = scmp.eq.s32.totalorder %s24, 0
      %p86 = por %p84, %p85
      %s88 = sadd.s32 %s87, 1
      %p91 = scmp.eq.s32.totalorder %s18, 3
      %p92 = scmp.ne.s32.totalorder %s87, %s89
      %p93 = scmp.eq.s32.totalorder %s18, 0
      %p94 = por %p92, %p93
      %p95 = scmp.ne.s32.totalorder %s87, %s89
      %p96 = scmp.eq.s32.totalorder %s23, 3
      %p97 = por %p95, %p96
      %p98 = scmp.ne.s32.totalorder %s89, %s90
      %p99 = scmp.eq.s32.totalorder %s23, 0
      %p100 = por %p98, %p99
      %p101 = scmp.ne.s32.totalorder %s89, %s90
      %p102 = scmp.eq.s32.totalorder %s24, 3
      %p103 = por %p101, %p102
      %p105 = scmp.ne.s32.totalorder %s90, %s104
      %p106 = scmp.eq.s32.totalorder %s24, 0
      %p107 = por %p105, %p106
      %s109 = sadd.s32 %s108, 1
      %p112 = scmp.eq.s32.totalorder %s18, 3
      %p113 = scmp.ne.s32.totalorder %s108, %s110
      %p114 = scmp.eq.s32.totalorder %s18, 0
      %p115 = por %p113, %p114
      %p116 = scmp.ne.s32.totalorder %s108, %s110
      %p117 = scmp.eq.s32.totalorder %s23, 3
      %p118 = por %p116, %p117
      %p119 = scmp.ne.s32.totalorder %s110, %s111
      %p120 = scmp.eq.s32.totalorder %s23, 0
      %p121 = por %p119, %p120
      %p122 = scmp.ne.s32.totalorder %s110, %s111
      %p123 = scmp.eq.s32.totalorder %s24, 3
      %p124 = por %p122, %p123
      %p126 = scmp.ne.s32.totalorder %s111, %s125
      %p127 = scmp.eq.s32.totalorder %s24, 0
      %p128 = por %p126, %p127
      %s130 = sadd.s32 %s129, 1
      %p133 = scmp.eq.s32.totalorder %s18, 3
      %p134 = scmp.ne.s32.totalorder %s129, %s131
      %p135 = scmp.eq.s32.totalorder %s18, 0
      %p136 = por %p134, %p135
      %p137 = scmp.ne.s32.totalorder %s129, %s131
      %p138 = scmp.eq.s32.totalorder %s23, 3
      %p139 = por %p137, %p138
      %p140 = scmp.ne.s32.totalorder %s131, %s132
      %p141 = scmp.eq.s32.totalorder %s23, 0
      %p142 = por %p140, %p141
      %p143 = scmp.ne.s32.totalorder %s131, %s132
      %p144 = scmp.eq.s32.totalorder %s24, 3
      %p145 = por %p143, %p144
      %p147 = scmp.ne.s32.totalorder %s132, %s146
      %p148 = scmp.eq.s32.totalorder %s24, 0
      %p149 = por %p147, %p148
      %s150 = ssub.s32 %s26, %s33
      %s151 = ssub.s32 %s25, %s37
      %s152 = sor.u32 %s150, %s151
      %p153 = scmp.eq.s32.totalorder %s152, 0
      %s155 = sadd.s32 %s154, 1
      %s156 = scalar_select %p153, %s154, %s155
      %p159 = pneg %p153
      %p160 = scmp.eq.s32.totalorder %s18, 3
      %p161 = por %p159, %p160
      %p162 = scmp.ne.s32.totalorder %s154, %s157
      %p163 = scmp.eq.s32.totalorder %s18, 0
      %p164 = por %p162, %p163
      %p165 = scmp.ne.s32.totalorder %s154, %s157
      %p166 = scmp.eq.s32.totalorder %s23, 3
      %p167 = por %p165, %p166
      %p168 = scmp.ne.s32.totalorder %s157, %s158
      %p169 = scmp.eq.s32.totalorder %s23, 0
      %p170 = por %p168, %p169
      %p171 = scmp.ne.s32.totalorder %s157, %s158
      %p172 = scmp.eq.s32.totalorder %s24, 3
      %p173 = por %p171, %p172
      %p175 = scmp.ne.s32.totalorder %s158, %s174
      %p176 = scmp.eq.s32.totalorder %s24, 0
      %p177 = por %p175, %p176
      %p178 = scmp.le.s32.totalorder 1, %s18
      %p179 = scmp.lt.s32.totalorder %s18, 5
      %p180 = pnand %p178, %p179
      %p181 = pneg %p180
      // Predicated region
      $region9: #{tpu_custom_call.1} parent=5 // pred_check
        _
      $region10: #{tpu_custom_call.1} parent=5 // pred_check_branch
        %183 = sbr.rel (%p180) target = $region12
      $region11: #{tpu_custom_call.1} parent=5 // pred_region
        %s184 = ssub.s32 %s18, 1
        // Predicated region
        $region13: #{tpu_custom_call.1} parent=11 // pred_check
          %p185 = pneg %p79
        $region14: #{tpu_custom_call.1} parent=11 // pred_check_branch
          %187 = sbr.rel (%p185) target = $region16
        $region15: #{tpu_custom_call.1} parent=11 // pred_region
          %s189 = ssub.s32 1024, 1024
          %190 = vsyncadd [#allocation8], %s189
          %s191 = sshll.u32 [#allocation7], 4
          %s192 = int_to_ptr.vmem [resolvable:$true] %s191
          %197 = dma.hbm_to_vmem [thread:$0]  %s1, 1024, %s192, [#allocation8], 64, 64, 4
        $region16: #{tpu_custom_call.1} parent=11 // pred_fallthru
          _
        // Predicated region
        $region17: #{tpu_custom_call.1} parent=11 // pred_check
          %p198 = pneg %p100
        $region18: #{tpu_custom_call.1} parent=11 // pred_check_branch
          %200 = sbr.rel (%p198) target = $region20
        $region19: #{tpu_custom_call.1} parent=11 // pred_region
          _
        $region20: #{tpu_custom_call.1} parent=11 // pred_fallthru
          _
        // Predicated region
        $region21: #{tpu_custom_call.1} parent=11 // pred_check
          %p201 = pneg %p121
        $region22: #{tpu_custom_call.1} parent=11 // pred_check_branch
          %203 = sbr.rel (%p201) target = $region24
        $region23: #{tpu_custom_call.1} parent=11 // pred_region
          %s205 = ssub.s32 2048, 2048
          %206 = vsyncadd [#allocation8], %s205
          %s207 = sshll.u32 [#allocation9], 4
          %s208 = int_to_ptr.vmem [resolvable:$true] %s207
          %213 = dma.hbm_to_vmem [thread:$0]  %s3, 2048, %s208, [#allocation8], 128, 128, 8
        $region24: #{tpu_custom_call.1} parent=11 // pred_fallthru
          _
        // Predicated region
        $region25: #{tpu_custom_call.1} parent=11 // pred_check
          %p214 = pneg %p142
        $region26: #{tpu_custom_call.1} parent=11 // pred_check_branch
          %216 = sbr.rel (%p214) target = $region28
        $region27: #{tpu_custom_call.1} parent=11 // pred_region
          _
        $region28: #{tpu_custom_call.1} parent=11 // pred_fallthru
          _
      $region12: #{tpu_custom_call.1} parent=5 // pred_fallthru
        _
      %p217 = scmp.lt.s32.totalorder %s18, 4
      // Predicated region
      $region29: #{tpu_custom_call.1} parent=5 // pred_check
        %p218 = pneg %p217
      $region30: #{tpu_custom_call.1} parent=5 // pred_check_branch
        %220 = sbr.rel (%p218) target = $region32
      $region31: #{tpu_custom_call.1} parent=5 // pred_region
        // Predicated region
        $region33: #{tpu_custom_call.1} parent=31 // pred_check
          %p221 = pneg %p52
        $region34: #{tpu_custom_call.1} parent=31 // pred_check_branch
          %223 = sbr.rel (%p221) target = $region36
        $region35: #{tpu_custom_call.1} parent=31 // pred_region
          #allocation12 [shape = 'u32[6]{0}', space=smem, size = 0x18, scoped, tag = 'DMA stride descriptor']
          %s224 = sand.u32 %s42, 1
          %s225 = scalar_lea.sflag [#allocation5], %s224
          %s226 = sand.u32 %s42, 1
          %s227 = smul.addr %s226, 256
          %s228 = scalar_lea.vmem [#allocation4], %s227
          %s229 = smul.u32 32, %s26
          %s230 = smul.u32 2, %s25
          %s232 = ssub.s32 4096, 4096
          %233 = vsyncadd %s225, %s232
          %s234 = smul.addr %s229, 4
          %s235 = sadd.s32 %s230, %s234
          %s236 = smul.addr %s235, 64
          %s237 = scalar_lea.hbm %s0, %s236
          %s239 = sshll.u32 1, 14
          %s240 = sxor.u32 4294967295, %s239
          %s242 = sld [smem:[#allocation0]]
          %s243 = sadd.s32 2, %s242
          %s245 = sshll.u32 7, 26
          %s246 = sxor.u32 4294967295, %s245
          %s247 = sand.u32 0, %s246
          %s248 = sshll.u32 %s243, 26
          %s249 = sor.u32 %s247, %s248
          %s250 = sshll.u32 %s228, 4
          %s251 = int_to_ptr.vmem [resolvable:$true] %s250
          %257 = sst [smem:[#allocation12]] 256
          %s258 = scalar_lea.smem [#allocation12], 1
          %259 = sst [smem:[%s258]] 128
          %s260 = scalar_lea.smem [#allocation12], 2
          %261 = sst [smem:[%s260]] 2
          %s262 = scalar_lea.smem [#allocation12], 3
          %263 = sst [smem:[%s262]] 64
          %s264 = scalar_lea.smem [#allocation12], 4
          %265 = sst [smem:[%s264]] 64
          %s266 = scalar_lea.smem [#allocation12], 5
          %267 = sst [smem:[%s266]] 4
          %269 = dma.general %s237, 4096, %s251, %s225, [#allocation11], [#allocation12], %s249, 0
        $region36: #{tpu_custom_call.1} parent=31 // pred_fallthru
          _
      $region32: #{tpu_custom_call.1} parent=5 // pred_fallthru
        _
      %p270 = scmp.le.s32.totalorder 1, %s18
      %p271 = scmp.lt.s32.totalorder %s18, 5
      %p272 = pnand %p270, %p271
      %p273 = pneg %p272
      // Predicated region
      $region37: #{tpu_custom_call.1} parent=5 // pred_check
        _
      $region38: #{tpu_custom_call.1} parent=5 // pred_check_branch
        %275 = sbr.rel (%p272) target = $region40
      $region39: #{tpu_custom_call.1} parent=5 // pred_region
        %s276 = ssub.s32 %s18, 1
        %s277 = sand.u32 %s45, 1
        %s278 = scalar_lea.sflag [#allocation5], %s277
        %s279 = sand.u32 %s45, 1
        %s280 = smul.addr %s279, 256
        %s281 = scalar_lea.vmem [#allocation4], %s280
        // Predicated region
        $region41: #{tpu_custom_call.1} parent=39 // pred_check
          %p282 = pneg %p58
        $region42: #{tpu_custom_call.1} parent=39 // pred_check_branch
          %284 = sbr.rel (%p282) target = $region44
        $region43: #{tpu_custom_call.1} parent=39 // pred_region
          %285 = dma.done %s278, 4096
        $region44: #{tpu_custom_call.1} parent=39 // pred_fallthru
          _
        // Predicated region
        $region45: #{tpu_custom_call.1} parent=39 // pred_check
          %p286 = pneg %p79
        $region46: #{tpu_custom_call.1} parent=39 // pred_check_branch
          %288 = sbr.rel (%p286) target = $region48
        $region47: #{tpu_custom_call.1} parent=39 // pred_region
          %289 = dma.done [#allocation8], 1024
        $region48: #{tpu_custom_call.1} parent=39 // pred_fallthru
          _
        // Predicated region
        $region49: #{tpu_custom_call.1} parent=39 // pred_check
          %p290 = pneg %p121
        $region50: #{tpu_custom_call.1} parent=39 // pred_check_branch
          %292 = sbr.rel (%p290) target = $region52
        $region51: #{tpu_custom_call.1} parent=39 // pred_region
          %293 = dma.done [#allocation8], 2048
        $region52: #{tpu_custom_call.1} parent=39 // pred_fallthru
          _
        %s294 = sand.u32 %s45, 1
        %s295 = scalar_lea.sflag [#allocation5], %s294
        %s296 = sand.u32 %s45, 1
        %s297 = smul.addr %s296, 256
        %s298 = scalar_lea.vmem [#allocation4], %s297
        %p299 = pneg %p58
        %p300 = pneg %p55
        %p301 = pneg %p79
        %p302 = pneg %p76
        %p303 = pneg %p100
        %p304 = pneg %p97
        %p305 = pneg %p121
        %p306 = pneg %p118
        %p307 = pneg %p142
        %p308 = pneg %p139
        %p309 = pneg %p170
        %p310 = pneg %p167
        %s311 = sand.u32 %s157, 1
        %s312 = scalar_lea.sflag [#allocation6], %s311
        %s313 = sand.u32 %s157, 1
        %s314 = smul.addr %s313, 256
        %s315 = scalar_lea.vmem [#allocation10], %s314
        %s316 = smul.u32 32, %s28
        %s317 = smul.u32 2, %s27
        %s318 = smul.u32 32, %s28
        %s319 = smul.u32 2, %s27
        %p321 = scmp.eq.s32.totalorder %s28, 0
        // Predicated region
        $region53: #{tpu_custom_call.1} parent=39 // pred_check
          %p322 = pneg %p321
        $region54: #{tpu_custom_call.1} parent=39 // pred_check_branch
          %324 = sbr.rel (%p322) target = $region56
        $region55: #{tpu_custom_call.1} parent=39 // pred_region
          %325 = vst [vmem:[#allocation3] sm:$0xff] 0.0
          %326 = vst [vmem:[#allocation3 + $0x8] sm:$0xff] 0.0
        $region56: #{tpu_custom_call.1} parent=39 // pred_fallthru
          _
        %v327 = vld [vmem:[%s281] sm:$0xf]
        %v328 = vld [vmem:[%s281 + $0x4] sm:$0xf]
        %v329 = vld [vmem:[%s281 + $0x8] sm:$0xf]
        %v330 = vld [vmem:[%s281 + $0xc] sm:$0xf]
        %v331 = vld [vmem:[%s281 + $0x10] sm:$0xf]
        %v332 = vld [vmem:[%s281 + $0x14] sm:$0xf]
        %v333 = vld [vmem:[%s281 + $0x18] sm:$0xf]
        %v334 = vld [vmem:[%s281 + $0x1c] sm:$0xf]
        %v335 = vld [vmem:[%s281 + $0x20] sm:$0xf]
        %v336 = vld [vmem:[%s281 + $0x24] sm:$0xf]
        %v337 = vld [vmem:[%s281 + $0x28] sm:$0xf]
        %v338 = vld [vmem:[%s281 + $0x2c] sm:$0xf]
        %v339 = vld [vmem:[%s281 + $0x30] sm:$0xf]
        %v340 = vld [vmem:[%s281 + $0x34] sm:$0xf]
        %v341 = vld [vmem:[%s281 + $0x38] sm:$0xf]
        %v342 = vld [vmem:[%s281 + $0x3c] sm:$0xf]
        %v343 = vld [vmem:[%s281 + $0x40] sm:$0xf]
        %v344 = vld [vmem:[%s281 + $0x44] sm:$0xf]
        %v345 = vld [vmem:[%s281 + $0x48] sm:$0xf]
        %v346 = vld [vmem:[%s281 + $0x4c] sm:$0xf]
        %v347 = vld [vmem:[%s281 + $0x50] sm:$0xf]
        %v348 = vld [vmem:[%s281 + $0x54] sm:$0xf]
        %v349 = vld [vmem:[%s281 + $0x58] sm:$0xf]
        %v350 = vld [vmem:[%s281 + $0x5c] sm:$0xf]
        %v351 = vld [vmem:[%s281 + $0x60] sm:$0xf]
        %v352 = vld [vmem:[%s281 + $0x64] sm:$0xf]
        %v353 = vld [vmem:[%s281 + $0x68] sm:$0xf]
        %v354 = vld [vmem:[%s281 + $0x6c] sm:$0xf]
        %v355 = vld [vmem:[%s281 + $0x70] sm:$0xf]
        %v356 = vld [vmem:[%s281 + $0x74] sm:$0xf]
        %v357 = vld [vmem:[%s281 + $0x78] sm:$0xf]
        %v358 = vld [vmem:[%s281 + $0x7c] sm:$0xf]
        %v359 = vld [vmem:[%s281 + $0x80] sm:$0xf]
        %v360 = vld [vmem:[%s281 + $0x84] sm:$0xf]
        %v361 = vld [vmem:[%s281 + $0x88] sm:$0xf]
        %v362 = vld [vmem:[%s281 + $0x8c] sm:$0xf]
        %v363 = vld [vmem:[%s281 + $0x90] sm:$0xf]
        %v364 = vld [vmem:[%s281 + $0x94] sm:$0xf]
        %v365 = vld [vmem:[%s281 + $0x98] sm:$0xf]
        %v366 = vld [vmem:[%s281 + $0x9c] sm:$0xf]
        %v367 = vld [vmem:[%s281 + $0xa0] sm:$0xf]
        %v368 = vld [vmem:[%s281 + $0xa4] sm:$0xf]
        %v369 = vld [vmem:[%s281 + $0xa8] sm:$0xf]
        %v370 = vld [vmem:[%s281 + $0xac] sm:$0xf]
        %v371 = vld [vmem:[%s281 + $0xb0] sm:$0xf]
        %v372 = vld [vmem:[%s281 + $0xb4] sm:$0xf]
        %v373 = vld [vmem:[%s281 + $0xb8] sm:$0xf]
        %v374 = vld [vmem:[%s281 + $0xbc] sm:$0xf]
        %v375 = vld [vmem:[%s281 + $0xc0] sm:$0xf]
        %v376 = vld [vmem:[%s281 + $0xc4] sm:$0xf]
        %v377 = vld [vmem:[%s281 + $0xc8] sm:$0xf]
        %v378 = vld [vmem:[%s281 + $0xcc] sm:$0xf]
        %v379 = vld [vmem:[%s281 + $0xd0] sm:$0xf]
        %v380 = vld [vmem:[%s281 + $0xd4] sm:$0xf]
        %v381 = vld [vmem:[%s281 + $0xd8] sm:$0xf]
        %v382 = vld [vmem:[%s281 + $0xdc] sm:$0xf]
        %v383 = vld [vmem:[%s281 + $0xe0] sm:$0xf]
        %v384 = vld [vmem:[%s281 + $0xe4] sm:$0xf]
        %v385 = vld [vmem:[%s281 + $0xe8] sm:$0xf]
        %v386 = vld [vmem:[%s281 + $0xec] sm:$0xf]
        %v387 = vld [vmem:[%s281 + $0xf0] sm:$0xf]
        %v388 = vld [vmem:[%s281 + $0xf4] sm:$0xf]
        %v389 = vld [vmem:[%s281 + $0xf8] sm:$0xf]
        %v390 = vld [vmem:[%s281 + $0xfc] sm:$0xf]
        %v391 = vld [vmem:[#allocation7] sm:$0xf]
        %v392 = vld [vmem:[#allocation7 + $0x4] sm:$0xf]
        %v393 = vld [vmem:[#allocation7 + $0x8] sm:$0xf]
        %v394 = vld [vmem:[#allocation7 + $0xc] sm:$0xf]
        %v395 = vld [vmem:[#allocation7 + $0x10] sm:$0xf]
        %v396 = vld [vmem:[#allocation7 + $0x14] sm:$0xf]
        %v397 = vld [vmem:[#allocation7 + $0x18] sm:$0xf]
        %v398 = vld [vmem:[#allocation7 + $0x1c] sm:$0xf]
        %v399 = vld [vmem:[#allocation7 + $0x20] sm:$0xf]
        %v400 = vld [vmem:[#allocation7 + $0x24] sm:$0xf]
        %v401 = vld [vmem:[#allocation7 + $0x28] sm:$0xf]
        %v402 = vld [vmem:[#allocation7 + $0x2c] sm:$0xf]
        %v403 = vld [vmem:[#allocation7 + $0x30] sm:$0xf]
        %v404 = vld [vmem:[#allocation7 + $0x34] sm:$0xf]
        %v405 = vld [vmem:[#allocation7 + $0x38] sm:$0xf]
        %v406 = vld [vmem:[#allocation7 + $0x3c] sm:$0xf]
        %v407 = vld [vmem:[%s2] sm:$0x1]
        %v409 = vlaneseq
        %v410 = vshrl.u32 %v409, 7
        %v411 = vsub.s32 0, %v410
        %v412 = vrot.slane %v407, %v411
        %v478 = vunpack.c.l.b16 %v327
        %v479 = vunpack.c.l.b16 %v328
        %v480 = vunpack.c.l.b16 %v329
        %v481 = vunpack.c.l.b16 %v330
        %v482 = vunpack.c.l.b16 %v331
        %v483 = vunpack.c.l.b16 %v332
        %v484 = vunpack.c.l.b16 %v333
        %v485 = vunpack.c.l.b16 %v334
        %v486 = vunpack.c.l.b16 %v335
        %v487 = vunpack.c.l.b16 %v336
        %v488 = vunpack.c.l.b16 %v337
        %v489 = vunpack.c.l.b16 %v338
        %v490 = vunpack.c.l.b16 %v339
        %v491 = vunpack.c.l.b16 %v340
        %v492 = vunpack.c.l.b16 %v341
        %v493 = vunpack.c.l.b16 %v342
        %v494 = vunpack.c.l.b16 %v343
        %v495 = vunpack.c.l.b16 %v344
        %v496 = vunpack.c.l.b16 %v345
        %v497 = vunpack.c.l.b16 %v346
        %v498 = vunpack.c.l.b16 %v347
        %v499 = vunpack.c.l.b16 %v348
        %v500 = vunpack.c.l.b16 %v349
        %v501 = vunpack.c.l.b16 %v350
        %v502 = vunpack.c.l.b16 %v351
        %v503 = vunpack.c.l.b16 %v352
        %v504 = vunpack.c.l.b16 %v353
        %v505 = vunpack.c.l.b16 %v354
        %v506 = vunpack.c.l.b16 %v355
        %v507 = vunpack.c.l.b16 %v356
        %v508 = vunpack.c.l.b16 %v357
        %v509 = vunpack.c.l.b16 %v358
        %v510 = vunpack.c.l.b16 %v359
        %v511 = vunpack.c.l.b16 %v360
        %v512 = vunpack.c.l.b16 %v361
        %v513 = vunpack.c.l.b16 %v362
        %v514 = vunpack.c.l.b16 %v363
        %v515 = vunpack.c.l.b16 %v364
        %v516 = vunpack.c.l.b16 %v365
        %v517 = vunpack.c.l.b16 %v366
        %v518 = vunpack.c.l.b16 %v367
        %v519 = vunpack.c.l.b16 %v368
        %v520 = vunpack.c.l.b16 %v369
        %v521 = vunpack.c.l.b16 %v370
        %v522 = vunpack.c.l.b16 %v371
        %v523 = vunpack.c.l.b16 %v372
        %v524 = vunpack.c.l.b16 %v373
        %v525 = vunpack.c.l.b16 %v374
        %v526 = vunpack.c.l.b16 %v375
        %v527 = vunpack.c.l.b16 %v376
        %v528 = vunpack.c.l.b16 %v377
        %v529 = vunpack.c.l.b16 %v378
        %v530 = vunpack.c.l.b16 %v379
        %v531 = vunpack.c.l.b16 %v380
        %v532 = vunpack.c.l.b16 %v381
        %v533 = vunpack.c.l.b16 %v382
        %v534 = vunpack.c.l.b16 %v383
        %v535 = vunpack.c.l.b16 %v384
        %v536 = vunpack.c.l.b16 %v385
        %v537 = vunpack.c.l.b16 %v386
        %v538 = vunpack.c.l.b16 %v387
        %v539 = vunpack.c.l.b16 %v388
        %v540 = vunpack.c.l.b16 %v389
        %v541 = vunpack.c.l.b16 %v390
        %v542 = vpack.c.b16 %v479, %v478
        %v543 = vpack.c.b16 %v481, %v480
        %v544 = vpack.c.b16 %v483, %v482
        %v545 = vpack.c.b16 %v485, %v484
        %v546 = vpack.c.b16 %v487, %v486
        %v547 = vpack.c.b16 %v489, %v488
        %v548 = vpack.c.b16 %v491, %v490
        %v549 = vpack.c.b16 %v493, %v492
        %v550 = vpack.c.b16 %v495, %v494
        %v551 = vpack.c.b16 %v497, %v496
        %v552 = vpack.c.b16 %v499, %v498
        %v553 = vpack.c.b16 %v501, %v500
        %v554 = vpack.c.b16 %v503, %v502
        %v555 = vpack.c.b16 %v505, %v504
        %v556 = vpack.c.b16 %v507, %v506
        %v557 = vpack.c.b16 %v509, %v508
        %v558 = vpack.c.b16 %v511, %v510
        %v559 = vpack.c.b16 %v513, %v512
        %v560 = vpack.c.b16 %v515, %v514
        %v561 = vpack.c.b16 %v517, %v516
        %v562 = vpack.c.b16 %v519, %v518
        %v563 = vpack.c.b16 %v521, %v520
        %v564 = vpack.c.b16 %v523, %v522
        %v565 = vpack.c.b16 %v525, %v524
        %v566 = vpack.c.b16 %v527, %v526
        %v567 = vpack.c.b16 %v529, %v528
        %v568 = vpack.c.b16 %v531, %v530
        %v569 = vpack.c.b16 %v533, %v532
        %v570 = vpack.c.b16 %v535, %v534
        %v571 = vpack.c.b16 %v537, %v536
        %v572 = vpack.c.b16 %v539, %v538
        %v573 = vpack.c.b16 %v541, %v540
        %v622 = vunpack.c.l.b16 %v391
        %v623 = vunpack.c.l.b16 %v392
        %v624 = vunpack.c.l.b16 %v393
        %v625 = vunpack.c.l.b16 %v394
        %v626 = vunpack.c.l.b16 %v395
        %v627 = vunpack.c.l.b16 %v396
        %v628 = vunpack.c.l.b16 %v397
        %v629 = vunpack.c.l.b16 %v398
        %v630 = vunpack.c.l.b16 %v399
        %v631 = vunpack.c.l.b16 %v400
        %v632 = vunpack.c.l.b16 %v401
        %v633 = vunpack.c.l.b16 %v402
        %v634 = vunpack.c.l.b16 %v403
        %v635 = vunpack.c.l.b16 %v404
        %v636 = vunpack.c.l.b16 %v405
        %v637 = vunpack.c.l.b16 %v406
        %v638 = vpack.c.b16 %v623, %v622
        %v639 = vpack.c.b16 %v625, %v624
        %v640 = vpack.c.b16 %v627, %v626
        %v641 = vpack.c.b16 %v629, %v628
        %v642 = vpack.c.b16 %v631, %v630
        %v643 = vpack.c.b16 %v633, %v632
        %v644 = vpack.c.b16 %v635, %v634
        %v645 = vpack.c.b16 %v637, %v636
        %654 = vmatprep.subr.bf16.mxu0 0
        %655 = vmatpush1.bf16.msra.mxu0 %v638
        %656 = vmatprep.subr.bf16.mxu0 0
        %657 = vmatpush1.bf16.msra.mxu0 %v639
        %658 = vmatprep.subr.bf16.mxu0 0
        %659 = vmatpush1.bf16.msra.mxu0 %v640
        %660 = vmatprep.subr.bf16.mxu0 0
        %661 = vmatpush1.bf16.msra.mxu0 %v641
        %662 = vmatprep.subr.bf16.mxu0 0
        %663 = vmatpush1.bf16.msra.mxu0 %v642
        %664 = vmatprep.subr.bf16.mxu0 0
        %665 = vmatpush1.bf16.msra.mxu0 %v643
        %666 = vmatprep.subr.bf16.mxu0 0
        %667 = vmatpush1.bf16.msra.mxu0 %v644
        %668 = vmatprep.subr.bf16.mxu0 0
        %669 = vmatpush1.bf16.msra.mxu0 %v645
        %670 = vmatprep.subr.bf16.mxu0 0
        %671 = vmatpush1.bf16.msra.mxu0 0
        %672 = vmatprep.subr.bf16.mxu0 0
        %673 = vmatpush1.bf16.msra.mxu0 0
        %674 = vmatprep.subr.bf16.mxu0 0
        %675 = vmatpush1.bf16.msra.mxu0 0
        %676 = vmatprep.subr.bf16.mxu0 0
        %677 = vmatpush1.bf16.msra.mxu0 0
        %678 = vmatprep.subr.bf16.mxu0 0
        %679 = vmatpush1.bf16.msra.mxu0 0
        %680 = vmatprep.subr.bf16.mxu0 0
        %681 = vmatpush1.bf16.msra.mxu0 0
        %682 = vmatprep.subr.bf16.mxu0 0
        %683 = vmatpush1.bf16.msra.mxu0 0
        %684 = vmatprep.subr.bf16.mxu0 0
        %685 = vmatpush1.bf16.msra.mxu0 0
        %686 = vmatprep.mubr.bf16.mxu0 0
        %687 = vmatmul.mubr.bf16.gmra.mrb[0].mxu0 %v542
        %v688 = vpop.f32.mrb[0].mxu0
        %v689 = vadd.f32 %v412, %v688
        %v690 = vpop.f32.mrb[0].mxu0
        %v691 = vpop.f32.mrb[0].mxu0
        %v692 = vadd.f32 %v412, %v691
        %v693 = vpop.f32.mrb[0].mxu0
        %694 = vmatprep.mubr.bf16.mxu0 0
        %695 = vmatmul.mubr.bf16.gmra.mrb[0].mxu0 %v543
        %v696 = vpop.f32.mrb[0].mxu0
        %v697 = vadd.f32 %v412, %v696
        %v698 = vpop.f32.mrb[0].mxu0
        %v699 = vpop.f32.mrb[0].mxu0
        %v700 = vadd.f32 %v412, %v699
        %v701 = vpop.f32.mrb[0].mxu0
        %702 = vmatprep.mubr.bf16.mxu0 0
        %703 = vmatmul.mubr.bf16.gmra.mrb[0].mxu0 %v544
        %v704 = vpop.f32.mrb[0].mxu0
        %v705 = vadd.f32 %v412, %v704
        %v706 = vpop.f32.mrb[0].mxu0
        %v707 = vpop.f32.mrb[0].mxu0
        %v708 = vadd.f32 %v412, %v707
        %v709 = vpop.f32.mrb[0].mxu0
        %710 = vmatprep.mubr.bf16.mxu0 0
        %711 = vmatmul.mubr.bf16.gmra.mrb[0].mxu0 %v545
        %v712 = vpop.f32.mrb[0].mxu0
        %v713 = vadd.f32 %v412, %v712
        %v714 = vpop.f32.mrb[0].mxu0
        %v715 = vpop.f32.mrb[0].mxu0
        %v716 = vadd.f32 %v412, %v715
        %v717 = vpop.f32.mrb[0].mxu0
        %718 = vmatprep.mubr.bf16.mxu0 0
        %719 = vmatmul.mubr.bf16.gmra.mrb[0].mxu0 %v546
        %v720 = vpop.f32.mrb[0].mxu0
        %v721 = vadd.f32 %v412, %v720
        %v722 = vpop.f32.mrb[0].mxu0
        %v723 = vpop.f32.mrb[0].mxu0
        %v724 = vadd.f32 %v412, %v723
        %v725 = vpop.f32.mrb[0].mxu0
        %726 = vmatprep.mubr.bf16.mxu0 0
        %727 = vmatmul.mubr.bf16.gmra.mrb[0].mxu0 %v547
        %v728 = vpop.f32.mrb[0].mxu0
        %v729 = vadd.f32 %v412, %v728
        %v730 = vpop.f32.mrb[0].mxu0
        %v731 = vpop.f32.mrb[0].mxu0
        %v732 = vadd.f32 %v412, %v731
        %v733 = vpop.f32.mrb[0].mxu0
        %734 = vmatprep.mubr.bf16.mxu0 0
        %735 = vmatmul.mubr.bf16.gmra.mrb[0].mxu0 %v548
        %v736 = vpop.f32.mrb[0].mxu0
        %v737 = vadd.f32 %v412, %v736
        %v738 = vpop.f32.mrb[0].mxu0
        %v739 = vpop.f32.mrb[0].mxu0
        %v740 = vadd.f32 %v412, %v739
        %v741 = vpop.f32.mrb[0].mxu0
        %742 = vmatprep.mubr.bf16.mxu0 0
        %743 = vmatmul.mubr.bf16.gmra.mrb[0].mxu0 %v549
        %v744 = vpop.f32.mrb[0].mxu0
        %v745 = vadd.f32 %v412, %v744
        %v746 = vpop.f32.mrb[0].mxu0
        %v747 = vpop.f32.mrb[0].mxu0
        %v748 = vadd.f32 %v412, %v747
        %v749 = vpop.f32.mrb[0].mxu0
        %750 = vmatprep.mubr.bf16.mxu0 0
        %751 = vmatmul.mubr.bf16.gmra.mrb[0].mxu0 %v550
        %v752 = vpop.f32.mrb[0].mxu0
        %v753 = vadd.f32 %v412, %v752
        %v754 = vpop.f32.mrb[0].mxu0
        %v755 = vpop.f32.mrb[0].mxu0
        %v756 = vadd.f32 %v412, %v755
        %v757 = vpop.f32.mrb[0].mxu0
        %758 = vmatprep.mubr.bf16.mxu0 0
        %759 = vmatmul.mubr.bf16.gmra.mrb[0].mxu0 %v551
        %v760 = vpop.f32.mrb[0].mxu0
        %v761 = vadd.f32 %v412, %v760
        %v762 = vpop.f32.mrb[0].mxu0
        %v763 = vpop.f32.mrb[0].mxu0
        %v764 = vadd.f32 %v412, %v763
        %v765 = vpop.f32.mrb[0].mxu0
        %766 = vmatprep.mubr.bf16.mxu0 0
        %767 = vmatmul.mubr.bf16.gmra.mrb[0].mxu0 %v552
        %v768 = vpop.f32.mrb[0].mxu0
        %v769 = vadd.f32 %v412, %v768
        %v770 = vpop.f32.mrb[0].mxu0
        %v771 = vpop.f32.mrb[0].mxu0
        %v772 = vadd.f32 %v412, %v771
        %v773 = vpop.f32.mrb[0].mxu0
        %774 = vmatprep.mubr.bf16.mxu0 0
        %775 = vmatmul.mubr.bf16.gmra.mrb[0].mxu0 %v553
        %v776 = vpop.f32.mrb[0].mxu0
        %v777 = vadd.f32 %v412, %v776
        %v778 = vpop.f32.mrb[0].mxu0
        %v779 = vpop.f32.mrb[0].mxu0
        %v780 = vadd.f32 %v412, %v779
        %v781 = vpop.f32.mrb[0].mxu0
        %782 = vmatprep.mubr.bf16.mxu0 0
        %783 = vmatmul.mubr.bf16.gmra.mrb[0].mxu0 %v554
        %v784 = vpop.f32.mrb[0].mxu0
        %v785 = vadd.f32 %v412, %v784
        %v786 = vpop.f32.mrb[0].mxu0
        %v787 = vpop.f32.mrb[0].mxu0
        %v788 = vadd.f32 %v412, %v787
        %v789 = vpop.f32.mrb[0].mxu0
        %790 = vmatprep.mubr.bf16.mxu0 0
        %791 = vmatmul.mubr.bf16.gmra.mrb[0].mxu0 %v555
        %v792 = vpop.f32.mrb[0].mxu0
        %v793 = vadd.f32 %v412, %v792
        %v794 = vpop.f32.mrb[0].mxu0
        %v795 = vpop.f32.mrb[0].mxu0
        %v796 = vadd.f32 %v412, %v795
        %v797 = vpop.f32.mrb[0].mxu0
        %798 = vmatprep.mubr.bf16.mxu0 0
        %799 = vmatmul.mubr.bf16.gmra.mrb[0].mxu0 %v556
        %v800 = vpop.f32.mrb[0].mxu0
        %v801 = vadd.f32 %v412, %v800
        %v802 = vpop.f32.mrb[0].mxu0
        %v803 = vpop.f32.mrb[0].mxu0
        %v804 = vadd.f32 %v412, %v803
        %v805 = vpop.f32.mrb[0].mxu0
        %806 = vmatprep.mubr.bf16.mxu0 0
        %807 = vmatmul.mubr.bf16.gmra.mrb[0].mxu0 %v557
        %v808 = vpop.f32.mrb[0].mxu0
        %v809 = vadd.f32 %v412, %v808
        %v810 = vpop.f32.mrb[0].mxu0
        %v811 = vpop.f32.mrb[0].mxu0
        %v812 = vadd.f32 %v412, %v811
        %v813 = vpop.f32.mrb[0].mxu0
        %814 = vmatprep.mubr.bf16.mxu0 0
        %815 = vmatmul.mubr.bf16.gmra.mrb[0].mxu0 %v558
        %v816 = vpop.f32.mrb[0].mxu0
        %v817 = vadd.f32 %v412, %v816
        %v818 = vpop.f32.mrb[0].mxu0
        %v819 = vpop.f32.mrb[0].mxu0
        %v820 = vadd.f32 %v412, %v819
        %v821 = vpop.f32.mrb[0].mxu0
        %822 = vmatprep.mubr.bf16.mxu0 0
        %823 = vmatmul.mubr.bf16.gmra.mrb[0].mxu0 %v559
        %v824 = vpop.f32.mrb[0].mxu0
        %v825 = vadd.f32 %v412, %v824
        %v826 = vpop.f32.mrb[0].mxu0
        %v827 = vpop.f32.mrb[0].mxu0
        %v828 = vadd.f32 %v412, %v827
        %v829 = vpop.f32.mrb[0].mxu0
        %830 = vmatprep.mubr.bf16.mxu0 0
        %831 = vmatmul.mubr.bf16.gmra.mrb[0].mxu0 %v560
        %v832 = vpop.f32.mrb[0].mxu0
        %v833 = vadd.f32 %v412, %v832
        %v834 = vpop.f32.mrb[0].mxu0
        %v835 = vpop.f32.mrb[0].mxu0
        %v836 = vadd.f32 %v412, %v835
        %v837 = vpop.f32.mrb[0].mxu0
        %838 = vmatprep.mubr.bf16.mxu0 0
        %839 = vmatmul.mubr.bf16.gmra.mrb[0].mxu0 %v561
        %v840 = vpop.f32.mrb[0].mxu0
        %v841 = vadd.f32 %v412, %v840
        %v842 = vpop.f32.mrb[0].mxu0
        %v843 = vpop.f32.mrb[0].mxu0
        %v844 = vadd.f32 %v412, %v843
        %v845 = vpop.f32.mrb[0].mxu0
        %846 = vmatprep.mubr.bf16.mxu0 0
        %847 = vmatmul.mubr.bf16.gmra.mrb[0].mxu0 %v562
        %v848 = vpop.f32.mrb[0].mxu0
        %v849 = vadd.f32 %v412, %v848
        %v850 = vpop.f32.mrb[0].mxu0
        %v851 = vpop.f32.mrb[0].mxu0
        %v852 = vadd.f32 %v412, %v851
        %v853 = vpop.f32.mrb[0].mxu0
        %854 = vmatprep.mubr.bf16.mxu0 0
        %855 = vmatmul.mubr.bf16.gmra.mrb[0].mxu0 %v563
        %v856 = vpop.f32.mrb[0].mxu0
        %v857 = vadd.f32 %v412, %v856
        %v858 = vpop.f32.mrb[0].mxu0
        %v859 = vpop.f32.mrb[0].mxu0
        %v860 = vadd.f32 %v412, %v859
        %v861 = vpop.f32.mrb[0].mxu0
        %862 = vmatprep.mubr.bf16.mxu0 0
        %863 = vmatmul.mubr.bf16.gmra.mrb[0].mxu0 %v564
        %v864 = vpop.f32.mrb[0].mxu0
        %v865 = vadd.f32 %v412, %v864
        %v866 = vpop.f32.mrb[0].mxu0
        %v867 = vpop.f32.mrb[0].mxu0
        %v868 = vadd.f32 %v412, %v867
        %v869 = vpop.f32.mrb[0].mxu0
        %870 = vmatprep.mubr.bf16.mxu0 0
        %871 = vmatmul.mubr.bf16.gmra.mrb[0].mxu0 %v565
        %v872 = vpop.f32.mrb[0].mxu0
        %v873 = vadd.f32 %v412, %v872
        %v874 = vpop.f32.mrb[0].mxu0
        %v875 = vpop.f32.mrb[0].mxu0
        %v876 = vadd.f32 %v412, %v875
        %v877 = vpop.f32.mrb[0].mxu0
        %878 = vmatprep.mubr.bf16.mxu0 0
        %879 = vmatmul.mubr.bf16.gmra.mrb[0].mxu0 %v566
        %v880 = vpop.f32.mrb[0].mxu0
        %v881 = vadd.f32 %v412, %v880
        %v882 = vpop.f32.mrb[0].mxu0
        %v883 = vpop.f32.mrb[0].mxu0
        %v884 = vadd.f32 %v412, %v883
        %v885 = vpop.f32.mrb[0].mxu0
        %886 = vmatprep.mubr.bf16.mxu0 0
        %887 = vmatmul.mubr.bf16.gmra.mrb[0].mxu0 %v567
        %v888 = vpop.f32.mrb[0].mxu0
        %v889 = vadd.f32 %v412, %v888
        %v890 = vpop.f32.mrb[0].mxu0
        %v891 = vpop.f32.mrb[0].mxu0
        %v892 = vadd.f32 %v412, %v891
        %v893 = vpop.f32.mrb[0].mxu0
        %894 = vmatprep.mubr.bf16.mxu0 0
        %895 = vmatmul.mubr.bf16.gmra.mrb[0].mxu0 %v568
        %v896 = vpop.f32.mrb[0].mxu0
        %v897 = vadd.f32 %v412, %v896
        %v898 = vpop.f32.mrb[0].mxu0
        %v899 = vpop.f32.mrb[0].mxu0
        %v900 = vadd.f32 %v412, %v899
        %v901 = vpop.f32.mrb[0].mxu0
        %902 = vmatprep.mubr.bf16.mxu0 0
        %903 = vmatmul.mubr.bf16.gmra.mrb[0].mxu0 %v569
        %v904 = vpop.f32.mrb[0].mxu0
        %v905 = vadd.f32 %v412, %v904
        %v906 = vpop.f32.mrb[0].mxu0
        %v907 = vpop.f32.mrb[0].mxu0
        %v908 = vadd.f32 %v412, %v907
        %v909 = vpop.f32.mrb[0].mxu0
        %910 = vmatprep.mubr.bf16.mxu0 0
        %911 = vmatmul.mubr.bf16.gmra.mrb[0].mxu0 %v570
        %v912 = vpop.f32.mrb[0].mxu0
        %v913 = vadd.f32 %v412, %v912
        %v914 = vpop.f32.mrb[0].mxu0
        %v915 = vpop.f32.mrb[0].mxu0
        %v916 = vadd.f32 %v412, %v915
        %v917 = vpop.f32.mrb[0].mxu0
        %918 = vmatprep.mubr.bf16.mxu0 0
        %919 = vmatmul.mubr.bf16.gmra.mrb[0].mxu0 %v571
        %v920 = vpop.f32.mrb[0].mxu0
        %v921 = vadd.f32 %v412, %v920
        %v922 = vpop.f32.mrb[0].mxu0
        %v923 = vpop.f32.mrb[0].mxu0
        %v924 = vadd.f32 %v412, %v923
        %v925 = vpop.f32.mrb[0].mxu0
        %926 = vmatprep.mubr.bf16.mxu0 0
        %927 = vmatmul.mubr.bf16.gmra.mrb[0].mxu0 %v572
        %v928 = vpop.f32.mrb[0].mxu0
        %v929 = vadd.f32 %v412, %v928
        %v930 = vpop.f32.mrb[0].mxu0
        %v931 = vpop.f32.mrb[0].mxu0
        %v932 = vadd.f32 %v412, %v931
        %v933 = vpop.f32.mrb[0].mxu0
        %934 = vmatprep.mubr.bf16.mxu0 0
        %935 = vmatmul.mubr.bf16.gmra.mrb[0].mxu0 %v573
        %v936 = vpop.f32.mrb[0].mxu0
        %v937 = vadd.f32 %v412, %v936
        %v938 = vpop.f32.mrb[0].mxu0
        %v939 = vpop.f32.mrb[0].mxu0
        %v940 = vadd.f32 %v412, %v939
        %v941 = vpop.f32.mrb[0].mxu0
        %942 = vdwg.mxu0
        %943 = vst [vmem:[#allocation2] sm:$0xff] %v689
        %944 = vst [vmem:[#allocation2 + $0x8] sm:$0xff] %v692
        %945 = vst [vmem:[#allocation2 + $0x10] sm:$0xff] %v697
        %946 = vst [vmem:[#allocation2 + $0x18] sm:$0xff] %v700
        %947 = vst [vmem:[#allocation2 + $0x20] sm:$0xff] %v705
        %948 = vst [vmem:[#allocation2 + $0x28] sm:$0xff] %v708
        %949 = vst [vmem:[#allocation2 + $0x30] sm:$0xff] %v713
        %950 = vst [vmem:[#allocation2 + $0x38] sm:$0xff] %v716
        %951 = vst [vmem:[#allocation2 + $0x40] sm:$0xff] %v721
        %952 = vst [vmem:[#allocation2 + $0x48] sm:$0xff] %v724
        %953 = vst [vmem:[#allocation2 + $0x50] sm:$0xff] %v729
        %954 = vst [vmem:[#allocation2 + $0x58] sm:$0xff] %v732
        %955 = vst [vmem:[#allocation2 + $0x60] sm:$0xff] %v737
        %956 = vst [vmem:[#allocation2 + $0x68] sm:$0xff] %v740
        %957 = vst [vmem:[#allocation2 + $0x70] sm:$0xff] %v745
        %958 = vst [vmem:[#allocation2 + $0x78] sm:$0xff] %v748
        %959 = vst [vmem:[#allocation2 + $0x80] sm:$0xff] %v753
        %960 = vst [vmem:[#allocation2 + $0x88] sm:$0xff] %v756
        %961 = vst [vmem:[#allocation2 + $0x90] sm:$0xff] %v761
        %962 = vst [vmem:[#allocation2 + $0x98] sm:$0xff] %v764
        %963 = vst [vmem:[#allocation2 + $0xa0] sm:$0xff] %v769
        %964 = vst [vmem:[#allocation2 + $0xa8] sm:$0xff] %v772
        %965 = vst [vmem:[#allocation2 + $0xb0] sm:$0xff] %v777
        %966 = vst [vmem:[#allocation2 + $0xb8] sm:$0xff] %v780
        %967 = vst [vmem:[#allocation2 + $0xc0] sm:$0xff] %v785
        %968 = vst [vmem:[#allocation2 + $0xc8] sm:$0xff] %v788
        %969 = vst [vmem:[#allocation2 + $0xd0] sm:$0xff] %v793
        %970 = vst [vmem:[#allocation2 + $0xd8] sm:$0xff] %v796
        %971 = vst [vmem:[#allocation2 + $0xe0] sm:$0xff] %v801
        %972 = vst [vmem:[#allocation2 + $0xe8] sm:$0xff] %v804
        %973 = vst [vmem:[#allocation2 + $0xf0] sm:$0xff] %v809
        %974 = vst [vmem:[#allocation2 + $0xf8] sm:$0xff] %v812
        %975 = vst [vmem:[#allocation2 + $0x100] sm:$0xff] %v817
        %976 = vst [vmem:[#allocation2 + $0x108] sm:$0xff] %v820
        %977 = vst [vmem:[#allocation2 + $0x110] sm:$0xff] %v825
        %978 = vst [vmem:[#allocation2 + $0x118] sm:$0xff] %v828
        %979 = vst [vmem:[#allocation2 + $0x120] sm:$0xff] %v833
        %980 = vst [vmem:[#allocation2 + $0x128] sm:$0xff] %v836
        %981 = vst [vmem:[#allocation2 + $0x130] sm:$0xff] %v841
        %982 = vst [vmem:[#allocation2 + $0x138] sm:$0xff] %v844
        %983 = vst [vmem:[#allocation2 + $0x140] sm:$0xff] %v849
        %984 = vst [vmem:[#allocation2 + $0x148] sm:$0xff] %v852
        %985 = vst [vmem:[#allocation2 + $0x150] sm:$0xff] %v857
        %986 = vst [vmem:[#allocation2 + $0x158] sm:$0xff] %v860
        %987 = vst [vmem:[#allocation2 + $0x160] sm:$0xff] %v865
        %988 = vst [vmem:[#allocation2 + $0x168] sm:$0xff] %v868
        %989 = vst [vmem:[#allocation2 + $0x170] sm:$0xff] %v873
        %990 = vst [vmem:[#allocation2 + $0x178] sm:$0xff] %v876
        %991 = vst [vmem:[#allocation2 + $0x180] sm:$0xff] %v881
        %992 = vst [vmem:[#allocation2 + $0x188] sm:$0xff] %v884
        %993 = vst [vmem:[#allocation2 + $0x190] sm:$0xff] %v889
        %994 = vst [vmem:[#allocation2 + $0x198] sm:$0xff] %v892
        %995 = vst [vmem:[#allocation2 + $0x1a0] sm:$0xff] %v897
        %996 = vst [vmem:[#allocation2 + $0x1a8] sm:$0xff] %v900
        %997 = vst [vmem:[#allocation2 + $0x1b0] sm:$0xff] %v905
        %998 = vst [vmem:[#allocation2 + $0x1b8] sm:$0xff] %v908
        %999 = vst [vmem:[#allocation2 + $0x1c0] sm:$0xff] %v913
        %1000 = vst [vmem:[#allocation2 + $0x1c8] sm:$0xff] %v916
        %1001 = vst [vmem:[#allocation2 + $0x1d0] sm:$0xff] %v921
        %1002 = vst [vmem:[#allocation2 + $0x1d8] sm:$0xff] %v924
        %1003 = vst [vmem:[#allocation2 + $0x1e0] sm:$0xff] %v929
        %1004 = vst [vmem:[#allocation2 + $0x1e8] sm:$0xff] %v932
        %1005 = vst [vmem:[#allocation2 + $0x1f0] sm:$0xff] %v937
        %1006 = vst [vmem:[#allocation2 + $0x1f8] sm:$0xff] %v940
        %v1007 = vld [vmem:[#allocation9] sm:$0xff]
        %v1008 = vld [vmem:[#allocation9 + $0x8] sm:$0xff]
        %v1009 = vld [vmem:[#allocation9 + $0x10] sm:$0xff]
        %v1010 = vld [vmem:[#allocation9 + $0x18] sm:$0xff]
        %v1011 = vld [vmem:[#allocation9 + $0x20] sm:$0xff]
        %v1012 = vld [vmem:[#allocation9 + $0x28] sm:$0xff]
        %v1013 = vld [vmem:[#allocation9 + $0x30] sm:$0xff]
        %v1014 = vld [vmem:[#allocation9 + $0x38] sm:$0xff]
        %v1015 = vld [vmem:[#allocation9 + $0x40] sm:$0xff]
        %v1016 = vld [vmem:[#allocation9 + $0x48] sm:$0xff]
        %v1017 = vld [vmem:[#allocation9 + $0x50] sm:$0xff]
        %v1018 = vld [vmem:[#allocation9 + $0x58] sm:$0xff]
        %v1019 = vld [vmem:[#allocation9 + $0x60] sm:$0xff]
        %v1020 = vld [vmem:[#allocation9 + $0x68] sm:$0xff]
        %v1021 = vld [vmem:[#allocation9 + $0x70] sm:$0xff]
        %v1022 = vld [vmem:[#allocation9 + $0x78] sm:$0xff]
        %v1023 = vld [vmem:[%s4] sm:$0x1]
        %v1025 = vlaneseq
        %v1026 = vshrl.u32 %v1025, 7
        %v1027 = vsub.s32 0, %v1026
        %v1028 = vrot.slane %v1023, %v1027
        %v1030 = vld [vmem:[#allocation3] sm:$0xff]
        %v1031 = vld [vmem:[#allocation3 + $0x8] sm:$0xff]
        %v1032 = vld [vmem:[#allocation2] sm:$0xff]
        %v1033 = vld [vmem:[#allocation2 + $0x8] sm:$0xff]
        %v1034 = vpack.c.bf16 %v1031, %v1030
        %v1051 = vunpack.c.l.b16 %v1007
        %v1052 = vunpack.c.h.b16 %v1007
        %v1053 = vunpack.c.l.b16 %v1008
        %v1054 = vunpack.c.h.b16 %v1008
        %v1055 = vunpack.c.l.b16 %v1009
        %v1056 = vunpack.c.h.b16 %v1009
        %v1057 = vunpack.c.l.b16 %v1010
        %v1058 = vunpack.c.h.b16 %v1010
        %v1059 = vunpack.c.l.b16 %v1011
        %v1060 = vunpack.c.h.b16 %v1011
        %v1061 = vunpack.c.l.b16 %v1012
        %v1062 = vunpack.c.h.b16 %v1012
        %v1063 = vunpack.c.l.b16 %v1013
        %v1064 = vunpack.c.h.b16 %v1013
        %v1065 = vunpack.c.l.b16 %v1014
        %v1066 = vunpack.c.h.b16 %v1014
        %v1067 = vunpack.c.l.b16 %v1015
        %v1068 = vunpack.c.h.b16 %v1015
        %v1069 = vunpack.c.l.b16 %v1016
        %v1070 = vunpack.c.h.b16 %v1016
        %v1071 = vunpack.c.l.b16 %v1017
        %v1072 = vunpack.c.h.b16 %v1017
        %v1073 = vunpack.c.l.b16 %v1018
        %v1074 = vunpack.c.h.b16 %v1018
        %v1075 = vunpack.c.l.b16 %v1019
        %v1076 = vunpack.c.h.b16 %v1019
        %v1077 = vunpack.c.l.b16 %v1020
        %v1078 = vunpack.c.h.b16 %v1020
        %v1079 = vunpack.c.l.b16 %v1021
        %v1080 = vunpack.c.h.b16 %v1021
        %v1081 = vunpack.c.l.b16 %v1022
        %v1082 = vunpack.c.h.b16 %v1022
        %v1083 = vpack.c.b16 %v1053, %v1051
        %v1084 = vpack.c.b16 %v1054, %v1052
        %v1085 = vpack.c.b16 %v1057, %v1055
        %v1086 = vpack.c.b16 %v1058, %v1056
        %v1087 = vpack.c.b16 %v1061, %v1059
        %v1088 = vpack.c.b16 %v1062, %v1060
        %v1089 = vpack.c.b16 %v1065, %v1063
        %v1090 = vpack.c.b16 %v1066, %v1064
        %v1091 = vpack.c.b16 %v1069, %v1067
        %v1092 = vpack.c.b16 %v1070, %v1068
        %v1093 = vpack.c.b16 %v1073, %v1071
        %v1094 = vpack.c.b16 %v1074, %v1072
        %v1095 = vpack.c.b16 %v1077, %v1075
        %v1096 = vpack.c.b16 %v1078, %v1076
        %v1097 = vpack.c.b16 %v1081, %v1079
        %v1098 = vpack.c.b16 %v1082, %v1080
        %1115 = vmatprep.subr.bf16.mxu0 %v1084
        %1116 = vmatpush1.bf16.msra.mxu0 %v1083
        %1117 = vmatprep.subr.bf16.mxu0 %v1086
        %1118 = vmatpush1.bf16.msra.mxu0 %v1085
        %1119 = vmatprep.subr.bf16.mxu0 %v1088
        %1120 = vmatpush1.bf16.msra.mxu0 %v1087
        %1121 = vmatprep.subr.bf16.mxu0 %v1090
        %1122 = vmatpush1.bf16.msra.mxu0 %v1089
        %1123 = vmatprep.subr.bf16.mxu0 %v1092
        %1124 = vmatpush1.bf16.msra.mxu0 %v1091
        %1125 = vmatprep.subr.bf16.mxu0 %v1094
        %1126 = vmatpush1.bf16.msra.mxu0 %v1093
        %1127 = vmatprep.subr.bf16.mxu0 %v1096
        %1128 = vmatpush1.bf16.msra.mxu0 %v1095
        %1129 = vmatprep.subr.bf16.mxu0 %v1098
        %1130 = vmatpush1.bf16.msra.mxu0 %v1097
        %1131 = vmatprep.subr.bf16.mxu0 0
        %1132 = vmatpush1.bf16.msra.mxu0 0
        %1133 = vmatprep.subr.bf16.mxu0 0
        %1134 = vmatpush1.bf16.msra.mxu0 0
        %1135 = vmatprep.subr.bf16.mxu0 0
        %1136 = vmatpush1.bf16.msra.mxu0 0
        %1137 = vmatprep.subr.bf16.mxu0 0
        %1138 = vmatpush1.bf16.msra.mxu0 0
        %1139 = vmatprep.subr.bf16.mxu0 0
        %1140 = vmatpush1.bf16.msra.mxu0 0
        %1141 = vmatprep.subr.bf16.mxu0 0
        %1142 = vmatpush1.bf16.msra.mxu0 0
        %1143 = vmatprep.subr.bf16.mxu0 0
        %1144 = vmatpush1.bf16.msra.mxu0 0
        %1145 = vmatprep.subr.bf16.mxu0 0
        %1146 = vmatpush1.bf16.msra.mxu0 0
        %1147 = vmatprep.mubr.bf16.mxu0 0
        %1148 = vmatmul.mubr.bf16.gmra.mrb[0].mxu0 %v1034
        %v1149 = vpop.f32.mrb[0].mxu0
        %v1150 = vadd.f32 0.0, %v1149
        %v1151 = vpop.f32.mrb[0].mxu0
        %v1152 = vadd.f32 0.0, %v1151
        %v1153 = vpop.f32.mrb[0].mxu0
        %v1154 = vadd.f32 0.0, %v1153
        %v1155 = vpop.f32.mrb[0].mxu0
        %v1156 = vadd.f32 0.0, %v1155
        %1157 = vdwg.mxu0
        %v1158 = vadd.f32 %v1152, %v1032
        %v1159 = vadd.f32 %v1156, %v1033
        %v1160 = vtanh.pop %v1158
        %v1161 = vtanh.pop %v1159
        %v1162 = vadd.f32 %v1150, %v1160
        %v1163 = vadd.f32 %v1154, %v1161
        %v1164 = vmul.f32 %v1028, %v1162
        %v1165 = vmul.f32 %v1028, %v1163
        %v1166 = vadd.f32 %v1030, %v1164
        %v1167 = vadd.f32 %v1031, %v1165
        %v1168 = vpack.c.bf16 %v1167, %v1166
        %v1170 = vunpack.c.l.b16 %v1168
        %v1171 = vunpack.c.h.b16 %v1168
        %v1172 = vpack.c.b16 %v1170, %v1170
        %v1173 = vpack.c.b16 %v1171, %v1171
        %1176 = vst [vmem:[%s315] sm:$0xf] %v1172
        %1177 = vst [vmem:[%s315 + $0x4] sm:$0xf] %v1173
        %s1178 = scalar_lea.vmem [#allocation2], 16
        %v1179 = vld [vmem:[%s1178] sm:$0xff]
        %v1180 = vld [vmem:[%s1178 + $0x8] sm:$0xff]
        %1181 = vmatprep.subr.bf16.mxu0 %v1084
        %1182 = vmatpush1.bf16.msra.mxu0 %v1083
        %1183 = vmatprep.subr.bf16.mxu0 %v1086
        %1184 = vmatpush1.bf16.msra.mxu0 %v1085
        %1185 = vmatprep.subr.bf16.mxu0 %v1088
        %1186 = vmatpush1.bf16.msra.mxu0 %v1087
        %1187 = vmatprep.subr.bf16.mxu0 %v1090
        %1188 = vmatpush1.bf16.msra.mxu0 %v1089
        %1189 = vmatprep.subr.bf16.mxu0 %v1092
        %1190 = vmatpush1.bf16.msra.mxu0 %v1091
        %1191 = vmatprep.subr.bf16.mxu0 %v1094
        %1192 = vmatpush1.bf16.msra.mxu0 %v1093
        %1193 = vmatprep.subr.bf16.mxu0 %v1096
        %1194 = vmatpush1.bf16.msra.mxu0 %v1095
        %1195 = vmatprep.subr.bf16.mxu0 %v1098
        %1196 = vmatpush1.bf16.msra.mxu0 %v1097
        %1197 = vmatprep.subr.bf16.mxu0 0
        %1198 = vmatpush1.bf16.msra.mxu0 0
        %1199 = vmatprep.subr.bf16.mxu0 0
        %1200 = vmatpush1.bf16.msra.mxu0 0
        %1201 = vmatprep.subr.bf16.mxu0 0
        %1202 = vmatpush1.bf16.msra.mxu0 0
        %1203 = vmatprep.subr.bf16.mxu0 0
        %1204 = vmatpush1.bf16.msra.mxu0 0
        %1205 = vmatprep.subr.bf16.mxu0 0
        %1206 = vmatpush1.bf16.msra.mxu0 0
        %1207 = vmatprep.subr.bf16.mxu0 0
        %1208 = vmatpush1.bf16.msra.mxu0 0
        %1209 = vmatprep.subr.bf16.mxu0 0
        %1210 = vmatpush1.bf16.msra.mxu0 0
        %1211 = vmatprep.subr.bf16.mxu0 0
        %1212 = vmatpush1.bf16.msra.mxu0 0
        %1213 = vmatprep.mubr.bf16.mxu0 0
        %1214 = vmatmul.mubr.bf16.gmra.mrb[0].mxu0 %v1168
        %v1215 = vpop.f32.mrb[0].mxu0
        %v1216 = vadd.f32 0.0, %v1215
        %v1217 = vpop.f32.mrb[0].mxu0
        %v1218 = vadd.f32 0.0, %v1217
        %v1219 = vpop.f32.mrb[0].mxu0
        %v1220 = vadd.f32 0.0, %v1219
        %v1221 = vpop.f32.mrb[0].mxu0
        %v1222 = vadd.f32 0.0, %v1221
        %1223 = vdwg.mxu0
        %v1224 = vadd.f32 %v1218, %v1179
        %v1225 = vadd.f32 %v1222, %v1180
        %v1226 = vtanh.pop %v1224
        %v1227 = vtanh.pop %v1225
        %v1228 = vadd.f32 %v1216, %v1226
        %v1229 = vadd.f32 %v1220, %v1227
        %v1230 = vmul.f32 %v1028, %v1228
        %v1231 = vmul.f32 %v1028, %v1229
        %v1232 = vadd.f32 %v1166, %v1230
        %v1233 = vadd.f32 %v1167, %v1231
        %v1234 = vpack.c.bf16 %v1233, %v1232
        %v1236 = vunpack.c.l.b16 %v1234
        %v1237 = vunpack.c.h.b16 %v1234
        %v1238 = vpack.c.b16 %v1236, %v1236
        %v1239 = vpack.c.b16 %v1237, %v1237
        %s1242 = scalar_lea.vmem %s315, 8 [#allocation10]
        %1243 = vst [vmem:[%s1242] sm:$0xf] %v1238
        %1244 = vst [vmem:[%s1242 + $0x4] sm:$0xf] %v1239
        %s1245 = scalar_lea.vmem [#allocation2], 32
        %v1246 = vld [vmem:[%s1245] sm:$0xff]
        %v1247 = vld [vmem:[%s1245 + $0x8] sm:$0xff]
        %1248 = vmatprep.subr.bf16.mxu0 %v1084
        %1249 = vmatpush1.bf16.msra.mxu0 %v1083
        %1250 = vmatprep.subr.bf16.mxu0 %v1086
        %1251 = vmatpush1.bf16.msra.mxu0 %v1085
        %1252 = vmatprep.subr.bf16.mxu0 %v1088
        %1253 = vmatpush1.bf16.msra.mxu0 %v1087
        %1254 = vmatprep.subr.bf16.mxu0 %v1090
        %1255 = vmatpush1.bf16.msra.mxu0 %v1089
        %1256 = vmatprep.subr.bf16.mxu0 %v1092
        %1257 = vmatpush1.bf16.msra.mxu0 %v1091
        %1258 = vmatprep.subr.bf16.mxu0 %v1094
        %1259 = vmatpush1.bf16.msra.mxu0 %v1093
        %1260 = vmatprep.subr.bf16.mxu0 %v1096
        %1261 = vmatpush1.bf16.msra.mxu0 %v1095
        %1262 = vmatprep.subr.bf16.mxu0 %v1098
        %1263 = vmatpush1.bf16.msra.mxu0 %v1097
        %1264 = vmatprep.subr.bf16.mxu0 0
        %1265 = vmatpush1.bf16.msra.mxu0 0
        %1266 = vmatprep.subr.bf16.mxu0 0
        %1267 = vmatpush1.bf16.msra.mxu0 0
        %1268 = vmatprep.subr.bf16.mxu0 0
        %1269 = vmatpush1.bf16.msra.mxu0 0
        %1270 = vmatprep.subr.bf16.mxu0 0
        %1271 = vmatpush1.bf16.msra.mxu0 0
        %1272 = vmatprep.subr.bf16.mxu0 0
        %1273 = vmatpush1.bf16.msra.mxu0 0
        %1274 = vmatprep.subr.bf16.mxu0 0
        %1275 = vmatpush1.bf16.msra.mxu0 0
        %1276 = vmatprep.subr.bf16.mxu0 0
        %1277 = vmatpush1.bf16.msra.mxu0 0
        %1278 = vmatprep.subr.bf16.mxu0 0
        %1279 = vmatpush1.bf16.msra.mxu0 0
        %1280 = vmatprep.mubr.bf16.mxu0 0
        %1281 = vmatmul.mubr.bf16.gmra.mrb[0].mxu0 %v1234
        %v1282 = vpop.f32.mrb[0].mxu0
        %v1283 = vadd.f32 0.0, %v1282
        %v1284 = vpop.f32.mrb[0].mxu0
        %v1285 = vadd.f32 0.0, %v1284
        %v1286 = vpop.f32.mrb[0].mxu0
        %v1287 = vadd.f32 0.0, %v1286
        %v1288 = vpop.f32.mrb[0].mxu0
        %v1289 = vadd.f32 0.0, %v1288
        %1290 = vdwg.mxu0
        %v1291 = vadd.f32 %v1285, %v1246
        %v1292 = vadd.f32 %v1289, %v1247
        %v1293 = vtanh.pop %v1291
        %v1294 = vtanh.pop %v1292
        %v1295 = vadd.f32 %v1283, %v1293
        %v1296 = vadd.f32 %v1287, %v1294
        %v1297 = vmul.f32 %v1028, %v1295
        %v1298 = vmul.f32 %v1028, %v1296
        %v1299 = vadd.f32 %v1232, %v1297
        %v1300 = vadd.f32 %v1233, %v1298
        %v1301 = vpack.c.bf16 %v1300, %v1299
        %v1303 = vunpack.c.l.b16 %v1301
        %v1304 = vunpack.c.h.b16 %v1301
        %v1305 = vpack.c.b16 %v1303, %v1303
        %v1306 = vpack.c.b16 %v1304, %v1304
        %s1309 = scalar_lea.vmem %s315, 16 [#allocation10]
        %1310 = vst [vmem:[%s1309] sm:$0xf] %v1305
        %1311 = vst [vmem:[%s1309 + $0x4] sm:$0xf] %v1306
        %s1312 = scalar_lea.vmem [#allocation2], 48
        %v1313 = vld [vmem:[%s1312] sm:$0xff]
        %v1314 = vld [vmem:[%s1312 + $0x8] sm:$0xff]
        %1315 = vmatprep.subr.bf16.mxu0 %v1084
        %1316 = vmatpush1.bf16.msra.mxu0 %v1083
        %1317 = vmatprep.subr.bf16.mxu0 %v1086
        %1318 = vmatpush1.bf16.msra.mxu0 %v1085
        %1319 = vmatprep.subr.bf16.mxu0 %v1088
        %1320 = vmatpush1.bf16.msra.mxu0 %v1087
        %1321 = vmatprep.subr.bf16.mxu0 %v1090
        %1322 = vmatpush1.bf16.msra.mxu0 %v1089
        %1323 = vmatprep.subr.bf16.mxu0 %v1092
        %1324 = vmatpush1.bf16.msra.mxu0 %v1091
        %1325 = vmatprep.subr.bf16.mxu0 %v1094
        %1326 = vmatpush1.bf16.msra.mxu0 %v1093
        %1327 = vmatprep.subr.bf16.mxu0 %v1096
        %1328 = vmatpush1.bf16.msra.mxu0 %v1095
        %1329 = vmatprep.subr.bf16.mxu0 %v1098
        %1330 = vmatpush1.bf16.msra.mxu0 %v1097
        %1331 = vmatprep.subr.bf16.mxu0 0
        %1332 = vmatpush1.bf16.msra.mxu0 0
        %1333 = vmatprep.subr.bf16.mxu0 0
        %1334 = vmatpush1.bf16.msra.mxu0 0
        %1335 = vmatprep.subr.bf16.mxu0 0
        %1336 = vmatpush1.bf16.msra.mxu0 0
        %1337 = vmatprep.subr.bf16.mxu0 0
        %1338 = vmatpush1.bf16.msra.mxu0 0
        %1339 = vmatprep.subr.bf16.mxu0 0
        %1340 = vmatpush1.bf16.msra.mxu0 0
        %1341 = vmatprep.subr.bf16.mxu0 0
        %1342 = vmatpush1.bf16.msra.mxu0 0
        %1343 = vmatprep.subr.bf16.mxu0 0
        %1344 = vmatpush1.bf16.msra.mxu0 0
        %1345 = vmatprep.subr.bf16.mxu0 0
        %1346 = vmatpush1.bf16.msra.mxu0 0
        %1347 = vmatprep.mubr.bf16.mxu0 0
        %1348 = vmatmul.mubr.bf16.gmra.mrb[0].mxu0 %v1301
        %v1349 = vpop.f32.mrb[0].mxu0
        %v1350 = vadd.f32 0.0, %v1349
        %v1351 = vpop.f32.mrb[0].mxu0
        %v1352 = vadd.f32 0.0, %v1351
        %v1353 = vpop.f32.mrb[0].mxu0
        %v1354 = vadd.f32 0.0, %v1353
        %v1355 = vpop.f32.mrb[0].mxu0
        %v1356 = vadd.f32 0.0, %v1355
        %1357 = vdwg.mxu0
        %v1358 = vadd.f32 %v1352, %v1313
        %v1359 = vadd.f32 %v1356, %v1314
        %v1360 = vtanh.pop %v1358
        %v1361 = vtanh.pop %v1359
        %v1362 = vadd.f32 %v1350, %v1360
        %v1363 = vadd.f32 %v1354, %v1361
        %v1364 = vmul.f32 %v1028, %v1362
        %v1365 = vmul.f32 %v1028, %v1363
        %v1366 = vadd.f32 %v1299, %v1364
        %v1367 = vadd.f32 %v1300, %v1365
        %v1368 = vpack.c.bf16 %v1367, %v1366
        %v1370 = vunpack.c.l.b16 %v1368
        %v1371 = vunpack.c.h.b16 %v1368
        %v1372 = vpack.c.b16 %v1370, %v1370
        %v1373 = vpack.c.b16 %v1371, %v1371
        %s1376 = scalar_lea.vmem %s315, 24 [#allocation10]
        %1377 = vst [vmem:[%s1376] sm:$0xf] %v1372
        %1378 = vst [vmem:[%s1376 + $0x4] sm:$0xf] %v1373
        %s1379 = scalar_lea.vmem [#allocation2], 64
        %v1380 = vld [vmem:[%s1379] sm:$0xff]
        %v1381 = vld [vmem:[%s1379 + $0x8] sm:$0xff]
        %1382 = vmatprep.subr.bf16.mxu0 %v1084
        %1383 = vmatpush1.bf16.msra.mxu0 %v1083
        %1384 = vmatprep.subr.bf16.mxu0 %v1086
        %1385 = vmatpush1.bf16.msra.mxu0 %v1085
        %1386 = vmatprep.subr.bf16.mxu0 %v1088
        %1387 = vmatpush1.bf16.msra.mxu0 %v1087
        %1388 = vmatprep.subr.bf16.mxu0 %v1090
        %1389 = vmatpush1.bf16.msra.mxu0 %v1089
        %1390 = vmatprep.subr.bf16.mxu0 %v1092
        %1391 = vmatpush1.bf16.msra.mxu0 %v1091
        %1392 = vmatprep.subr.bf16.mxu0 %v1094
        %1393 = vmatpush1.bf16.msra.mxu0 %v1093
        %1394 = vmatprep.subr.bf16.mxu0 %v1096
        %1395 = vmatpush1.bf16.msra.mxu0 %v1095
        %1396 = vmatprep.subr.bf16.mxu0 %v1098
        %1397 = vmatpush1.bf16.msra.mxu0 %v1097
        %1398 = vmatprep.subr.bf16.mxu0 0
        %1399 = vmatpush1.bf16.msra.mxu0 0
        %1400 = vmatprep.subr.bf16.mxu0 0
        %1401 = vmatpush1.bf16.msra.mxu0 0
        %1402 = vmatprep.subr.bf16.mxu0 0
        %1403 = vmatpush1.bf16.msra.mxu0 0
        %1404 = vmatprep.subr.bf16.mxu0 0
        %1405 = vmatpush1.bf16.msra.mxu0 0
        %1406 = vmatprep.subr.bf16.mxu0 0
        %1407 = vmatpush1.bf16.msra.mxu0 0
        %1408 = vmatprep.subr.bf16.mxu0 0
        %1409 = vmatpush1.bf16.msra.mxu0 0
        %1410 = vmatprep.subr.bf16.mxu0 0
        %1411 = vmatpush1.bf16.msra.mxu0 0
        %1412 = vmatprep.subr.bf16.mxu0 0
        %1413 = vmatpush1.bf16.msra.mxu0 0
        %1414 = vmatprep.mubr.bf16.mxu0 0
        %1415 = vmatmul.mubr.bf16.gmra.mrb[0].mxu0 %v1368
        %v1416 = vpop.f32.mrb[0].mxu0
        %v1417 = vadd.f32 0.0, %v1416
        %v1418 = vpop.f32.mrb[0].mxu0
        %v1419 = vadd.f32 0.0, %v1418
        %v1420 = vpop.f32.mrb[0].mxu0
        %v1421 = vadd.f32 0.0, %v1420
        %v1422 = vpop.f32.mrb[0].mxu0
        %v1423 = vadd.f32 0.0, %v1422
        %1424 = vdwg.mxu0
        %v1425 = vadd.f32 %v1419, %v1380
        %v1426 = vadd.f32 %v1423, %v1381
        %v1427 = vtanh.pop %v1425
        %v1428 = vtanh.pop %v1426
        %v1429 = vadd.f32 %v1417, %v1427
        %v1430 = vadd.f32 %v1421, %v1428
        %v1431 = vmul.f32 %v1028, %v1429
        %v1432 = vmul.f32 %v1028, %v1430
        %v1433 = vadd.f32 %v1366, %v1431
        %v1434 = vadd.f32 %v1367, %v1432
        %v1435 = vpack.c.bf16 %v1434, %v1433
        %v1437 = vunpack.c.l.b16 %v1435
        %v1438 = vunpack.c.h.b16 %v1435
        %v1439 = vpack.c.b16 %v1437, %v1437
        %v1440 = vpack.c.b16 %v1438, %v1438
        %s1443 = scalar_lea.vmem %s315, 32 [#allocation10]
        %1444 = vst [vmem:[%s1443] sm:$0xf] %v1439
        %1445 = vst [vmem:[%s1443 + $0x4] sm:$0xf] %v1440
        %s1446 = scalar_lea.vmem [#allocation2], 80
        %v1447 = vld [vmem:[%s1446] sm:$0xff]
        %v1448 = vld [vmem:[%s1446 + $0x8] sm:$0xff]
        %1449 = vmatprep.subr.bf16.mxu0 %v1084
        %1450 = vmatpush1.bf16.msra.mxu0 %v1083
        %1451 = vmatprep.subr.bf16.mxu0 %v1086
        %1452 = vmatpush1.bf16.msra.mxu0 %v1085
        %1453 = vmatprep.subr.bf16.mxu0 %v1088
        %1454 = vmatpush1.bf16.msra.mxu0 %v1087
        %1455 = vmatprep.subr.bf16.mxu0 %v1090
        %1456 = vmatpush1.bf16.msra.mxu0 %v1089
        %1457 = vmatprep.subr.bf16.mxu0 %v1092
        %1458 = vmatpush1.bf16.msra.mxu0 %v1091
        %1459 = vmatprep.subr.bf16.mxu0 %v1094
        %1460 = vmatpush1.bf16.msra.mxu0 %v1093
        %1461 = vmatprep.subr.bf16.mxu0 %v1096
        %1462 = vmatpush1.bf16.msra.mxu0 %v1095
        %1463 = vmatprep.subr.bf16.mxu0 %v1098
        %1464 = vmatpush1.bf16.msra.mxu0 %v1097
        %1465 = vmatprep.subr.bf16.mxu0 0
        %1466 = vmatpush1.bf16.msra.mxu0 0
        %1467 = vmatprep.subr.bf16.mxu0 0
        %1468 = vmatpush1.bf16.msra.mxu0 0
        %1469 = vmatprep.subr.bf16.mxu0 0
        %1470 = vmatpush1.bf16.msra.mxu0 0
        %1471 = vmatprep.subr.bf16.mxu0 0
        %1472 = vmatpush1.bf16.msra.mxu0 0
        %1473 = vmatprep.subr.bf16.mxu0 0
        %1474 = vmatpush1.bf16.msra.mxu0 0
        %1475 = vmatprep.subr.bf16.mxu0 0
        %1476 = vmatpush1.bf16.msra.mxu0 0
        %1477 = vmatprep.subr.bf16.mxu0 0
        %1478 = vmatpush1.bf16.msra.mxu0 0
        %1479 = vmatprep.subr.bf16.mxu0 0
        %1480 = vmatpush1.bf16.msra.mxu0 0
        %1481 = vmatprep.mubr.bf16.mxu0 0
        %1482 = vmatmul.mubr.bf16.gmra.mrb[0].mxu0 %v1435
        %v1483 = vpop.f32.mrb[0].mxu0
        %v1484 = vadd.f32 0.0, %v1483
        %v1485 = vpop.f32.mrb[0].mxu0
        %v1486 = vadd.f32 0.0, %v1485
        %v1487 = vpop.f32.mrb[0].mxu0
        %v1488 = vadd.f32 0.0, %v1487
        %v1489 = vpop.f32.mrb[0].mxu0
        %v1490 = vadd.f32 0.0, %v1489
        %1491 = vdwg.mxu0
        %v1492 = vadd.f32 %v1486, %v1447
        %v1493 = vadd.f32 %v1490, %v1448
        %v1494 = vtanh.pop %v1492
        %v1495 = vtanh.pop %v1493
        %v1496 = vadd.f32 %v1484, %v1494
        %v1497 = vadd.f32 %v1488, %v1495
        %v1498 = vmul.f32 %v1028, %v1496
        %v1499 = vmul.f32 %v1028, %v1497
        %v1500 = vadd.f32 %v1433, %v1498
        %v1501 = vadd.f32 %v1434, %v1499
        %v1502 = vpack.c.bf16 %v1501, %v1500
        %v1504 = vunpack.c.l.b16 %v1502
        %v1505 = vunpack.c.h.b16 %v1502
        %v1506 = vpack.c.b16 %v1504, %v1504
        %v1507 = vpack.c.b16 %v1505, %v1505
        %s1510 = scalar_lea.vmem %s315, 40 [#allocation10]
        %1511 = vst [vmem:[%s1510] sm:$0xf] %v1506
        %1512 = vst [vmem:[%s1510 + $0x4] sm:$0xf] %v1507
        %s1513 = scalar_lea.vmem [#allocation2], 96
        %v1514 = vld [vmem:[%s1513] sm:$0xff]
        %v1515 = vld [vmem:[%s1513 + $0x8] sm:$0xff]
        %1516 = vmatprep.subr.bf16.mxu0 %v1084
        %1517 = vmatpush1.bf16.msra.mxu0 %v1083
        %1518 = vmatprep.subr.bf16.mxu0 %v1086
        %1519 = vmatpush1.bf16.msra.mxu0 %v1085
        %1520 = vmatprep.subr.bf16.mxu0 %v1088
        %1521 = vmatpush1.bf16.msra.mxu0 %v1087
        %1522 = vmatprep.subr.bf16.mxu0 %v1090
        %1523 = vmatpush1.bf16.msra.mxu0 %v1089
        %1524 = vmatprep.subr.bf16.mxu0 %v1092
        %1525 = vmatpush1.bf16.msra.mxu0 %v1091
        %1526 = vmatprep.subr.bf16.mxu0 %v1094
        %1527 = vmatpush1.bf16.msra.mxu0 %v1093
        %1528 = vmatprep.subr.bf16.mxu0 %v1096
        %1529 = vmatpush1.bf16.msra.mxu0 %v1095
        %1530 = vmatprep.subr.bf16.mxu0 %v1098
        %1531 = vmatpush1.bf16.msra.mxu0 %v1097
        %1532 = vmatprep.subr.bf16.mxu0 0
        %1533 = vmatpush1.bf16.msra.mxu0 0
        %1534 = vmatprep.subr.bf16.mxu0 0
        %1535 = vmatpush1.bf16.msra.mxu0 0
        %1536 = vmatprep.subr.bf16.mxu0 0
        %1537 = vmatpush1.bf16.msra.mxu0 0
        %1538 = vmatprep.subr.bf16.mxu0 0
        %1539 = vmatpush1.bf16.msra.mxu0 0
        %1540 = vmatprep.subr.bf16.mxu0 0
        %1541 = vmatpush1.bf16.msra.mxu0 0
        %1542 = vmatprep.subr.bf16.mxu0 0
        %1543 = vmatpush1.bf16.msra.mxu0 0
        %1544 = vmatprep.subr.bf16.mxu0 0
        %1545 = vmatpush1.bf16.msra.mxu0 0
        %1546 = vmatprep.subr.bf16.mxu0 0
        %1547 = vmatpush1.bf16.msra.mxu0 0
        %1548 = vmatprep.mubr.bf16.mxu0 0
        %1549 = vmatmul.mubr.bf16.gmra.mrb[0].mxu0 %v1502
        %v1550 = vpop.f32.mrb[0].mxu0
        %v1551 = vadd.f32 0.0, %v1550
        %v1552 = vpop.f32.mrb[0].mxu0
        %v1553 = vadd.f32 0.0, %v1552
        %v1554 = vpop.f32.mrb[0].mxu0
        %v1555 = vadd.f32 0.0, %v1554
        %v1556 = vpop.f32.mrb[0].mxu0
        %v1557 = vadd.f32 0.0, %v1556
        %1558 = vdwg.mxu0
        %v1559 = vadd.f32 %v1553, %v1514
        %v1560 = vadd.f32 %v1557, %v1515
        %v1561 = vtanh.pop %v1559
        %v1562 = vtanh.pop %v1560
        %v1563 = vadd.f32 %v1551, %v1561
        %v1564 = vadd.f32 %v1555, %v1562
        %v1565 = vmul.f32 %v1028, %v1563
        %v1566 = vmul.f32 %v1028, %v1564
        %v1567 = vadd.f32 %v1500, %v1565
        %v1568 = vadd.f32 %v1501, %v1566
        %v1569 = vpack.c.bf16 %v1568, %v1567
        %v1571 = vunpack.c.l.b16 %v1569
        %v1572 = vunpack.c.h.b16 %v1569
        %v1573 = vpack.c.b16 %v1571, %v1571
        %v1574 = vpack.c.b16 %v1572, %v1572
        %s1577 = scalar_lea.vmem %s315, 48 [#allocation10]
        %1578 = vst [vmem:[%s1577] sm:$0xf] %v1573
        %1579 = vst [vmem:[%s1577 + $0x4] sm:$0xf] %v1574
        %s1580 = scalar_lea.vmem [#allocation2], 112
        %v1581 = vld [vmem:[%s1580] sm:$0xff]
        %v1582 = vld [vmem:[%s1580 + $0x8] sm:$0xff]
        %1583 = vmatprep.subr.bf16.mxu0 %v1084
        %1584 = vmatpush1.bf16.msra.mxu0 %v1083
        %1585 = vmatprep.subr.bf16.mxu0 %v1086
        %1586 = vmatpush1.bf16.msra.mxu0 %v1085
        %1587 = vmatprep.subr.bf16.mxu0 %v1088
        %1588 = vmatpush1.bf16.msra.mxu0 %v1087
        %1589 = vmatprep.subr.bf16.mxu0 %v1090
        %1590 = vmatpush1.bf16.msra.mxu0 %v1089
        %1591 = vmatprep.subr.bf16.mxu0 %v1092
        %1592 = vmatpush1.bf16.msra.mxu0 %v1091
        %1593 = vmatprep.subr.bf16.mxu0 %v1094
        %1594 = vmatpush1.bf16.msra.mxu0 %v1093
        %1595 = vmatprep.subr.bf16.mxu0 %v1096
        %1596 = vmatpush1.bf16.msra.mxu0 %v1095
        %1597 = vmatprep.subr.bf16.mxu0 %v1098
        %1598 = vmatpush1.bf16.msra.mxu0 %v1097
        %1599 = vmatprep.subr.bf16.mxu0 0
        %1600 = vmatpush1.bf16.msra.mxu0 0
        %1601 = vmatprep.subr.bf16.mxu0 0
        %1602 = vmatpush1.bf16.msra.mxu0 0
        %1603 = vmatprep.subr.bf16.mxu0 0
        %1604 = vmatpush1.bf16.msra.mxu0 0
        %1605 = vmatprep.subr.bf16.mxu0 0
        %1606 = vmatpush1.bf16.msra.mxu0 0
        %1607 = vmatprep.subr.bf16.mxu0 0
        %1608 = vmatpush1.bf16.msra.mxu0 0
        %1609 = vmatprep.subr.bf16.mxu0 0
        %1610 = vmatpush1.bf16.msra.mxu0 0
        %1611 = vmatprep.subr.bf16.mxu0 0
        %1612 = vmatpush1.bf16.msra.mxu0 0
        %1613 = vmatprep.subr.bf16.mxu0 0
        %1614 = vmatpush1.bf16.msra.mxu0 0
        %1615 = vmatprep.mubr.bf16.mxu0 0
        %1616 = vmatmul.mubr.bf16.gmra.mrb[0].mxu0 %v1569
        %v1617 = vpop.f32.mrb[0].mxu0
        %v1618 = vadd.f32 0.0, %v1617
        %v1619 = vpop.f32.mrb[0].mxu0
        %v1620 = vadd.f32 0.0, %v1619
        %v1621 = vpop.f32.mrb[0].mxu0
        %v1622 = vadd.f32 0.0, %v1621
        %v1623 = vpop.f32.mrb[0].mxu0
        %v1624 = vadd.f32 0.0, %v1623
        %1625 = vdwg.mxu0
        %v1626 = vadd.f32 %v1620, %v1581
        %v1627 = vadd.f32 %v1624, %v1582
        %v1628 = vtanh.pop %v1626
        %v1629 = vtanh.pop %v1627
        %v1630 = vadd.f32 %v1618, %v1628
        %v1631 = vadd.f32 %v1622, %v1629
        %v1632 = vmul.f32 %v1028, %v1630
        %v1633 = vmul.f32 %v1028, %v1631
        %v1634 = vadd.f32 %v1567, %v1632
        %v1635 = vadd.f32 %v1568, %v1633
        %v1636 = vpack.c.bf16 %v1635, %v1634
        %v1638 = vunpack.c.l.b16 %v1636
        %v1639 = vunpack.c.h.b16 %v1636
        %v1640 = vpack.c.b16 %v1638, %v1638
        %v1641 = vpack.c.b16 %v1639, %v1639
        %s1644 = scalar_lea.vmem %s315, 56 [#allocation10]
        %1645 = vst [vmem:[%s1644] sm:$0xf] %v1640
        %1646 = vst [vmem:[%s1644 + $0x4] sm:$0xf] %v1641
        %s1647 = scalar_lea.vmem [#allocation2], 128
        %v1648 = vld [vmem:[%s1647] sm:$0xff]
        %v1649 = vld [vmem:[%s1647 + $0x8] sm:$0xff]
        %1650 = vmatprep.subr.bf16.mxu0 %v1084
        %1651 = vmatpush1.bf16.msra.mxu0 %v1083
        %1652 = vmatprep.subr.bf16.mxu0 %v1086
        %1653 = vmatpush1.bf16.msra.mxu0 %v1085
        %1654 = vmatprep.subr.bf16.mxu0 %v1088
        %1655 = vmatpush1.bf16.msra.mxu0 %v1087
        %1656 = vmatprep.subr.bf16.mxu0 %v1090
        %1657 = vmatpush1.bf16.msra.mxu0 %v1089
        %1658 = vmatprep.subr.bf16.mxu0 %v1092
        %1659 = vmatpush1.bf16.msra.mxu0 %v1091
        %1660 = vmatprep.subr.bf16.mxu0 %v1094
        %1661 = vmatpush1.bf16.msra.mxu0 %v1093
        %1662 = vmatprep.subr.bf16.mxu0 %v1096
        %1663 = vmatpush1.bf16.msra.mxu0 %v1095
        %1664 = vmatprep.subr.bf16.mxu0 %v1098
        %1665 = vmatpush1.bf16.msra.mxu0 %v1097
        %1666 = vmatprep.subr.bf16.mxu0 0
        %1667 = vmatpush1.bf16.msra.mxu0 0
        %1668 = vmatprep.subr.bf16.mxu0 0
        %1669 = vmatpush1.bf16.msra.mxu0 0
        %1670 = vmatprep.subr.bf16.mxu0 0
        %1671 = vmatpush1.bf16.msra.mxu0 0
        %1672 = vmatprep.subr.bf16.mxu0 0
        %1673 = vmatpush1.bf16.msra.mxu0 0
        %1674 = vmatprep.subr.bf16.mxu0 0
        %1675 = vmatpush1.bf16.msra.mxu0 0
        %1676 = vmatprep.subr.bf16.mxu0 0
        %1677 = vmatpush1.bf16.msra.mxu0 0
        %1678 = vmatprep.subr.bf16.mxu0 0
        %1679 = vmatpush1.bf16.msra.mxu0 0
        %1680 = vmatprep.subr.bf16.mxu0 0
        %1681 = vmatpush1.bf16.msra.mxu0 0
        %1682 = vmatprep.mubr.bf16.mxu0 0
        %1683 = vmatmul.mubr.bf16.gmra.mrb[0].mxu0 %v1636
        %v1684 = vpop.f32.mrb[0].mxu0
        %v1685 = vadd.f32 0.0, %v1684
        %v1686 = vpop.f32.mrb[0].mxu0
        %v1687 = vadd.f32 0.0, %v1686
        %v1688 = vpop.f32.mrb[0].mxu0
        %v1689 = vadd.f32 0.0, %v1688
        %v1690 = vpop.f32.mrb[0].mxu0
        %v1691 = vadd.f32 0.0, %v1690
        %1692 = vdwg.mxu0
        %v1693 = vadd.f32 %v1687, %v1648
        %v1694 = vadd.f32 %v1691, %v1649
        %v1695 = vtanh.pop %v1693
        %v1696 = vtanh.pop %v1694
        %v1697 = vadd.f32 %v1685, %v1695
        %v1698 = vadd.f32 %v1689, %v1696
        %v1699 = vmul.f32 %v1028, %v1697
        %v1700 = vmul.f32 %v1028, %v1698
        %v1701 = vadd.f32 %v1634, %v1699
        %v1702 = vadd.f32 %v1635, %v1700
        %v1703 = vpack.c.bf16 %v1702, %v1701
        %v1705 = vunpack.c.l.b16 %v1703
        %v1706 = vunpack.c.h.b16 %v1703
        %v1707 = vpack.c.b16 %v1705, %v1705
        %v1708 = vpack.c.b16 %v1706, %v1706
        %s1711 = scalar_lea.vmem %s315, 64 [#allocation10]
        %1712 = vst [vmem:[%s1711] sm:$0xf] %v1707
        %1713 = vst [vmem:[%s1711 + $0x4] sm:$0xf] %v1708
        %s1714 = scalar_lea.vmem [#allocation2], 144
        %v1715 = vld [vmem:[%s1714] sm:$0xff]
        %v1716 = vld [vmem:[%s1714 + $0x8] sm:$0xff]
        %1717 = vmatprep.subr.bf16.mxu0 %v1084
        %1718 = vmatpush1.bf16.msra.mxu0 %v1083
        %1719 = vmatprep.subr.bf16.mxu0 %v1086
        %1720 = vmatpush1.bf16.msra.mxu0 %v1085
        %1721 = vmatprep.subr.bf16.mxu0 %v1088
        %1722 = vmatpush1.bf16.msra.mxu0 %v1087
        %1723 = vmatprep.subr.bf16.mxu0 %v1090
        %1724 = vmatpush1.bf16.msra.mxu0 %v1089
        %1725 = vmatprep.subr.bf16.mxu0 %v1092
        %1726 = vmatpush1.bf16.msra.mxu0 %v1091
        %1727 = vmatprep.subr.bf16.mxu0 %v1094
        %1728 = vmatpush1.bf16.msra.mxu0 %v1093
        %1729 = vmatprep.subr.bf16.mxu0 %v1096
        %1730 = vmatpush1.bf16.msra.mxu0 %v1095
        %1731 = vmatprep.subr.bf16.mxu0 %v1098
        %1732 = vmatpush1.bf16.msra.mxu0 %v1097
        %1733 = vmatprep.subr.bf16.mxu0 0
        %1734 = vmatpush1.bf16.msra.mxu0 0
        %1735 = vmatprep.subr.bf16.mxu0 0
        %1736 = vmatpush1.bf16.msra.mxu0 0
        %1737 = vmatprep.subr.bf16.mxu0 0
        %1738 = vmatpush1.bf16.msra.mxu0 0
        %1739 = vmatprep.subr.bf16.mxu0 0
        %1740 = vmatpush1.bf16.msra.mxu0 0
        %1741 = vmatprep.subr.bf16.mxu0 0
        %1742 = vmatpush1.bf16.msra.mxu0 0
        %1743 = vmatprep.subr.bf16.mxu0 0
        %1744 = vmatpush1.bf16.msra.mxu0 0
        %1745 = vmatprep.subr.bf16.mxu0 0
        %1746 = vmatpush1.bf16.msra.mxu0 0
        %1747 = vmatprep.subr.bf16.mxu0 0
        %1748 = vmatpush1.bf16.msra.mxu0 0
        %1749 = vmatprep.mubr.bf16.mxu0 0
        %1750 = vmatmul.mubr.bf16.gmra.mrb[0].mxu0 %v1703
        %v1751 = vpop.f32.mrb[0].mxu0
        %v1752 = vadd.f32 0.0, %v1751
        %v1753 = vpop.f32.mrb[0].mxu0
        %v1754 = vadd.f32 0.0, %v1753
        %v1755 = vpop.f32.mrb[0].mxu0
        %v1756 = vadd.f32 0.0, %v1755
        %v1757 = vpop.f32.mrb[0].mxu0
        %v1758 = vadd.f32 0.0, %v1757
        %1759 = vdwg.mxu0
        %v1760 = vadd.f32 %v1754, %v1715
        %v1761 = vadd.f32 %v1758, %v1716
        %v1762 = vtanh.pop %v1760
        %v1763 = vtanh.pop %v1761
        %v1764 = vadd.f32 %v1752, %v1762
        %v1765 = vadd.f32 %v1756, %v1763
        %v1766 = vmul.f32 %v1028, %v1764
        %v1767 = vmul.f32 %v1028, %v1765
        %v1768 = vadd.f32 %v1701, %v1766
        %v1769 = vadd.f32 %v1702, %v1767
        %v1770 = vpack.c.bf16 %v1769, %v1768
        %v1772 = vunpack.c.l.b16 %v1770
        %v1773 = vunpack.c.h.b16 %v1770
        %v1774 = vpack.c.b16 %v1772, %v1772
        %v1775 = vpack.c.b16 %v1773, %v1773
        %s1778 = scalar_lea.vmem %s315, 72 [#allocation10]
        %1779 = vst [vmem:[%s1778] sm:$0xf] %v1774
        %1780 = vst [vmem:[%s1778 + $0x4] sm:$0xf] %v1775
        %s1781 = scalar_lea.vmem [#allocation2], 160
        %v1782 = vld [vmem:[%s1781] sm:$0xff]
        %v1783 = vld [vmem:[%s1781 + $0x8] sm:$0xff]
        %1784 = vmatprep.subr.bf16.mxu0 %v1084
        %1785 = vmatpush1.bf16.msra.mxu0 %v1083
        %1786 = vmatprep.subr.bf16.mxu0 %v1086
        %1787 = vmatpush1.bf16.msra.mxu0 %v1085
        %1788 = vmatprep.subr.bf16.mxu0 %v1088
        %1789 = vmatpush1.bf16.msra.mxu0 %v1087
        %1790 = vmatprep.subr.bf16.mxu0 %v1090
        %1791 = vmatpush1.bf16.msra.mxu0 %v1089
        %1792 = vmatprep.subr.bf16.mxu0 %v1092
        %1793 = vmatpush1.bf16.msra.mxu0 %v1091
        %1794 = vmatprep.subr.bf16.mxu0 %v1094
        %1795 = vmatpush1.bf16.msra.mxu0 %v1093
        %1796 = vmatprep.subr.bf16.mxu0 %v1096
        %1797 = vmatpush1.bf16.msra.mxu0 %v1095
        %1798 = vmatprep.subr.bf16.mxu0 %v1098
        %1799 = vmatpush1.bf16.msra.mxu0 %v1097
        %1800 = vmatprep.subr.bf16.mxu0 0
        %1801 = vmatpush1.bf16.msra.mxu0 0
        %1802 = vmatprep.subr.bf16.mxu0 0
        %1803 = vmatpush1.bf16.msra.mxu0 0
        %1804 = vmatprep.subr.bf16.mxu0 0
        %1805 = vmatpush1.bf16.msra.mxu0 0
        %1806 = vmatprep.subr.bf16.mxu0 0
        %1807 = vmatpush1.bf16.msra.mxu0 0
        %1808 = vmatprep.subr.bf16.mxu0 0
        %1809 = vmatpush1.bf16.msra.mxu0 0
        %1810 = vmatprep.subr.bf16.mxu0 0
        %1811 = vmatpush1.bf16.msra.mxu0 0
        %1812 = vmatprep.subr.bf16.mxu0 0
        %1813 = vmatpush1.bf16.msra.mxu0 0
        %1814 = vmatprep.subr.bf16.mxu0 0
        %1815 = vmatpush1.bf16.msra.mxu0 0
        %1816 = vmatprep.mubr.bf16.mxu0 0
        %1817 = vmatmul.mubr.bf16.gmra.mrb[0].mxu0 %v1770
        %v1818 = vpop.f32.mrb[0].mxu0
        %v1819 = vadd.f32 0.0, %v1818
        %v1820 = vpop.f32.mrb[0].mxu0
        %v1821 = vadd.f32 0.0, %v1820
        %v1822 = vpop.f32.mrb[0].mxu0
        %v1823 = vadd.f32 0.0, %v1822
        %v1824 = vpop.f32.mrb[0].mxu0
        %v1825 = vadd.f32 0.0, %v1824
        %1826 = vdwg.mxu0
        %v1827 = vadd.f32 %v1821, %v1782
        %v1828 = vadd.f32 %v1825, %v1783
        %v1829 = vtanh.pop %v1827
        %v1830 = vtanh.pop %v1828
        %v1831 = vadd.f32 %v1819, %v1829
        %v1832 = vadd.f32 %v1823, %v1830
        %v1833 = vmul.f32 %v1028, %v1831
        %v1834 = vmul.f32 %v1028, %v1832
        %v1835 = vadd.f32 %v1768, %v1833
        %v1836 = vadd.f32 %v1769, %v1834
        %v1837 = vpack.c.bf16 %v1836, %v1835
        %v1839 = vunpack.c.l.b16 %v1837
        %v1840 = vunpack.c.h.b16 %v1837
        %v1841 = vpack.c.b16 %v1839, %v1839
        %v1842 = vpack.c.b16 %v1840, %v1840
        %s1845 = scalar_lea.vmem %s315, 80 [#allocation10]
        %1846 = vst [vmem:[%s1845] sm:$0xf] %v1841
        %1847 = vst [vmem:[%s1845 + $0x4] sm:$0xf] %v1842
        %s1848 = scalar_lea.vmem [#allocation2], 176
        %v1849 = vld [vmem:[%s1848] sm:$0xff]
        %v1850 = vld [vmem:[%s1848 + $0x8] sm:$0xff]
        %1851 = vmatprep.subr.bf16.mxu0 %v1084
        %1852 = vmatpush1.bf16.msra.mxu0 %v1083
        %1853 = vmatprep.subr.bf16.mxu0 %v1086
        %1854 = vmatpush1.bf16.msra.mxu0 %v1085
        %1855 = vmatprep.subr.bf16.mxu0 %v1088
        %1856 = vmatpush1.bf16.msra.mxu0 %v1087
        %1857 = vmatprep.subr.bf16.mxu0 %v1090
        %1858 = vmatpush1.bf16.msra.mxu0 %v1089
        %1859 = vmatprep.subr.bf16.mxu0 %v1092
        %1860 = vmatpush1.bf16.msra.mxu0 %v1091
        %1861 = vmatprep.subr.bf16.mxu0 %v1094
        %1862 = vmatpush1.bf16.msra.mxu0 %v1093
        %1863 = vmatprep.subr.bf16.mxu0 %v1096
        %1864 = vmatpush1.bf16.msra.mxu0 %v1095
        %1865 = vmatprep.subr.bf16.mxu0 %v1098
        %1866 = vmatpush1.bf16.msra.mxu0 %v1097
        %1867 = vmatprep.subr.bf16.mxu0 0
        %1868 = vmatpush1.bf16.msra.mxu0 0
        %1869 = vmatprep.subr.bf16.mxu0 0
        %1870 = vmatpush1.bf16.msra.mxu0 0
        %1871 = vmatprep.subr.bf16.mxu0 0
        %1872 = vmatpush1.bf16.msra.mxu0 0
        %1873 = vmatprep.subr.bf16.mxu0 0
        %1874 = vmatpush1.bf16.msra.mxu0 0
        %1875 = vmatprep.subr.bf16.mxu0 0
        %1876 = vmatpush1.bf16.msra.mxu0 0
        %1877 = vmatprep.subr.bf16.mxu0 0
        %1878 = vmatpush1.bf16.msra.mxu0 0
        %1879 = vmatprep.subr.bf16.mxu0 0
        %1880 = vmatpush1.bf16.msra.mxu0 0
        %1881 = vmatprep.subr.bf16.mxu0 0
        %1882 = vmatpush1.bf16.msra.mxu0 0
        %1883 = vmatprep.mubr.bf16.mxu0 0
        %1884 = vmatmul.mubr.bf16.gmra.mrb[0].mxu0 %v1837
        %v1885 = vpop.f32.mrb[0].mxu0
        %v1886 = vadd.f32 0.0, %v1885
        %v1887 = vpop.f32.mrb[0].mxu0
        %v1888 = vadd.f32 0.0, %v1887
        %v1889 = vpop.f32.mrb[0].mxu0
        %v1890 = vadd.f32 0.0, %v1889
        %v1891 = vpop.f32.mrb[0].mxu0
        %v1892 = vadd.f32 0.0, %v1891
        %1893 = vdwg.mxu0
        %v1894 = vadd.f32 %v1888, %v1849
        %v1895 = vadd.f32 %v1892, %v1850
        %v1896 = vtanh.pop %v1894
        %v1897 = vtanh.pop %v1895
        %v1898 = vadd.f32 %v1886, %v1896
        %v1899 = vadd.f32 %v1890, %v1897
        %v1900 = vmul.f32 %v1028, %v1898
        %v1901 = vmul.f32 %v1028, %v1899
        %v1902 = vadd.f32 %v1835, %v1900
        %v1903 = vadd.f32 %v1836, %v1901
        %v1904 = vpack.c.bf16 %v1903, %v1902
        %v1906 = vunpack.c.l.b16 %v1904
        %v1907 = vunpack.c.h.b16 %v1904
        %v1908 = vpack.c.b16 %v1906, %v1906
        %v1909 = vpack.c.b16 %v1907, %v1907
        %s1912 = scalar_lea.vmem %s315, 88 [#allocation10]
        %1913 = vst [vmem:[%s1912] sm:$0xf] %v1908
        %1914 = vst [vmem:[%s1912 + $0x4] sm:$0xf] %v1909
        %s1915 = scalar_lea.vmem [#allocation2], 192
        %v1916 = vld [vmem:[%s1915] sm:$0xff]
        %v1917 = vld [vmem:[%s1915 + $0x8] sm:$0xff]
        %1918 = vmatprep.subr.bf16.mxu0 %v1084
        %1919 = vmatpush1.bf16.msra.mxu0 %v1083
        %1920 = vmatprep.subr.bf16.mxu0 %v1086
        %1921 = vmatpush1.bf16.msra.mxu0 %v1085
        %1922 = vmatprep.subr.bf16.mxu0 %v1088
        %1923 = vmatpush1.bf16.msra.mxu0 %v1087
        %1924 = vmatprep.subr.bf16.mxu0 %v1090
        %1925 = vmatpush1.bf16.msra.mxu0 %v1089
        %1926 = vmatprep.subr.bf16.mxu0 %v1092
        %1927 = vmatpush1.bf16.msra.mxu0 %v1091
        %1928 = vmatprep.subr.bf16.mxu0 %v1094
        %1929 = vmatpush1.bf16.msra.mxu0 %v1093
        %1930 = vmatprep.subr.bf16.mxu0 %v1096
        %1931 = vmatpush1.bf16.msra.mxu0 %v1095
        %1932 = vmatprep.subr.bf16.mxu0 %v1098
        %1933 = vmatpush1.bf16.msra.mxu0 %v1097
        %1934 = vmatprep.subr.bf16.mxu0 0
        %1935 = vmatpush1.bf16.msra.mxu0 0
        %1936 = vmatprep.subr.bf16.mxu0 0
        %1937 = vmatpush1.bf16.msra.mxu0 0
        %1938 = vmatprep.subr.bf16.mxu0 0
        %1939 = vmatpush1.bf16.msra.mxu0 0
        %1940 = vmatprep.subr.bf16.mxu0 0
        %1941 = vmatpush1.bf16.msra.mxu0 0
        %1942 = vmatprep.subr.bf16.mxu0 0
        %1943 = vmatpush1.bf16.msra.mxu0 0
        %1944 = vmatprep.subr.bf16.mxu0 0
        %1945 = vmatpush1.bf16.msra.mxu0 0
        %1946 = vmatprep.subr.bf16.mxu0 0
        %1947 = vmatpush1.bf16.msra.mxu0 0
        %1948 = vmatprep.subr.bf16.mxu0 0
        %1949 = vmatpush1.bf16.msra.mxu0 0
        %1950 = vmatprep.mubr.bf16.mxu0 0
        %1951 = vmatmul.mubr.bf16.gmra.mrb[0].mxu0 %v1904
        %v1952 = vpop.f32.mrb[0].mxu0
        %v1953 = vadd.f32 0.0, %v1952
        %v1954 = vpop.f32.mrb[0].mxu0
        %v1955 = vadd.f32 0.0, %v1954
        %v1956 = vpop.f32.mrb[0].mxu0
        %v1957 = vadd.f32 0.0, %v1956
        %v1958 = vpop.f32.mrb[0].mxu0
        %v1959 = vadd.f32 0.0, %v1958
        %1960 = vdwg.mxu0
        %v1961 = vadd.f32 %v1955, %v1916
        %v1962 = vadd.f32 %v1959, %v1917
        %v1963 = vtanh.pop %v1961
        %v1964 = vtanh.pop %v1962
        %v1965 = vadd.f32 %v1953, %v1963
        %v1966 = vadd.f32 %v1957, %v1964
        %v1967 = vmul.f32 %v1028, %v1965
        %v1968 = vmul.f32 %v1028, %v1966
        %v1969 = vadd.f32 %v1902, %v1967
        %v1970 = vadd.f32 %v1903, %v1968
        %v1971 = vpack.c.bf16 %v1970, %v1969
        %v1973 = vunpack.c.l.b16 %v1971
        %v1974 = vunpack.c.h.b16 %v1971
        %v1975 = vpack.c.b16 %v1973, %v1973
        %v1976 = vpack.c.b16 %v1974, %v1974
        %s1979 = scalar_lea.vmem %s315, 96 [#allocation10]
        %1980 = vst [vmem:[%s1979] sm:$0xf] %v1975
        %1981 = vst [vmem:[%s1979 + $0x4] sm:$0xf] %v1976
        %s1982 = scalar_lea.vmem [#allocation2], 208
        %v1983 = vld [vmem:[%s1982] sm:$0xff]
        %v1984 = vld [vmem:[%s1982 + $0x8] sm:$0xff]
        %1985 = vmatprep.subr.bf16.mxu0 %v1084
        %1986 = vmatpush1.bf16.msra.mxu0 %v1083
        %1987 = vmatprep.subr.bf16.mxu0 %v1086
        %1988 = vmatpush1.bf16.msra.mxu0 %v1085
        %1989 = vmatprep.subr.bf16.mxu0 %v1088
        %1990 = vmatpush1.bf16.msra.mxu0 %v1087
        %1991 = vmatprep.subr.bf16.mxu0 %v1090
        %1992 = vmatpush1.bf16.msra.mxu0 %v1089
        %1993 = vmatprep.subr.bf16.mxu0 %v1092
        %1994 = vmatpush1.bf16.msra.mxu0 %v1091
        %1995 = vmatprep.subr.bf16.mxu0 %v1094
        %1996 = vmatpush1.bf16.msra.mxu0 %v1093
        %1997 = vmatprep.subr.bf16.mxu0 %v1096
        %1998 = vmatpush1.bf16.msra.mxu0 %v1095
        %1999 = vmatprep.subr.bf16.mxu0 %v1098
        %2000 = vmatpush1.bf16.msra.mxu0 %v1097
        %2001 = vmatprep.subr.bf16.mxu0 0
        %2002 = vmatpush1.bf16.msra.mxu0 0
        %2003 = vmatprep.subr.bf16.mxu0 0
        %2004 = vmatpush1.bf16.msra.mxu0 0
        %2005 = vmatprep.subr.bf16.mxu0 0
        %2006 = vmatpush1.bf16.msra.mxu0 0
        %2007 = vmatprep.subr.bf16.mxu0 0
        %2008 = vmatpush1.bf16.msra.mxu0 0
        %2009 = vmatprep.subr.bf16.mxu0 0
        %2010 = vmatpush1.bf16.msra.mxu0 0
        %2011 = vmatprep.subr.bf16.mxu0 0
        %2012 = vmatpush1.bf16.msra.mxu0 0
        %2013 = vmatprep.subr.bf16.mxu0 0
        %2014 = vmatpush1.bf16.msra.mxu0 0
        %2015 = vmatprep.subr.bf16.mxu0 0
        %2016 = vmatpush1.bf16.msra.mxu0 0
        %2017 = vmatprep.mubr.bf16.mxu0 0
        %2018 = vmatmul.mubr.bf16.gmra.mrb[0].mxu0 %v1971
        %v2019 = vpop.f32.mrb[0].mxu0
        %v2020 = vadd.f32 0.0, %v2019
        %v2021 = vpop.f32.mrb[0].mxu0
        %v2022 = vadd.f32 0.0, %v2021
        %v2023 = vpop.f32.mrb[0].mxu0
        %v2024 = vadd.f32 0.0, %v2023
        %v2025 = vpop.f32.mrb[0].mxu0
        %v2026 = vadd.f32 0.0, %v2025
        %2027 = vdwg.mxu0
        %v2028 = vadd.f32 %v2022, %v1983
        %v2029 = vadd.f32 %v2026, %v1984
        %v2030 = vtanh.pop %v2028
        %v2031 = vtanh.pop %v2029
        %v2032 = vadd.f32 %v2020, %v2030
        %v2033 = vadd.f32 %v2024, %v2031
        %v2034 = vmul.f32 %v1028, %v2032
        %v2035 = vmul.f32 %v1028, %v2033
        %v2036 = vadd.f32 %v1969, %v2034
        %v2037 = vadd.f32 %v1970, %v2035
        %v2038 = vpack.c.bf16 %v2037, %v2036
        %v2040 = vunpack.c.l.b16 %v2038
        %v2041 = vunpack.c.h.b16 %v2038
        %v2042 = vpack.c.b16 %v2040, %v2040
        %v2043 = vpack.c.b16 %v2041, %v2041
        %s2046 = scalar_lea.vmem %s315, 104 [#allocation10]
        %2047 = vst [vmem:[%s2046] sm:$0xf] %v2042
        %2048 = vst [vmem:[%s2046 + $0x4] sm:$0xf] %v2043
        %s2049 = scalar_lea.vmem [#allocation2], 224
        %v2050 = vld [vmem:[%s2049] sm:$0xff]
        %v2051 = vld [vmem:[%s2049 + $0x8] sm:$0xff]
        %2052 = vmatprep.subr.bf16.mxu0 %v1084
        %2053 = vmatpush1.bf16.msra.mxu0 %v1083
        %2054 = vmatprep.subr.bf16.mxu0 %v1086
        %2055 = vmatpush1.bf16.msra.mxu0 %v1085
        %2056 = vmatprep.subr.bf16.mxu0 %v1088
        %2057 = vmatpush1.bf16.msra.mxu0 %v1087
        %2058 = vmatprep.subr.bf16.mxu0 %v1090
        %2059 = vmatpush1.bf16.msra.mxu0 %v1089
        %2060 = vmatprep.subr.bf16.mxu0 %v1092
        %2061 = vmatpush1.bf16.msra.mxu0 %v1091
        %2062 = vmatprep.subr.bf16.mxu0 %v1094
        %2063 = vmatpush1.bf16.msra.mxu0 %v1093
        %2064 = vmatprep.subr.bf16.mxu0 %v1096
        %2065 = vmatpush1.bf16.msra.mxu0 %v1095
        %2066 = vmatprep.subr.bf16.mxu0 %v1098
        %2067 = vmatpush1.bf16.msra.mxu0 %v1097
        %2068 = vmatprep.subr.bf16.mxu0 0
        %2069 = vmatpush1.bf16.msra.mxu0 0
        %2070 = vmatprep.subr.bf16.mxu0 0
        %2071 = vmatpush1.bf16.msra.mxu0 0
        %2072 = vmatprep.subr.bf16.mxu0 0
        %2073 = vmatpush1.bf16.msra.mxu0 0
        %2074 = vmatprep.subr.bf16.mxu0 0
        %2075 = vmatpush1.bf16.msra.mxu0 0
        %2076 = vmatprep.subr.bf16.mxu0 0
        %2077 = vmatpush1.bf16.msra.mxu0 0
        %2078 = vmatprep.subr.bf16.mxu0 0
        %2079 = vmatpush1.bf16.msra.mxu0 0
        %2080 = vmatprep.subr.bf16.mxu0 0
        %2081 = vmatpush1.bf16.msra.mxu0 0
        %2082 = vmatprep.subr.bf16.mxu0 0
        %2083 = vmatpush1.bf16.msra.mxu0 0
        %2084 = vmatprep.mubr.bf16.mxu0 0
        %2085 = vmatmul.mubr.bf16.gmra.mrb[0].mxu0 %v2038
        %v2086 = vpop.f32.mrb[0].mxu0
        %v2087 = vadd.f32 0.0, %v2086
        %v2088 = vpop.f32.mrb[0].mxu0
        %v2089 = vadd.f32 0.0, %v2088
        %v2090 = vpop.f32.mrb[0].mxu0
        %v2091 = vadd.f32 0.0, %v2090
        %v2092 = vpop.f32.mrb[0].mxu0
        %v2093 = vadd.f32 0.0, %v2092
        %2094 = vdwg.mxu0
        %v2095 = vadd.f32 %v2089, %v2050
        %v2096 = vadd.f32 %v2093, %v2051
        %v2097 = vtanh.pop %v2095
        %v2098 = vtanh.pop %v2096
        %v2099 = vadd.f32 %v2087, %v2097
        %v2100 = vadd.f32 %v2091, %v2098
        %v2101 = vmul.f32 %v1028, %v2099
        %v2102 = vmul.f32 %v1028, %v2100
        %v2103 = vadd.f32 %v2036, %v2101
        %v2104 = vadd.f32 %v2037, %v2102
        %v2105 = vpack.c.bf16 %v2104, %v2103
        %v2107 = vunpack.c.l.b16 %v2105
        %v2108 = vunpack.c.h.b16 %v2105
        %v2109 = vpack.c.b16 %v2107, %v2107
        %v2110 = vpack.c.b16 %v2108, %v2108
        %s2113 = scalar_lea.vmem %s315, 112 [#allocation10]
        %2114 = vst [vmem:[%s2113] sm:$0xf] %v2109
        %2115 = vst [vmem:[%s2113 + $0x4] sm:$0xf] %v2110
        %s2116 = scalar_lea.vmem [#allocation2], 240
        %v2117 = vld [vmem:[%s2116] sm:$0xff]
        %v2118 = vld [vmem:[%s2116 + $0x8] sm:$0xff]
        %2119 = vmatprep.subr.bf16.mxu0 %v1084
        %2120 = vmatpush1.bf16.msra.mxu0 %v1083
        %2121 = vmatprep.subr.bf16.mxu0 %v1086
        %2122 = vmatpush1.bf16.msra.mxu0 %v1085
        %2123 = vmatprep.subr.bf16.mxu0 %v1088
        %2124 = vmatpush1.bf16.msra.mxu0 %v1087
        %2125 = vmatprep.subr.bf16.mxu0 %v1090
        %2126 = vmatpush1.bf16.msra.mxu0 %v1089
        %2127 = vmatprep.subr.bf16.mxu0 %v1092
        %2128 = vmatpush1.bf16.msra.mxu0 %v1091
        %2129 = vmatprep.subr.bf16.mxu0 %v1094
        %2130 = vmatpush1.bf16.msra.mxu0 %v1093
        %2131 = vmatprep.subr.bf16.mxu0 %v1096
        %2132 = vmatpush1.bf16.msra.mxu0 %v1095
        %2133 = vmatprep.subr.bf16.mxu0 %v1098
        %2134 = vmatpush1.bf16.msra.mxu0 %v1097
        %2135 = vmatprep.subr.bf16.mxu0 0
        %2136 = vmatpush1.bf16.msra.mxu0 0
        %2137 = vmatprep.subr.bf16.mxu0 0
        %2138 = vmatpush1.bf16.msra.mxu0 0
        %2139 = vmatprep.subr.bf16.mxu0 0
        %2140 = vmatpush1.bf16.msra.mxu0 0
        %2141 = vmatprep.subr.bf16.mxu0 0
        %2142 = vmatpush1.bf16.msra.mxu0 0
        %2143 = vmatprep.subr.bf16.mxu0 0
        %2144 = vmatpush1.bf16.msra.mxu0 0
        %2145 = vmatprep.subr.bf16.mxu0 0
        %2146 = vmatpush1.bf16.msra.mxu0 0
        %2147 = vmatprep.subr.bf16.mxu0 0
        %2148 = vmatpush1.bf16.msra.mxu0 0
        %2149 = vmatprep.subr.bf16.mxu0 0
        %2150 = vmatpush1.bf16.msra.mxu0 0
        %2151 = vmatprep.mubr.bf16.mxu0 0
        %2152 = vmatmul.mubr.bf16.gmra.mrb[0].mxu0 %v2105
        %v2153 = vpop.f32.mrb[0].mxu0
        %v2154 = vadd.f32 0.0, %v2153
        %v2155 = vpop.f32.mrb[0].mxu0
        %v2156 = vadd.f32 0.0, %v2155
        %v2157 = vpop.f32.mrb[0].mxu0
        %v2158 = vadd.f32 0.0, %v2157
        %v2159 = vpop.f32.mrb[0].mxu0
        %v2160 = vadd.f32 0.0, %v2159
        %2161 = vdwg.mxu0
        %v2162 = vadd.f32 %v2156, %v2117
        %v2163 = vadd.f32 %v2160, %v2118
        %v2164 = vtanh.pop %v2162
        %v2165 = vtanh.pop %v2163
        %v2166 = vadd.f32 %v2154, %v2164
        %v2167 = vadd.f32 %v2158, %v2165
        %v2168 = vmul.f32 %v1028, %v2166
        %v2169 = vmul.f32 %v1028, %v2167
        %v2170 = vadd.f32 %v2103, %v2168
        %v2171 = vadd.f32 %v2104, %v2169
        %v2172 = vpack.c.bf16 %v2171, %v2170
        %v2174 = vunpack.c.l.b16 %v2172
        %v2175 = vunpack.c.h.b16 %v2172
        %v2176 = vpack.c.b16 %v2174, %v2174
        %v2177 = vpack.c.b16 %v2175, %v2175
        %s2180 = scalar_lea.vmem %s315, 120 [#allocation10]
        %2181 = vst [vmem:[%s2180] sm:$0xf] %v2176
        %2182 = vst [vmem:[%s2180 + $0x4] sm:$0xf] %v2177
        %s2183 = scalar_lea.vmem [#allocation2], 256
        %v2184 = vld [vmem:[%s2183] sm:$0xff]
        %v2185 = vld [vmem:[%s2183 + $0x8] sm:$0xff]
        %2186 = vmatprep.subr.bf16.mxu0 %v1084
        %2187 = vmatpush1.bf16.msra.mxu0 %v1083
        %2188 = vmatprep.subr.bf16.mxu0 %v1086
        %2189 = vmatpush1.bf16.msra.mxu0 %v1085
        %2190 = vmatprep.subr.bf16.mxu0 %v1088
        %2191 = vmatpush1.bf16.msra.mxu0 %v1087
        %2192 = vmatprep.subr.bf16.mxu0 %v1090
        %2193 = vmatpush1.bf16.msra.mxu0 %v1089
        %2194 = vmatprep.subr.bf16.mxu0 %v1092
        %2195 = vmatpush1.bf16.msra.mxu0 %v1091
        %2196 = vmatprep.subr.bf16.mxu0 %v1094
        %2197 = vmatpush1.bf16.msra.mxu0 %v1093
        %2198 = vmatprep.subr.bf16.mxu0 %v1096
        %2199 = vmatpush1.bf16.msra.mxu0 %v1095
        %2200 = vmatprep.subr.bf16.mxu0 %v1098
        %2201 = vmatpush1.bf16.msra.mxu0 %v1097
        %2202 = vmatprep.subr.bf16.mxu0 0
        %2203 = vmatpush1.bf16.msra.mxu0 0
        %2204 = vmatprep.subr.bf16.mxu0 0
        %2205 = vmatpush1.bf16.msra.mxu0 0
        %2206 = vmatprep.subr.bf16.mxu0 0
        %2207 = vmatpush1.bf16.msra.mxu0 0
        %2208 = vmatprep.subr.bf16.mxu0 0
        %2209 = vmatpush1.bf16.msra.mxu0 0
        %2210 = vmatprep.subr.bf16.mxu0 0
        %2211 = vmatpush1.bf16.msra.mxu0 0
        %2212 = vmatprep.subr.bf16.mxu0 0
        %2213 = vmatpush1.bf16.msra.mxu0 0
        %2214 = vmatprep.subr.bf16.mxu0 0
        %2215 = vmatpush1.bf16.msra.mxu0 0
        %2216 = vmatprep.subr.bf16.mxu0 0
        %2217 = vmatpush1.bf16.msra.mxu0 0
        %2218 = vmatprep.mubr.bf16.mxu0 0
        %2219 = vmatmul.mubr.bf16.gmra.mrb[0].mxu0 %v2172
        %v2220 = vpop.f32.mrb[0].mxu0
        %v2221 = vadd.f32 0.0, %v2220
        %v2222 = vpop.f32.mrb[0].mxu0
        %v2223 = vadd.f32 0.0, %v2222
        %v2224 = vpop.f32.mrb[0].mxu0
        %v2225 = vadd.f32 0.0, %v2224
        %v2226 = vpop.f32.mrb[0].mxu0
        %v2227 = vadd.f32 0.0, %v2226
        %2228 = vdwg.mxu0
        %v2229 = vadd.f32 %v2223, %v2184
        %v2230 = vadd.f32 %v2227, %v2185
        %v2231 = vtanh.pop %v2229
        %v2232 = vtanh.pop %v2230
        %v2233 = vadd.f32 %v2221, %v2231
        %v2234 = vadd.f32 %v2225, %v2232
        %v2235 = vmul.f32 %v1028, %v2233
        %v2236 = vmul.f32 %v1028, %v2234
        %v2237 = vadd.f32 %v2170, %v2235
        %v2238 = vadd.f32 %v2171, %v2236
        %v2239 = vpack.c.bf16 %v2238, %v2237
        %v2241 = vunpack.c.l.b16 %v2239
        %v2242 = vunpack.c.h.b16 %v2239
        %v2243 = vpack.c.b16 %v2241, %v2241
        %v2244 = vpack.c.b16 %v2242, %v2242
        %s2247 = scalar_lea.vmem %s315, 128 [#allocation10]
        %2248 = vst [vmem:[%s2247] sm:$0xf] %v2243
        %2249 = vst [vmem:[%s2247 + $0x4] sm:$0xf] %v2244
        %s2250 = scalar_lea.vmem [#allocation2], 272
        %v2251 = vld [vmem:[%s2250] sm:$0xff]
        %v2252 = vld [vmem:[%s2250 + $0x8] sm:$0xff]
        %2253 = vmatprep.subr.bf16.mxu0 %v1084
        %2254 = vmatpush1.bf16.msra.mxu0 %v1083
        %2255 = vmatprep.subr.bf16.mxu0 %v1086
        %2256 = vmatpush1.bf16.msra.mxu0 %v1085
        %2257 = vmatprep.subr.bf16.mxu0 %v1088
        %2258 = vmatpush1.bf16.msra.mxu0 %v1087
        %2259 = vmatprep.subr.bf16.mxu0 %v1090
        %2260 = vmatpush1.bf16.msra.mxu0 %v1089
        %2261 = vmatprep.subr.bf16.mxu0 %v1092
        %2262 = vmatpush1.bf16.msra.mxu0 %v1091
        %2263 = vmatprep.subr.bf16.mxu0 %v1094
        %2264 = vmatpush1.bf16.msra.mxu0 %v1093
        %2265 = vmatprep.subr.bf16.mxu0 %v1096
        %2266 = vmatpush1.bf16.msra.mxu0 %v1095
        %2267 = vmatprep.subr.bf16.mxu0 %v1098
        %2268 = vmatpush1.bf16.msra.mxu0 %v1097
        %2269 = vmatprep.subr.bf16.mxu0 0
        %2270 = vmatpush1.bf16.msra.mxu0 0
        %2271 = vmatprep.subr.bf16.mxu0 0
        %2272 = vmatpush1.bf16.msra.mxu0 0
        %2273 = vmatprep.subr.bf16.mxu0 0
        %2274 = vmatpush1.bf16.msra.mxu0 0
        %2275 = vmatprep.subr.bf16.mxu0 0
        %2276 = vmatpush1.bf16.msra.mxu0 0
        %2277 = vmatprep.subr.bf16.mxu0 0
        %2278 = vmatpush1.bf16.msra.mxu0 0
        %2279 = vmatprep.subr.bf16.mxu0 0
        %2280 = vmatpush1.bf16.msra.mxu0 0
        %2281 = vmatprep.subr.bf16.mxu0 0
        %2282 = vmatpush1.bf16.msra.mxu0 0
        %2283 = vmatprep.subr.bf16.mxu0 0
        %2284 = vmatpush1.bf16.msra.mxu0 0
        %2285 = vmatprep.mubr.bf16.mxu0 0
        %2286 = vmatmul.mubr.bf16.gmra.mrb[0].mxu0 %v2239
        %v2287 = vpop.f32.mrb[0].mxu0
        %v2288 = vadd.f32 0.0, %v2287
        %v2289 = vpop.f32.mrb[0].mxu0
        %v2290 = vadd.f32 0.0, %v2289
        %v2291 = vpop.f32.mrb[0].mxu0
        %v2292 = vadd.f32 0.0, %v2291
        %v2293 = vpop.f32.mrb[0].mxu0
        %v2294 = vadd.f32 0.0, %v2293
        %2295 = vdwg.mxu0
        %v2296 = vadd.f32 %v2290, %v2251
        %v2297 = vadd.f32 %v2294, %v2252
        %v2298 = vtanh.pop %v2296
        %v2299 = vtanh.pop %v2297
        %v2300 = vadd.f32 %v2288, %v2298
        %v2301 = vadd.f32 %v2292, %v2299
        %v2302 = vmul.f32 %v1028, %v2300
        %v2303 = vmul.f32 %v1028, %v2301
        %v2304 = vadd.f32 %v2237, %v2302
        %v2305 = vadd.f32 %v2238, %v2303
        %v2306 = vpack.c.bf16 %v2305, %v2304
        %v2308 = vunpack.c.l.b16 %v2306
        %v2309 = vunpack.c.h.b16 %v2306
        %v2310 = vpack.c.b16 %v2308, %v2308
        %v2311 = vpack.c.b16 %v2309, %v2309
        %s2314 = scalar_lea.vmem %s315, 136 [#allocation10]
        %2315 = vst [vmem:[%s2314] sm:$0xf] %v2310
        %2316 = vst [vmem:[%s2314 + $0x4] sm:$0xf] %v2311
        %s2317 = scalar_lea.vmem [#allocation2], 288
        %v2318 = vld [vmem:[%s2317] sm:$0xff]
        %v2319 = vld [vmem:[%s2317 + $0x8] sm:$0xff]
        %2320 = vmatprep.subr.bf16.mxu0 %v1084
        %2321 = vmatpush1.bf16.msra.mxu0 %v1083
        %2322 = vmatprep.subr.bf16.mxu0 %v1086
        %2323 = vmatpush1.bf16.msra.mxu0 %v1085
        %2324 = vmatprep.subr.bf16.mxu0 %v1088
        %2325 = vmatpush1.bf16.msra.mxu0 %v1087
        %2326 = vmatprep.subr.bf16.mxu0 %v1090
        %2327 = vmatpush1.bf16.msra.mxu0 %v1089
        %2328 = vmatprep.subr.bf16.mxu0 %v1092
        %2329 = vmatpush1.bf16.msra.mxu0 %v1091
        %2330 = vmatprep.subr.bf16.mxu0 %v1094
        %2331 = vmatpush1.bf16.msra.mxu0 %v1093
        %2332 = vmatprep.subr.bf16.mxu0 %v1096
        %2333 = vmatpush1.bf16.msra.mxu0 %v1095
        %2334 = vmatprep.subr.bf16.mxu0 %v1098
        %2335 = vmatpush1.bf16.msra.mxu0 %v1097
        %2336 = vmatprep.subr.bf16.mxu0 0
        %2337 = vmatpush1.bf16.msra.mxu0 0
        %2338 = vmatprep.subr.bf16.mxu0 0
        %2339 = vmatpush1.bf16.msra.mxu0 0
        %2340 = vmatprep.subr.bf16.mxu0 0
        %2341 = vmatpush1.bf16.msra.mxu0 0
        %2342 = vmatprep.subr.bf16.mxu0 0
        %2343 = vmatpush1.bf16.msra.mxu0 0
        %2344 = vmatprep.subr.bf16.mxu0 0
        %2345 = vmatpush1.bf16.msra.mxu0 0
        %2346 = vmatprep.subr.bf16.mxu0 0
        %2347 = vmatpush1.bf16.msra.mxu0 0
        %2348 = vmatprep.subr.bf16.mxu0 0
        %2349 = vmatpush1.bf16.msra.mxu0 0
        %2350 = vmatprep.subr.bf16.mxu0 0
        %2351 = vmatpush1.bf16.msra.mxu0 0
        %2352 = vmatprep.mubr.bf16.mxu0 0
        %2353 = vmatmul.mubr.bf16.gmra.mrb[0].mxu0 %v2306
        %v2354 = vpop.f32.mrb[0].mxu0
        %v2355 = vadd.f32 0.0, %v2354
        %v2356 = vpop.f32.mrb[0].mxu0
        %v2357 = vadd.f32 0.0, %v2356
        %v2358 = vpop.f32.mrb[0].mxu0
        %v2359 = vadd.f32 0.0, %v2358
        %v2360 = vpop.f32.mrb[0].mxu0
        %v2361 = vadd.f32 0.0, %v2360
        %2362 = vdwg.mxu0
        %v2363 = vadd.f32 %v2357, %v2318
        %v2364 = vadd.f32 %v2361, %v2319
        %v2365 = vtanh.pop %v2363
        %v2366 = vtanh.pop %v2364
        %v2367 = vadd.f32 %v2355, %v2365
        %v2368 = vadd.f32 %v2359, %v2366
        %v2369 = vmul.f32 %v1028, %v2367
        %v2370 = vmul.f32 %v1028, %v2368
        %v2371 = vadd.f32 %v2304, %v2369
        %v2372 = vadd.f32 %v2305, %v2370
        %v2373 = vpack.c.bf16 %v2372, %v2371
        %v2375 = vunpack.c.l.b16 %v2373
        %v2376 = vunpack.c.h.b16 %v2373
        %v2377 = vpack.c.b16 %v2375, %v2375
        %v2378 = vpack.c.b16 %v2376, %v2376
        %s2381 = scalar_lea.vmem %s315, 144 [#allocation10]
        %2382 = vst [vmem:[%s2381] sm:$0xf] %v2377
        %2383 = vst [vmem:[%s2381 + $0x4] sm:$0xf] %v2378
        %s2384 = scalar_lea.vmem [#allocation2], 304
        %v2385 = vld [vmem:[%s2384] sm:$0xff]
        %v2386 = vld [vmem:[%s2384 + $0x8] sm:$0xff]
        %2387 = vmatprep.subr.bf16.mxu0 %v1084
        %2388 = vmatpush1.bf16.msra.mxu0 %v1083
        %2389 = vmatprep.subr.bf16.mxu0 %v1086
        %2390 = vmatpush1.bf16.msra.mxu0 %v1085
        %2391 = vmatprep.subr.bf16.mxu0 %v1088
        %2392 = vmatpush1.bf16.msra.mxu0 %v1087
        %2393 = vmatprep.subr.bf16.mxu0 %v1090
        %2394 = vmatpush1.bf16.msra.mxu0 %v1089
        %2395 = vmatprep.subr.bf16.mxu0 %v1092
        %2396 = vmatpush1.bf16.msra.mxu0 %v1091
        %2397 = vmatprep.subr.bf16.mxu0 %v1094
        %2398 = vmatpush1.bf16.msra.mxu0 %v1093
        %2399 = vmatprep.subr.bf16.mxu0 %v1096
        %2400 = vmatpush1.bf16.msra.mxu0 %v1095
        %2401 = vmatprep.subr.bf16.mxu0 %v1098
        %2402 = vmatpush1.bf16.msra.mxu0 %v1097
        %2403 = vmatprep.subr.bf16.mxu0 0
        %2404 = vmatpush1.bf16.msra.mxu0 0
        %2405 = vmatprep.subr.bf16.mxu0 0
        %2406 = vmatpush1.bf16.msra.mxu0 0
        %2407 = vmatprep.subr.bf16.mxu0 0
        %2408 = vmatpush1.bf16.msra.mxu0 0
        %2409 = vmatprep.subr.bf16.mxu0 0
        %2410 = vmatpush1.bf16.msra.mxu0 0
        %2411 = vmatprep.subr.bf16.mxu0 0
        %2412 = vmatpush1.bf16.msra.mxu0 0
        %2413 = vmatprep.subr.bf16.mxu0 0
        %2414 = vmatpush1.bf16.msra.mxu0 0
        %2415 = vmatprep.subr.bf16.mxu0 0
        %2416 = vmatpush1.bf16.msra.mxu0 0
        %2417 = vmatprep.subr.bf16.mxu0 0
        %2418 = vmatpush1.bf16.msra.mxu0 0
        %2419 = vmatprep.mubr.bf16.mxu0 0
        %2420 = vmatmul.mubr.bf16.gmra.mrb[0].mxu0 %v2373
        %v2421 = vpop.f32.mrb[0].mxu0
        %v2422 = vadd.f32 0.0, %v2421
        %v2423 = vpop.f32.mrb[0].mxu0
        %v2424 = vadd.f32 0.0, %v2423
        %v2425 = vpop.f32.mrb[0].mxu0
        %v2426 = vadd.f32 0.0, %v2425
        %v2427 = vpop.f32.mrb[0].mxu0
        %v2428 = vadd.f32 0.0, %v2427
        %2429 = vdwg.mxu0
        %v2430 = vadd.f32 %v2424, %v2385
        %v2431 = vadd.f32 %v2428, %v2386
        %v2432 = vtanh.pop %v2430
        %v2433 = vtanh.pop %v2431
        %v2434 = vadd.f32 %v2422, %v2432
        %v2435 = vadd.f32 %v2426, %v2433
        %v2436 = vmul.f32 %v1028, %v2434
        %v2437 = vmul.f32 %v1028, %v2435
        %v2438 = vadd.f32 %v2371, %v2436
        %v2439 = vadd.f32 %v2372, %v2437
        %v2440 = vpack.c.bf16 %v2439, %v2438
        %v2442 = vunpack.c.l.b16 %v2440
        %v2443 = vunpack.c.h.b16 %v2440
        %v2444 = vpack.c.b16 %v2442, %v2442
        %v2445 = vpack.c.b16 %v2443, %v2443
        %s2448 = scalar_lea.vmem %s315, 152 [#allocation10]
        %2449 = vst [vmem:[%s2448] sm:$0xf] %v2444
        %2450 = vst [vmem:[%s2448 + $0x4] sm:$0xf] %v2445
        %s2451 = scalar_lea.vmem [#allocation2], 320
        %v2452 = vld [vmem:[%s2451] sm:$0xff]
        %v2453 = vld [vmem:[%s2451 + $0x8] sm:$0xff]
        %2454 = vmatprep.subr.bf16.mxu0 %v1084
        %2455 = vmatpush1.bf16.msra.mxu0 %v1083
        %2456 = vmatprep.subr.bf16.mxu0 %v1086
        %2457 = vmatpush1.bf16.msra.mxu0 %v1085
        %2458 = vmatprep.subr.bf16.mxu0 %v1088
        %2459 = vmatpush1.bf16.msra.mxu0 %v1087
        %2460 = vmatprep.subr.bf16.mxu0 %v1090
        %2461 = vmatpush1.bf16.msra.mxu0 %v1089
        %2462 = vmatprep.subr.bf16.mxu0 %v1092
        %2463 = vmatpush1.bf16.msra.mxu0 %v1091
        %2464 = vmatprep.subr.bf16.mxu0 %v1094
        %2465 = vmatpush1.bf16.msra.mxu0 %v1093
        %2466 = vmatprep.subr.bf16.mxu0 %v1096
        %2467 = vmatpush1.bf16.msra.mxu0 %v1095
        %2468 = vmatprep.subr.bf16.mxu0 %v1098
        %2469 = vmatpush1.bf16.msra.mxu0 %v1097
        %2470 = vmatprep.subr.bf16.mxu0 0
        %2471 = vmatpush1.bf16.msra.mxu0 0
        %2472 = vmatprep.subr.bf16.mxu0 0
        %2473 = vmatpush1.bf16.msra.mxu0 0
        %2474 = vmatprep.subr.bf16.mxu0 0
        %2475 = vmatpush1.bf16.msra.mxu0 0
        %2476 = vmatprep.subr.bf16.mxu0 0
        %2477 = vmatpush1.bf16.msra.mxu0 0
        %2478 = vmatprep.subr.bf16.mxu0 0
        %2479 = vmatpush1.bf16.msra.mxu0 0
        %2480 = vmatprep.subr.bf16.mxu0 0
        %2481 = vmatpush1.bf16.msra.mxu0 0
        %2482 = vmatprep.subr.bf16.mxu0 0
        %2483 = vmatpush1.bf16.msra.mxu0 0
        %2484 = vmatprep.subr.bf16.mxu0 0
        %2485 = vmatpush1.bf16.msra.mxu0 0
        %2486 = vmatprep.mubr.bf16.mxu0 0
        %2487 = vmatmul.mubr.bf16.gmra.mrb[0].mxu0 %v2440
        %v2488 = vpop.f32.mrb[0].mxu0
        %v2489 = vadd.f32 0.0, %v2488
        %v2490 = vpop.f32.mrb[0].mxu0
        %v2491 = vadd.f32 0.0, %v2490
        %v2492 = vpop.f32.mrb[0].mxu0
        %v2493 = vadd.f32 0.0, %v2492
        %v2494 = vpop.f32.mrb[0].mxu0
        %v2495 = vadd.f32 0.0, %v2494
        %2496 = vdwg.mxu0
        %v2497 = vadd.f32 %v2491, %v2452
        %v2498 = vadd.f32 %v2495, %v2453
        %v2499 = vtanh.pop %v2497
        %v2500 = vtanh.pop %v2498
        %v2501 = vadd.f32 %v2489, %v2499
        %v2502 = vadd.f32 %v2493, %v2500
        %v2503 = vmul.f32 %v1028, %v2501
        %v2504 = vmul.f32 %v1028, %v2502
        %v2505 = vadd.f32 %v2438, %v2503
        %v2506 = vadd.f32 %v2439, %v2504
        %v2507 = vpack.c.bf16 %v2506, %v2505
        %v2509 = vunpack.c.l.b16 %v2507
        %v2510 = vunpack.c.h.b16 %v2507
        %v2511 = vpack.c.b16 %v2509, %v2509
        %v2512 = vpack.c.b16 %v2510, %v2510
        %s2515 = scalar_lea.vmem %s315, 160 [#allocation10]
        %2516 = vst [vmem:[%s2515] sm:$0xf] %v2511
        %2517 = vst [vmem:[%s2515 + $0x4] sm:$0xf] %v2512
        %s2518 = scalar_lea.vmem [#allocation2], 336
        %v2519 = vld [vmem:[%s2518] sm:$0xff]
        %v2520 = vld [vmem:[%s2518 + $0x8] sm:$0xff]
        %2521 = vmatprep.subr.bf16.mxu0 %v1084
        %2522 = vmatpush1.bf16.msra.mxu0 %v1083
        %2523 = vmatprep.subr.bf16.mxu0 %v1086
        %2524 = vmatpush1.bf16.msra.mxu0 %v1085
        %2525 = vmatprep.subr.bf16.mxu0 %v1088
        %2526 = vmatpush1.bf16.msra.mxu0 %v1087
        %2527 = vmatprep.subr.bf16.mxu0 %v1090
        %2528 = vmatpush1.bf16.msra.mxu0 %v1089
        %2529 = vmatprep.subr.bf16.mxu0 %v1092
        %2530 = vmatpush1.bf16.msra.mxu0 %v1091
        %2531 = vmatprep.subr.bf16.mxu0 %v1094
        %2532 = vmatpush1.bf16.msra.mxu0 %v1093
        %2533 = vmatprep.subr.bf16.mxu0 %v1096
        %2534 = vmatpush1.bf16.msra.mxu0 %v1095
        %2535 = vmatprep.subr.bf16.mxu0 %v1098
        %2536 = vmatpush1.bf16.msra.mxu0 %v1097
        %2537 = vmatprep.subr.bf16.mxu0 0
        %2538 = vmatpush1.bf16.msra.mxu0 0
        %2539 = vmatprep.subr.bf16.mxu0 0
        %2540 = vmatpush1.bf16.msra.mxu0 0
        %2541 = vmatprep.subr.bf16.mxu0 0
        %2542 = vmatpush1.bf16.msra.mxu0 0
        %2543 = vmatprep.subr.bf16.mxu0 0
        %2544 = vmatpush1.bf16.msra.mxu0 0
        %2545 = vmatprep.subr.bf16.mxu0 0
        %2546 = vmatpush1.bf16.msra.mxu0 0
        %2547 = vmatprep.subr.bf16.mxu0 0
        %2548 = vmatpush1.bf16.msra.mxu0 0
        %2549 = vmatprep.subr.bf16.mxu0 0
        %2550 = vmatpush1.bf16.msra.mxu0 0
        %2551 = vmatprep.subr.bf16.mxu0 0
        %2552 = vmatpush1.bf16.msra.mxu0 0
        %2553 = vmatprep.mubr.bf16.mxu0 0
        %2554 = vmatmul.mubr.bf16.gmra.mrb[0].mxu0 %v2507
        %v2555 = vpop.f32.mrb[0].mxu0
        %v2556 = vadd.f32 0.0, %v2555
        %v2557 = vpop.f32.mrb[0].mxu0
        %v2558 = vadd.f32 0.0, %v2557
        %v2559 = vpop.f32.mrb[0].mxu0
        %v2560 = vadd.f32 0.0, %v2559
        %v2561 = vpop.f32.mrb[0].mxu0
        %v2562 = vadd.f32 0.0, %v2561
        %2563 = vdwg.mxu0
        %v2564 = vadd.f32 %v2558, %v2519
        %v2565 = vadd.f32 %v2562, %v2520
        %v2566 = vtanh.pop %v2564
        %v2567 = vtanh.pop %v2565
        %v2568 = vadd.f32 %v2556, %v2566
        %v2569 = vadd.f32 %v2560, %v2567
        %v2570 = vmul.f32 %v1028, %v2568
        %v2571 = vmul.f32 %v1028, %v2569
        %v2572 = vadd.f32 %v2505, %v2570
        %v2573 = vadd.f32 %v2506, %v2571
        %v2574 = vpack.c.bf16 %v2573, %v2572
        %v2576 = vunpack.c.l.b16 %v2574
        %v2577 = vunpack.c.h.b16 %v2574
        %v2578 = vpack.c.b16 %v2576, %v2576
        %v2579 = vpack.c.b16 %v2577, %v2577
        %s2582 = scalar_lea.vmem %s315, 168 [#allocation10]
        %2583 = vst [vmem:[%s2582] sm:$0xf] %v2578
        %2584 = vst [vmem:[%s2582 + $0x4] sm:$0xf] %v2579
        %s2585 = scalar_lea.vmem [#allocation2], 352
        %v2586 = vld [vmem:[%s2585] sm:$0xff]
        %v2587 = vld [vmem:[%s2585 + $0x8] sm:$0xff]
        %2588 = vmatprep.subr.bf16.mxu0 %v1084
        %2589 = vmatpush1.bf16.msra.mxu0 %v1083
        %2590 = vmatprep.subr.bf16.mxu0 %v1086
        %2591 = vmatpush1.bf16.msra.mxu0 %v1085
        %2592 = vmatprep.subr.bf16.mxu0 %v1088
        %2593 = vmatpush1.bf16.msra.mxu0 %v1087
        %2594 = vmatprep.subr.bf16.mxu0 %v1090
        %2595 = vmatpush1.bf16.msra.mxu0 %v1089
        %2596 = vmatprep.subr.bf16.mxu0 %v1092
        %2597 = vmatpush1.bf16.msra.mxu0 %v1091
        %2598 = vmatprep.subr.bf16.mxu0 %v1094
        %2599 = vmatpush1.bf16.msra.mxu0 %v1093
        %2600 = vmatprep.subr.bf16.mxu0 %v1096
        %2601 = vmatpush1.bf16.msra.mxu0 %v1095
        %2602 = vmatprep.subr.bf16.mxu0 %v1098
        %2603 = vmatpush1.bf16.msra.mxu0 %v1097
        %2604 = vmatprep.subr.bf16.mxu0 0
        %2605 = vmatpush1.bf16.msra.mxu0 0
        %2606 = vmatprep.subr.bf16.mxu0 0
        %2607 = vmatpush1.bf16.msra.mxu0 0
        %2608 = vmatprep.subr.bf16.mxu0 0
        %2609 = vmatpush1.bf16.msra.mxu0 0
        %2610 = vmatprep.subr.bf16.mxu0 0
        %2611 = vmatpush1.bf16.msra.mxu0 0
        %2612 = vmatprep.subr.bf16.mxu0 0
        %2613 = vmatpush1.bf16.msra.mxu0 0
        %2614 = vmatprep.subr.bf16.mxu0 0
        %2615 = vmatpush1.bf16.msra.mxu0 0
        %2616 = vmatprep.subr.bf16.mxu0 0
        %2617 = vmatpush1.bf16.msra.mxu0 0
        %2618 = vmatprep.subr.bf16.mxu0 0
        %2619 = vmatpush1.bf16.msra.mxu0 0
        %2620 = vmatprep.mubr.bf16.mxu0 0
        %2621 = vmatmul.mubr.bf16.gmra.mrb[0].mxu0 %v2574
        %v2622 = vpop.f32.mrb[0].mxu0
        %v2623 = vadd.f32 0.0, %v2622
        %v2624 = vpop.f32.mrb[0].mxu0
        %v2625 = vadd.f32 0.0, %v2624
        %v2626 = vpop.f32.mrb[0].mxu0
        %v2627 = vadd.f32 0.0, %v2626
        %v2628 = vpop.f32.mrb[0].mxu0
        %v2629 = vadd.f32 0.0, %v2628
        %2630 = vdwg.mxu0
        %v2631 = vadd.f32 %v2625, %v2586
        %v2632 = vadd.f32 %v2629, %v2587
        %v2633 = vtanh.pop %v2631
        %v2634 = vtanh.pop %v2632
        %v2635 = vadd.f32 %v2623, %v2633
        %v2636 = vadd.f32 %v2627, %v2634
        %v2637 = vmul.f32 %v1028, %v2635
        %v2638 = vmul.f32 %v1028, %v2636
        %v2639 = vadd.f32 %v2572, %v2637
        %v2640 = vadd.f32 %v2573, %v2638
        %v2641 = vpack.c.bf16 %v2640, %v2639
        %v2643 = vunpack.c.l.b16 %v2641
        %v2644 = vunpack.c.h.b16 %v2641
        %v2645 = vpack.c.b16 %v2643, %v2643
        %v2646 = vpack.c.b16 %v2644, %v2644
        %s2649 = scalar_lea.vmem %s315, 176 [#allocation10]
        %2650 = vst [vmem:[%s2649] sm:$0xf] %v2645
        %2651 = vst [vmem:[%s2649 + $0x4] sm:$0xf] %v2646
        %s2652 = scalar_lea.vmem [#allocation2], 368
        %v2653 = vld [vmem:[%s2652] sm:$0xff]
        %v2654 = vld [vmem:[%s2652 + $0x8] sm:$0xff]
        %2655 = vmatprep.subr.bf16.mxu0 %v1084
        %2656 = vmatpush1.bf16.msra.mxu0 %v1083
        %2657 = vmatprep.subr.bf16.mxu0 %v1086
        %2658 = vmatpush1.bf16.msra.mxu0 %v1085
        %2659 = vmatprep.subr.bf16.mxu0 %v1088
        %2660 = vmatpush1.bf16.msra.mxu0 %v1087
        %2661 = vmatprep.subr.bf16.mxu0 %v1090
        %2662 = vmatpush1.bf16.msra.mxu0 %v1089
        %2663 = vmatprep.subr.bf16.mxu0 %v1092
        %2664 = vmatpush1.bf16.msra.mxu0 %v1091
        %2665 = vmatprep.subr.bf16.mxu0 %v1094
        %2666 = vmatpush1.bf16.msra.mxu0 %v1093
        %2667 = vmatprep.subr.bf16.mxu0 %v1096
        %2668 = vmatpush1.bf16.msra.mxu0 %v1095
        %2669 = vmatprep.subr.bf16.mxu0 %v1098
        %2670 = vmatpush1.bf16.msra.mxu0 %v1097
        %2671 = vmatprep.subr.bf16.mxu0 0
        %2672 = vmatpush1.bf16.msra.mxu0 0
        %2673 = vmatprep.subr.bf16.mxu0 0
        %2674 = vmatpush1.bf16.msra.mxu0 0
        %2675 = vmatprep.subr.bf16.mxu0 0
        %2676 = vmatpush1.bf16.msra.mxu0 0
        %2677 = vmatprep.subr.bf16.mxu0 0
        %2678 = vmatpush1.bf16.msra.mxu0 0
        %2679 = vmatprep.subr.bf16.mxu0 0
        %2680 = vmatpush1.bf16.msra.mxu0 0
        %2681 = vmatprep.subr.bf16.mxu0 0
        %2682 = vmatpush1.bf16.msra.mxu0 0
        %2683 = vmatprep.subr.bf16.mxu0 0
        %2684 = vmatpush1.bf16.msra.mxu0 0
        %2685 = vmatprep.subr.bf16.mxu0 0
        %2686 = vmatpush1.bf16.msra.mxu0 0
        %2687 = vmatprep.mubr.bf16.mxu0 0
        %2688 = vmatmul.mubr.bf16.gmra.mrb[0].mxu0 %v2641
        %v2689 = vpop.f32.mrb[0].mxu0
        %v2690 = vadd.f32 0.0, %v2689
        %v2691 = vpop.f32.mrb[0].mxu0
        %v2692 = vadd.f32 0.0, %v2691
        %v2693 = vpop.f32.mrb[0].mxu0
        %v2694 = vadd.f32 0.0, %v2693
        %v2695 = vpop.f32.mrb[0].mxu0
        %v2696 = vadd.f32 0.0, %v2695
        %2697 = vdwg.mxu0
        %v2698 = vadd.f32 %v2692, %v2653
        %v2699 = vadd.f32 %v2696, %v2654
        %v2700 = vtanh.pop %v2698
        %v2701 = vtanh.pop %v2699
        %v2702 = vadd.f32 %v2690, %v2700
        %v2703 = vadd.f32 %v2694, %v2701
        %v2704 = vmul.f32 %v1028, %v2702
        %v2705 = vmul.f32 %v1028, %v2703
        %v2706 = vadd.f32 %v2639, %v2704
        %v2707 = vadd.f32 %v2640, %v2705
        %v2708 = vpack.c.bf16 %v2707, %v2706
        %v2710 = vunpack.c.l.b16 %v2708
        %v2711 = vunpack.c.h.b16 %v2708
        %v2712 = vpack.c.b16 %v2710, %v2710
        %v2713 = vpack.c.b16 %v2711, %v2711
        %s2716 = scalar_lea.vmem %s315, 184 [#allocation10]
        %2717 = vst [vmem:[%s2716] sm:$0xf] %v2712
        %2718 = vst [vmem:[%s2716 + $0x4] sm:$0xf] %v2713
        %s2719 = scalar_lea.vmem [#allocation2], 384
        %v2720 = vld [vmem:[%s2719] sm:$0xff]
        %v2721 = vld [vmem:[%s2719 + $0x8] sm:$0xff]
        %2722 = vmatprep.subr.bf16.mxu0 %v1084
        %2723 = vmatpush1.bf16.msra.mxu0 %v1083
        %2724 = vmatprep.subr.bf16.mxu0 %v1086
        %2725 = vmatpush1.bf16.msra.mxu0 %v1085
        %2726 = vmatprep.subr.bf16.mxu0 %v1088
        %2727 = vmatpush1.bf16.msra.mxu0 %v1087
        %2728 = vmatprep.subr.bf16.mxu0 %v1090
        %2729 = vmatpush1.bf16.msra.mxu0 %v1089
        %2730 = vmatprep.subr.bf16.mxu0 %v1092
        %2731 = vmatpush1.bf16.msra.mxu0 %v1091
        %2732 = vmatprep.subr.bf16.mxu0 %v1094
        %2733 = vmatpush1.bf16.msra.mxu0 %v1093
        %2734 = vmatprep.subr.bf16.mxu0 %v1096
        %2735 = vmatpush1.bf16.msra.mxu0 %v1095
        %2736 = vmatprep.subr.bf16.mxu0 %v1098
        %2737 = vmatpush1.bf16.msra.mxu0 %v1097
        %2738 = vmatprep.subr.bf16.mxu0 0
        %2739 = vmatpush1.bf16.msra.mxu0 0
        %2740 = vmatprep.subr.bf16.mxu0 0
        %2741 = vmatpush1.bf16.msra.mxu0 0
        %2742 = vmatprep.subr.bf16.mxu0 0
        %2743 = vmatpush1.bf16.msra.mxu0 0
        %2744 = vmatprep.subr.bf16.mxu0 0
        %2745 = vmatpush1.bf16.msra.mxu0 0
        %2746 = vmatprep.subr.bf16.mxu0 0
        %2747 = vmatpush1.bf16.msra.mxu0 0
        %2748 = vmatprep.subr.bf16.mxu0 0
        %2749 = vmatpush1.bf16.msra.mxu0 0
        %2750 = vmatprep.subr.bf16.mxu0 0
        %2751 = vmatpush1.bf16.msra.mxu0 0
        %2752 = vmatprep.subr.bf16.mxu0 0
        %2753 = vmatpush1.bf16.msra.mxu0 0
        %2754 = vmatprep.mubr.bf16.mxu0 0
        %2755 = vmatmul.mubr.bf16.gmra.mrb[0].mxu0 %v2708
        %v2756 = vpop.f32.mrb[0].mxu0
        %v2757 = vadd.f32 0.0, %v2756
        %v2758 = vpop.f32.mrb[0].mxu0
        %v2759 = vadd.f32 0.0, %v2758
        %v2760 = vpop.f32.mrb[0].mxu0
        %v2761 = vadd.f32 0.0, %v2760
        %v2762 = vpop.f32.mrb[0].mxu0
        %v2763 = vadd.f32 0.0, %v2762
        %2764 = vdwg.mxu0
        %v2765 = vadd.f32 %v2759, %v2720
        %v2766 = vadd.f32 %v2763, %v2721
        %v2767 = vtanh.pop %v2765
        %v2768 = vtanh.pop %v2766
        %v2769 = vadd.f32 %v2757, %v2767
        %v2770 = vadd.f32 %v2761, %v2768
        %v2771 = vmul.f32 %v1028, %v2769
        %v2772 = vmul.f32 %v1028, %v2770
        %v2773 = vadd.f32 %v2706, %v2771
        %v2774 = vadd.f32 %v2707, %v2772
        %v2775 = vpack.c.bf16 %v2774, %v2773
        %v2777 = vunpack.c.l.b16 %v2775
        %v2778 = vunpack.c.h.b16 %v2775
        %v2779 = vpack.c.b16 %v2777, %v2777
        %v2780 = vpack.c.b16 %v2778, %v2778
        %s2783 = scalar_lea.vmem %s315, 192 [#allocation10]
        %2784 = vst [vmem:[%s2783] sm:$0xf] %v2779
        %2785 = vst [vmem:[%s2783 + $0x4] sm:$0xf] %v2780
        %s2786 = scalar_lea.vmem [#allocation2], 400
        %v2787 = vld [vmem:[%s2786] sm:$0xff]
        %v2788 = vld [vmem:[%s2786 + $0x8] sm:$0xff]
        %2789 = vmatprep.subr.bf16.mxu0 %v1084
        %2790 = vmatpush1.bf16.msra.mxu0 %v1083
        %2791 = vmatprep.subr.bf16.mxu0 %v1086
        %2792 = vmatpush1.bf16.msra.mxu0 %v1085
        %2793 = vmatprep.subr.bf16.mxu0 %v1088
        %2794 = vmatpush1.bf16.msra.mxu0 %v1087
        %2795 = vmatprep.subr.bf16.mxu0 %v1090
        %2796 = vmatpush1.bf16.msra.mxu0 %v1089
        %2797 = vmatprep.subr.bf16.mxu0 %v1092
        %2798 = vmatpush1.bf16.msra.mxu0 %v1091
        %2799 = vmatprep.subr.bf16.mxu0 %v1094
        %2800 = vmatpush1.bf16.msra.mxu0 %v1093
        %2801 = vmatprep.subr.bf16.mxu0 %v1096
        %2802 = vmatpush1.bf16.msra.mxu0 %v1095
        %2803 = vmatprep.subr.bf16.mxu0 %v1098
        %2804 = vmatpush1.bf16.msra.mxu0 %v1097
        %2805 = vmatprep.subr.bf16.mxu0 0
        %2806 = vmatpush1.bf16.msra.mxu0 0
        %2807 = vmatprep.subr.bf16.mxu0 0
        %2808 = vmatpush1.bf16.msra.mxu0 0
        %2809 = vmatprep.subr.bf16.mxu0 0
        %2810 = vmatpush1.bf16.msra.mxu0 0
        %2811 = vmatprep.subr.bf16.mxu0 0
        %2812 = vmatpush1.bf16.msra.mxu0 0
        %2813 = vmatprep.subr.bf16.mxu0 0
        %2814 = vmatpush1.bf16.msra.mxu0 0
        %2815 = vmatprep.subr.bf16.mxu0 0
        %2816 = vmatpush1.bf16.msra.mxu0 0
        %2817 = vmatprep.subr.bf16.mxu0 0
        %2818 = vmatpush1.bf16.msra.mxu0 0
        %2819 = vmatprep.subr.bf16.mxu0 0
        %2820 = vmatpush1.bf16.msra.mxu0 0
        %2821 = vmatprep.mubr.bf16.mxu0 0
        %2822 = vmatmul.mubr.bf16.gmra.mrb[0].mxu0 %v2775
        %v2823 = vpop.f32.mrb[0].mxu0
        %v2824 = vadd.f32 0.0, %v2823
        %v2825 = vpop.f32.mrb[0].mxu0
        %v2826 = vadd.f32 0.0, %v2825
        %v2827 = vpop.f32.mrb[0].mxu0
        %v2828 = vadd.f32 0.0, %v2827
        %v2829 = vpop.f32.mrb[0].mxu0
        %v2830 = vadd.f32 0.0, %v2829
        %2831 = vdwg.mxu0
        %v2832 = vadd.f32 %v2826, %v2787
        %v2833 = vadd.f32 %v2830, %v2788
        %v2834 = vtanh.pop %v2832
        %v2835 = vtanh.pop %v2833
        %v2836 = vadd.f32 %v2824, %v2834
        %v2837 = vadd.f32 %v2828, %v2835
        %v2838 = vmul.f32 %v1028, %v2836
        %v2839 = vmul.f32 %v1028, %v2837
        %v2840 = vadd.f32 %v2773, %v2838
        %v2841 = vadd.f32 %v2774, %v2839
        %v2842 = vpack.c.bf16 %v2841, %v2840
        %v2844 = vunpack.c.l.b16 %v2842
        %v2845 = vunpack.c.h.b16 %v2842
        %v2846 = vpack.c.b16 %v2844, %v2844
        %v2847 = vpack.c.b16 %v2845, %v2845
        %s2850 = scalar_lea.vmem %s315, 200 [#allocation10]
        %2851 = vst [vmem:[%s2850] sm:$0xf] %v2846
        %2852 = vst [vmem:[%s2850 + $0x4] sm:$0xf] %v2847
        %s2853 = scalar_lea.vmem [#allocation2], 416
        %v2854 = vld [vmem:[%s2853] sm:$0xff]
        %v2855 = vld [vmem:[%s2853 + $0x8] sm:$0xff]
        %2856 = vmatprep.subr.bf16.mxu0 %v1084
        %2857 = vmatpush1.bf16.msra.mxu0 %v1083
        %2858 = vmatprep.subr.bf16.mxu0 %v1086
        %2859 = vmatpush1.bf16.msra.mxu0 %v1085
        %2860 = vmatprep.subr.bf16.mxu0 %v1088
        %2861 = vmatpush1.bf16.msra.mxu0 %v1087
        %2862 = vmatprep.subr.bf16.mxu0 %v1090
        %2863 = vmatpush1.bf16.msra.mxu0 %v1089
        %2864 = vmatprep.subr.bf16.mxu0 %v1092
        %2865 = vmatpush1.bf16.msra.mxu0 %v1091
        %2866 = vmatprep.subr.bf16.mxu0 %v1094
        %2867 = vmatpush1.bf16.msra.mxu0 %v1093
        %2868 = vmatprep.subr.bf16.mxu0 %v1096
        %2869 = vmatpush1.bf16.msra.mxu0 %v1095
        %2870 = vmatprep.subr.bf16.mxu0 %v1098
        %2871 = vmatpush1.bf16.msra.mxu0 %v1097
        %2872 = vmatprep.subr.bf16.mxu0 0
        %2873 = vmatpush1.bf16.msra.mxu0 0
        %2874 = vmatprep.subr.bf16.mxu0 0
        %2875 = vmatpush1.bf16.msra.mxu0 0
        %2876 = vmatprep.subr.bf16.mxu0 0
        %2877 = vmatpush1.bf16.msra.mxu0 0
        %2878 = vmatprep.subr.bf16.mxu0 0
        %2879 = vmatpush1.bf16.msra.mxu0 0
        %2880 = vmatprep.subr.bf16.mxu0 0
        %2881 = vmatpush1.bf16.msra.mxu0 0
        %2882 = vmatprep.subr.bf16.mxu0 0
        %2883 = vmatpush1.bf16.msra.mxu0 0
        %2884 = vmatprep.subr.bf16.mxu0 0
        %2885 = vmatpush1.bf16.msra.mxu0 0
        %2886 = vmatprep.subr.bf16.mxu0 0
        %2887 = vmatpush1.bf16.msra.mxu0 0
        %2888 = vmatprep.mubr.bf16.mxu0 0
        %2889 = vmatmul.mubr.bf16.gmra.mrb[0].mxu0 %v2842
        %v2890 = vpop.f32.mrb[0].mxu0
        %v2891 = vadd.f32 0.0, %v2890
        %v2892 = vpop.f32.mrb[0].mxu0
        %v2893 = vadd.f32 0.0, %v2892
        %v2894 = vpop.f32.mrb[0].mxu0
        %v2895 = vadd.f32 0.0, %v2894
        %v2896 = vpop.f32.mrb[0].mxu0
        %v2897 = vadd.f32 0.0, %v2896
        %2898 = vdwg.mxu0
        %v2899 = vadd.f32 %v2893, %v2854
        %v2900 = vadd.f32 %v2897, %v2855
        %v2901 = vtanh.pop %v2899
        %v2902 = vtanh.pop %v2900
        %v2903 = vadd.f32 %v2891, %v2901
        %v2904 = vadd.f32 %v2895, %v2902
        %v2905 = vmul.f32 %v1028, %v2903
        %v2906 = vmul.f32 %v1028, %v2904
        %v2907 = vadd.f32 %v2840, %v2905
        %v2908 = vadd.f32 %v2841, %v2906
        %v2909 = vpack.c.bf16 %v2908, %v2907
        %v2911 = vunpack.c.l.b16 %v2909
        %v2912 = vunpack.c.h.b16 %v2909
        %v2913 = vpack.c.b16 %v2911, %v2911
        %v2914 = vpack.c.b16 %v2912, %v2912
        %s2917 = scalar_lea.vmem %s315, 208 [#allocation10]
        %2918 = vst [vmem:[%s2917] sm:$0xf] %v2913
        %2919 = vst [vmem:[%s2917 + $0x4] sm:$0xf] %v2914
        %s2920 = scalar_lea.vmem [#allocation2], 432
        %v2921 = vld [vmem:[%s2920] sm:$0xff]
        %v2922 = vld [vmem:[%s2920 + $0x8] sm:$0xff]
        %2923 = vmatprep.subr.bf16.mxu0 %v1084
        %2924 = vmatpush1.bf16.msra.mxu0 %v1083
        %2925 = vmatprep.subr.bf16.mxu0 %v1086
        %2926 = vmatpush1.bf16.msra.mxu0 %v1085
        %2927 = vmatprep.subr.bf16.mxu0 %v1088
        %2928 = vmatpush1.bf16.msra.mxu0 %v1087
        %2929 = vmatprep.subr.bf16.mxu0 %v1090
        %2930 = vmatpush1.bf16.msra.mxu0 %v1089
        %2931 = vmatprep.subr.bf16.mxu0 %v1092
        %2932 = vmatpush1.bf16.msra.mxu0 %v1091
        %2933 = vmatprep.subr.bf16.mxu0 %v1094
        %2934 = vmatpush1.bf16.msra.mxu0 %v1093
        %2935 = vmatprep.subr.bf16.mxu0 %v1096
        %2936 = vmatpush1.bf16.msra.mxu0 %v1095
        %2937 = vmatprep.subr.bf16.mxu0 %v1098
        %2938 = vmatpush1.bf16.msra.mxu0 %v1097
        %2939 = vmatprep.subr.bf16.mxu0 0
        %2940 = vmatpush1.bf16.msra.mxu0 0
        %2941 = vmatprep.subr.bf16.mxu0 0
        %2942 = vmatpush1.bf16.msra.mxu0 0
        %2943 = vmatprep.subr.bf16.mxu0 0
        %2944 = vmatpush1.bf16.msra.mxu0 0
        %2945 = vmatprep.subr.bf16.mxu0 0
        %2946 = vmatpush1.bf16.msra.mxu0 0
        %2947 = vmatprep.subr.bf16.mxu0 0
        %2948 = vmatpush1.bf16.msra.mxu0 0
        %2949 = vmatprep.subr.bf16.mxu0 0
        %2950 = vmatpush1.bf16.msra.mxu0 0
        %2951 = vmatprep.subr.bf16.mxu0 0
        %2952 = vmatpush1.bf16.msra.mxu0 0
        %2953 = vmatprep.subr.bf16.mxu0 0
        %2954 = vmatpush1.bf16.msra.mxu0 0
        %2955 = vmatprep.mubr.bf16.mxu0 0
        %2956 = vmatmul.mubr.bf16.gmra.mrb[0].mxu0 %v2909
        %v2957 = vpop.f32.mrb[0].mxu0
        %v2958 = vadd.f32 0.0, %v2957
        %v2959 = vpop.f32.mrb[0].mxu0
        %v2960 = vadd.f32 0.0, %v2959
        %v2961 = vpop.f32.mrb[0].mxu0
        %v2962 = vadd.f32 0.0, %v2961
        %v2963 = vpop.f32.mrb[0].mxu0
        %v2964 = vadd.f32 0.0, %v2963
        %2965 = vdwg.mxu0
        %v2966 = vadd.f32 %v2960, %v2921
        %v2967 = vadd.f32 %v2964, %v2922
        %v2968 = vtanh.pop %v2966
        %v2969 = vtanh.pop %v2967
        %v2970 = vadd.f32 %v2958, %v2968
        %v2971 = vadd.f32 %v2962, %v2969
        %v2972 = vmul.f32 %v1028, %v2970
        %v2973 = vmul.f32 %v1028, %v2971
        %v2974 = vadd.f32 %v2907, %v2972
        %v2975 = vadd.f32 %v2908, %v2973
        %v2976 = vpack.c.bf16 %v2975, %v2974
        %v2978 = vunpack.c.l.b16 %v2976
        %v2979 = vunpack.c.h.b16 %v2976
        %v2980 = vpack.c.b16 %v2978, %v2978
        %v2981 = vpack.c.b16 %v2979, %v2979
        %s2984 = scalar_lea.vmem %s315, 216 [#allocation10]
        %2985 = vst [vmem:[%s2984] sm:$0xf] %v2980
        %2986 = vst [vmem:[%s2984 + $0x4] sm:$0xf] %v2981
        %s2987 = scalar_lea.vmem [#allocation2], 448
        %v2988 = vld [vmem:[%s2987] sm:$0xff]
        %v2989 = vld [vmem:[%s2987 + $0x8] sm:$0xff]
        %2990 = vmatprep.subr.bf16.mxu0 %v1084
        %2991 = vmatpush1.bf16.msra.mxu0 %v1083
        %2992 = vmatprep.subr.bf16.mxu0 %v1086
        %2993 = vmatpush1.bf16.msra.mxu0 %v1085
        %2994 = vmatprep.subr.bf16.mxu0 %v1088
        %2995 = vmatpush1.bf16.msra.mxu0 %v1087
        %2996 = vmatprep.subr.bf16.mxu0 %v1090
        %2997 = vmatpush1.bf16.msra.mxu0 %v1089
        %2998 = vmatprep.subr.bf16.mxu0 %v1092
        %2999 = vmatpush1.bf16.msra.mxu0 %v1091
        %3000 = vmatprep.subr.bf16.mxu0 %v1094
        %3001 = vmatpush1.bf16.msra.mxu0 %v1093
        %3002 = vmatprep.subr.bf16.mxu0 %v1096
        %3003 = vmatpush1.bf16.msra.mxu0 %v1095
        %3004 = vmatprep.subr.bf16.mxu0 %v1098
        %3005 = vmatpush1.bf16.msra.mxu0 %v1097
        %3006 = vmatprep.subr.bf16.mxu0 0
        %3007 = vmatpush1.bf16.msra.mxu0 0
        %3008 = vmatprep.subr.bf16.mxu0 0
        %3009 = vmatpush1.bf16.msra.mxu0 0
        %3010 = vmatprep.subr.bf16.mxu0 0
        %3011 = vmatpush1.bf16.msra.mxu0 0
        %3012 = vmatprep.subr.bf16.mxu0 0
        %3013 = vmatpush1.bf16.msra.mxu0 0
        %3014 = vmatprep.subr.bf16.mxu0 0
        %3015 = vmatpush1.bf16.msra.mxu0 0
        %3016 = vmatprep.subr.bf16.mxu0 0
        %3017 = vmatpush1.bf16.msra.mxu0 0
        %3018 = vmatprep.subr.bf16.mxu0 0
        %3019 = vmatpush1.bf16.msra.mxu0 0
        %3020 = vmatprep.subr.bf16.mxu0 0
        %3021 = vmatpush1.bf16.msra.mxu0 0
        %3022 = vmatprep.mubr.bf16.mxu0 0
        %3023 = vmatmul.mubr.bf16.gmra.mrb[0].mxu0 %v2976
        %v3024 = vpop.f32.mrb[0].mxu0
        %v3025 = vadd.f32 0.0, %v3024
        %v3026 = vpop.f32.mrb[0].mxu0
        %v3027 = vadd.f32 0.0, %v3026
        %v3028 = vpop.f32.mrb[0].mxu0
        %v3029 = vadd.f32 0.0, %v3028
        %v3030 = vpop.f32.mrb[0].mxu0
        %v3031 = vadd.f32 0.0, %v3030
        %3032 = vdwg.mxu0
        %v3033 = vadd.f32 %v3027, %v2988
        %v3034 = vadd.f32 %v3031, %v2989
        %v3035 = vtanh.pop %v3033
        %v3036 = vtanh.pop %v3034
        %v3037 = vadd.f32 %v3025, %v3035
        %v3038 = vadd.f32 %v3029, %v3036
        %v3039 = vmul.f32 %v1028, %v3037
        %v3040 = vmul.f32 %v1028, %v3038
        %v3041 = vadd.f32 %v2974, %v3039
        %v3042 = vadd.f32 %v2975, %v3040
        %v3043 = vpack.c.bf16 %v3042, %v3041
        %v3045 = vunpack.c.l.b16 %v3043
        %v3046 = vunpack.c.h.b16 %v3043
        %v3047 = vpack.c.b16 %v3045, %v3045
        %v3048 = vpack.c.b16 %v3046, %v3046
        %s3051 = scalar_lea.vmem %s315, 224 [#allocation10]
        %3052 = vst [vmem:[%s3051] sm:$0xf] %v3047
        %3053 = vst [vmem:[%s3051 + $0x4] sm:$0xf] %v3048
        %s3054 = scalar_lea.vmem [#allocation2], 464
        %v3055 = vld [vmem:[%s3054] sm:$0xff]
        %v3056 = vld [vmem:[%s3054 + $0x8] sm:$0xff]
        %3057 = vmatprep.subr.bf16.mxu0 %v1084
        %3058 = vmatpush1.bf16.msra.mxu0 %v1083
        %3059 = vmatprep.subr.bf16.mxu0 %v1086
        %3060 = vmatpush1.bf16.msra.mxu0 %v1085
        %3061 = vmatprep.subr.bf16.mxu0 %v1088
        %3062 = vmatpush1.bf16.msra.mxu0 %v1087
        %3063 = vmatprep.subr.bf16.mxu0 %v1090
        %3064 = vmatpush1.bf16.msra.mxu0 %v1089
        %3065 = vmatprep.subr.bf16.mxu0 %v1092
        %3066 = vmatpush1.bf16.msra.mxu0 %v1091
        %3067 = vmatprep.subr.bf16.mxu0 %v1094
        %3068 = vmatpush1.bf16.msra.mxu0 %v1093
        %3069 = vmatprep.subr.bf16.mxu0 %v1096
        %3070 = vmatpush1.bf16.msra.mxu0 %v1095
        %3071 = vmatprep.subr.bf16.mxu0 %v1098
        %3072 = vmatpush1.bf16.msra.mxu0 %v1097
        %3073 = vmatprep.subr.bf16.mxu0 0
        %3074 = vmatpush1.bf16.msra.mxu0 0
        %3075 = vmatprep.subr.bf16.mxu0 0
        %3076 = vmatpush1.bf16.msra.mxu0 0
        %3077 = vmatprep.subr.bf16.mxu0 0
        %3078 = vmatpush1.bf16.msra.mxu0 0
        %3079 = vmatprep.subr.bf16.mxu0 0
        %3080 = vmatpush1.bf16.msra.mxu0 0
        %3081 = vmatprep.subr.bf16.mxu0 0
        %3082 = vmatpush1.bf16.msra.mxu0 0
        %3083 = vmatprep.subr.bf16.mxu0 0
        %3084 = vmatpush1.bf16.msra.mxu0 0
        %3085 = vmatprep.subr.bf16.mxu0 0
        %3086 = vmatpush1.bf16.msra.mxu0 0
        %3087 = vmatprep.subr.bf16.mxu0 0
        %3088 = vmatpush1.bf16.msra.mxu0 0
        %3089 = vmatprep.mubr.bf16.mxu0 0
        %3090 = vmatmul.mubr.bf16.gmra.mrb[0].mxu0 %v3043
        %v3091 = vpop.f32.mrb[0].mxu0
        %v3092 = vadd.f32 0.0, %v3091
        %v3093 = vpop.f32.mrb[0].mxu0
        %v3094 = vadd.f32 0.0, %v3093
        %v3095 = vpop.f32.mrb[0].mxu0
        %v3096 = vadd.f32 0.0, %v3095
        %v3097 = vpop.f32.mrb[0].mxu0
        %v3098 = vadd.f32 0.0, %v3097
        %3099 = vdwg.mxu0
        %v3100 = vadd.f32 %v3094, %v3055
        %v3101 = vadd.f32 %v3098, %v3056
        %v3102 = vtanh.pop %v3100
        %v3103 = vtanh.pop %v3101
        %v3104 = vadd.f32 %v3092, %v3102
        %v3105 = vadd.f32 %v3096, %v3103
        %v3106 = vmul.f32 %v1028, %v3104
        %v3107 = vmul.f32 %v1028, %v3105
        %v3108 = vadd.f32 %v3041, %v3106
        %v3109 = vadd.f32 %v3042, %v3107
        %v3110 = vpack.c.bf16 %v3109, %v3108
        %v3112 = vunpack.c.l.b16 %v3110
        %v3113 = vunpack.c.h.b16 %v3110
        %v3114 = vpack.c.b16 %v3112, %v3112
        %v3115 = vpack.c.b16 %v3113, %v3113
        %s3118 = scalar_lea.vmem %s315, 232 [#allocation10]
        %3119 = vst [vmem:[%s3118] sm:$0xf] %v3114
        %3120 = vst [vmem:[%s3118 + $0x4] sm:$0xf] %v3115
        %s3121 = scalar_lea.vmem [#allocation2], 480
        %v3122 = vld [vmem:[%s3121] sm:$0xff]
        %v3123 = vld [vmem:[%s3121 + $0x8] sm:$0xff]
        %3124 = vmatprep.subr.bf16.mxu0 %v1084
        %3125 = vmatpush1.bf16.msra.mxu0 %v1083
        %3126 = vmatprep.subr.bf16.mxu0 %v1086
        %3127 = vmatpush1.bf16.msra.mxu0 %v1085
        %3128 = vmatprep.subr.bf16.mxu0 %v1088
        %3129 = vmatpush1.bf16.msra.mxu0 %v1087
        %3130 = vmatprep.subr.bf16.mxu0 %v1090
        %3131 = vmatpush1.bf16.msra.mxu0 %v1089
        %3132 = vmatprep.subr.bf16.mxu0 %v1092
        %3133 = vmatpush1.bf16.msra.mxu0 %v1091
        %3134 = vmatprep.subr.bf16.mxu0 %v1094
        %3135 = vmatpush1.bf16.msra.mxu0 %v1093
        %3136 = vmatprep.subr.bf16.mxu0 %v1096
        %3137 = vmatpush1.bf16.msra.mxu0 %v1095
        %3138 = vmatprep.subr.bf16.mxu0 %v1098
        %3139 = vmatpush1.bf16.msra.mxu0 %v1097
        %3140 = vmatprep.subr.bf16.mxu0 0
        %3141 = vmatpush1.bf16.msra.mxu0 0
        %3142 = vmatprep.subr.bf16.mxu0 0
        %3143 = vmatpush1.bf16.msra.mxu0 0
        %3144 = vmatprep.subr.bf16.mxu0 0
        %3145 = vmatpush1.bf16.msra.mxu0 0
        %3146 = vmatprep.subr.bf16.mxu0 0
        %3147 = vmatpush1.bf16.msra.mxu0 0
        %3148 = vmatprep.subr.bf16.mxu0 0
        %3149 = vmatpush1.bf16.msra.mxu0 0
        %3150 = vmatprep.subr.bf16.mxu0 0
        %3151 = vmatpush1.bf16.msra.mxu0 0
        %3152 = vmatprep.subr.bf16.mxu0 0
        %3153 = vmatpush1.bf16.msra.mxu0 0
        %3154 = vmatprep.subr.bf16.mxu0 0
        %3155 = vmatpush1.bf16.msra.mxu0 0
        %3156 = vmatprep.mubr.bf16.mxu0 0
        %3157 = vmatmul.mubr.bf16.gmra.mrb[0].mxu0 %v3110
        %v3158 = vpop.f32.mrb[0].mxu0
        %v3159 = vadd.f32 0.0, %v3158
        %v3160 = vpop.f32.mrb[0].mxu0
        %v3161 = vadd.f32 0.0, %v3160
        %v3162 = vpop.f32.mrb[0].mxu0
        %v3163 = vadd.f32 0.0, %v3162
        %v3164 = vpop.f32.mrb[0].mxu0
        %v3165 = vadd.f32 0.0, %v3164
        %3166 = vdwg.mxu0
        %v3167 = vadd.f32 %v3161, %v3122
        %v3168 = vadd.f32 %v3165, %v3123
        %v3169 = vtanh.pop %v3167
        %v3170 = vtanh.pop %v3168
        %v3171 = vadd.f32 %v3159, %v3169
        %v3172 = vadd.f32 %v3163, %v3170
        %v3173 = vmul.f32 %v1028, %v3171
        %v3174 = vmul.f32 %v1028, %v3172
        %v3175 = vadd.f32 %v3108, %v3173
        %v3176 = vadd.f32 %v3109, %v3174
        %v3177 = vpack.c.bf16 %v3176, %v3175
        %v3179 = vunpack.c.l.b16 %v3177
        %v3180 = vunpack.c.h.b16 %v3177
        %v3181 = vpack.c.b16 %v3179, %v3179
        %v3182 = vpack.c.b16 %v3180, %v3180
        %s3185 = scalar_lea.vmem %s315, 240 [#allocation10]
        %3186 = vst [vmem:[%s3185] sm:$0xf] %v3181
        %3187 = vst [vmem:[%s3185 + $0x4] sm:$0xf] %v3182
        %s3188 = scalar_lea.vmem [#allocation2], 496
        %v3189 = vld [vmem:[%s3188] sm:$0xff]
        %v3190 = vld [vmem:[%s3188 + $0x8] sm:$0xff]
        %3191 = vmatprep.subr.bf16.mxu0 %v1084
        %3192 = vmatpush1.bf16.msra.mxu0 %v1083
        %3193 = vmatprep.subr.bf16.mxu0 %v1086
        %3194 = vmatpush1.bf16.msra.mxu0 %v1085
        %3195 = vmatprep.subr.bf16.mxu0 %v1088
        %3196 = vmatpush1.bf16.msra.mxu0 %v1087
        %3197 = vmatprep.subr.bf16.mxu0 %v1090
        %3198 = vmatpush1.bf16.msra.mxu0 %v1089
        %3199 = vmatprep.subr.bf16.mxu0 %v1092
        %3200 = vmatpush1.bf16.msra.mxu0 %v1091
        %3201 = vmatprep.subr.bf16.mxu0 %v1094
        %3202 = vmatpush1.bf16.msra.mxu0 %v1093
        %3203 = vmatprep.subr.bf16.mxu0 %v1096
        %3204 = vmatpush1.bf16.msra.mxu0 %v1095
        %3205 = vmatprep.subr.bf16.mxu0 %v1098
        %3206 = vmatpush1.bf16.msra.mxu0 %v1097
        %3207 = vmatprep.subr.bf16.mxu0 0
        %3208 = vmatpush1.bf16.msra.mxu0 0
        %3209 = vmatprep.subr.bf16.mxu0 0
        %3210 = vmatpush1.bf16.msra.mxu0 0
        %3211 = vmatprep.subr.bf16.mxu0 0
        %3212 = vmatpush1.bf16.msra.mxu0 0
        %3213 = vmatprep.subr.bf16.mxu0 0
        %3214 = vmatpush1.bf16.msra.mxu0 0
        %3215 = vmatprep.subr.bf16.mxu0 0
        %3216 = vmatpush1.bf16.msra.mxu0 0
        %3217 = vmatprep.subr.bf16.mxu0 0
        %3218 = vmatpush1.bf16.msra.mxu0 0
        %3219 = vmatprep.subr.bf16.mxu0 0
        %3220 = vmatpush1.bf16.msra.mxu0 0
        %3221 = vmatprep.subr.bf16.mxu0 0
        %3222 = vmatpush1.bf16.msra.mxu0 0
        %3223 = vmatprep.mubr.bf16.mxu0 0
        %3224 = vmatmul.mubr.bf16.gmra.mrb[0].mxu0 %v3177
        %v3225 = vpop.f32.mrb[0].mxu0
        %v3226 = vadd.f32 0.0, %v3225
        %v3227 = vpop.f32.mrb[0].mxu0
        %v3228 = vadd.f32 0.0, %v3227
        %v3229 = vpop.f32.mrb[0].mxu0
        %v3230 = vadd.f32 0.0, %v3229
        %v3231 = vpop.f32.mrb[0].mxu0
        %v3232 = vadd.f32 0.0, %v3231
        %3233 = vdwg.mxu0
        %v3234 = vadd.f32 %v3228, %v3189
        %v3235 = vadd.f32 %v3232, %v3190
        %v3236 = vtanh.pop %v3234
        %v3237 = vtanh.pop %v3235
        %v3238 = vadd.f32 %v3226, %v3236
        %v3239 = vadd.f32 %v3230, %v3237
        %v3240 = vmul.f32 %v1028, %v3238
        %v3241 = vmul.f32 %v1028, %v3239
        %v3242 = vadd.f32 %v3175, %v3240
        %v3243 = vadd.f32 %v3176, %v3241
        %v3244 = vpack.c.bf16 %v3243, %v3242
        %v3246 = vunpack.c.l.b16 %v3244
        %v3247 = vunpack.c.h.b16 %v3244
        %v3248 = vpack.c.b16 %v3246, %v3246
        %v3249 = vpack.c.b16 %v3247, %v3247
        %s3252 = scalar_lea.vmem %s315, 248 [#allocation10]
        %3253 = vst [vmem:[%s3252] sm:$0xf] %v3248
        %3254 = vst [vmem:[%s3252 + $0x4] sm:$0xf] %v3249
        %3255 = vst [vmem:[#allocation3] sm:$0xff] %v3242
        %3256 = vst [vmem:[#allocation3 + $0x8] sm:$0xff] %v3243
        %s3257 = sand.u32 %s157, 1
        %s3258 = scalar_lea.sflag [#allocation6], %s3257
        %s3259 = sand.u32 %s157, 1
        %s3260 = smul.addr %s3259, 256
        %s3261 = scalar_lea.vmem [#allocation10], %s3260
        // Predicated region
        $region57: #{tpu_custom_call.1} parent=39 // pred_check
          %p3262 = pneg %p167
        $region58: #{tpu_custom_call.1} parent=39 // pred_check_branch
          %3264 = sbr.rel (%p3262) target = $region60
        $region59: #{tpu_custom_call.1} parent=39 // pred_region
          #allocation14 [shape = 'u32[6]{0}', space=smem, size = 0x18, scoped, tag = 'DMA stride descriptor']
          %s3265 = smul.u32 32, %s28
          %s3266 = smul.u32 2, %s27
          %s3268 = ssub.s32 4096, 4096
          %3269 = vsyncadd %s3258, %s3268
          %s3270 = smul.addr %s3265, 4
          %s3271 = sadd.s32 %s3266, %s3270
          %s3272 = smul.addr %s3271, 64
          %s3273 = scalar_lea.hbm %s5, %s3272
          %s3275 = sshll.u32 1, 14
          %s3276 = sxor.u32 4294967295, %s3275
          %s3279 = sshll.u32 7, 18
          %s3280 = sxor.u32 4294967295, %s3279
          %s3281 = sand.u32 0, %s3280
          %s3283 = sor.u32 %s3281, 0
          %s3285 = sshll.u32 3, 24
          %s3286 = sxor.u32 4294967295, %s3285
          %s3287 = sand.u32 %s3283, %s3286
          %s3289 = sor.u32 %s3287, 0
          %s3290 = sshll.u32 %s3261, 4
          %s3291 = int_to_ptr.vmem [resolvable:$true] %s3290
          %3297 = sst [smem:[#allocation14]] 128
          %s3298 = scalar_lea.smem [#allocation14], 1
          %3299 = sst [smem:[%s3298]] 256
          %s3300 = scalar_lea.smem [#allocation14], 2
          %3301 = sst [smem:[%s3300]] 2
          %s3302 = scalar_lea.smem [#allocation14], 3
          %3303 = sst [smem:[%s3302]] 64
          %s3304 = scalar_lea.smem [#allocation14], 4
          %3305 = sst [smem:[%s3304]] 64
          %s3306 = scalar_lea.smem [#allocation14], 5
          %3307 = sst [smem:[%s3306]] 4
          %3309 = dma.general %s3291, 4096, %s3273, %s3258, [#allocation13], [#allocation14], %s3289, 0
        $region60: #{tpu_custom_call.1} parent=39 // pred_fallthru
          _
      $region40: #{tpu_custom_call.1} parent=5 // pred_fallthru
        _
      %p3310 = scmp.le.s32.totalorder 2, %s18
      // Predicated region
      $region61: #{tpu_custom_call.1} parent=5 // pred_check
        %p3311 = pneg %p3310
      $region62: #{tpu_custom_call.1} parent=5 // pred_check_branch
        %3313 = sbr.rel (%p3311) target = $region64
      $region63: #{tpu_custom_call.1} parent=5 // pred_region
        %s3314 = ssub.s32 %s18, 2
        // Predicated region
        $region65: #{tpu_custom_call.1} parent=63 // pred_check
          %p3315 = pneg %p173
        $region66: #{tpu_custom_call.1} parent=63 // pred_check_branch
          %3317 = sbr.rel (%p3315) target = $region68
        $region67: #{tpu_custom_call.1} parent=63 // pred_region
          %s3318 = sand.u32 %s158, 1
          %s3319 = scalar_lea.sflag [#allocation6], %s3318
          %s3320 = sand.u32 %s158, 1
          %s3321 = smul.addr %s3320, 256
          %s3322 = scalar_lea.vmem [#allocation10], %s3321
          %3323 = dma.done %s3319, 4096
        $region68: #{tpu_custom_call.1} parent=63 // pred_fallthru
          _
      $region64: #{tpu_custom_call.1} parent=5 // pred_fallthru
        _
    $region6: #{tpu_custom_call.1} parent=1 // loop_footer
      %s22 = sadd.s32 1, %s18
    $region7: #{tpu_custom_call.1} parent=1 // loop_footer_branch
      %17 = sbr.rel target = $region3
    $region8: #{tpu_custom_call.1} parent=1 // loop_exit
      _
    %3324 = vsyncpa [#allocation5], 1
    %s3325 = scalar_lea.sflag [#allocation5], 1
    %3326 = vsyncpa %s3325, 1
    %3327 = vsyncpa [#allocation8], 1
    %3328 = vsyncpa [#allocation6], 1
    %s3329 = scalar_lea.sflag [#allocation6], 1
    %3330 = vsyncpa %s3329, 1

</llo_original>
